<compile_context>
chip_gen: v6e
topology: v6e:2x2x1
jax: 0.10.0
libtpu: 0.0.40
codegen_flags: <defaults>
</compile_context>

<pallas_src>
import jax
import jax.numpy as jnp
from jax.experimental import pallas as pl
from jax.experimental.pallas import tpu as pltpu


# ---------------------------------------------------------------------------
# Kernel 1: fused (ConvT o Conv) as im2col matmul + bias + ReLU.
#   A (bm, 9) f32  @  Wm (9, 64) f32  + b (1, 64)  -> ReLU -> out (bm, 64) bf16
# K = 9 and N = 64 are full-dim blocks (no padding, no K grid axis).
# ---------------------------------------------------------------------------
def _conv_kernel(a_ref, w_ref, b_ref, o_ref):
    r = jnp.dot(a_ref[...], w_ref[...], preferred_element_type=jnp.float32)
    r = jnp.maximum(r + b_ref[...], 0.0)
    o_ref[...] = r.astype(o_ref.dtype)


def conv_pallas(a, w_mat, bias):
    """a: (M, 9) f32, w_mat: (9, 64) f32, bias: (64,) -> (M, 64) bf16 (post-ReLU)."""
    M, K = a.shape
    K2, C = w_mat.shape
    assert K == K2 and bias.shape == (C,)
    # 2 even grid steps -> balanced across v7x's two TensorCores; on v5e/v6e the
    # extra step is ~0.35 us.  Fall back to a single full-M block if M is odd-ish.
    bm = M // 2 if (M % 32 == 0) else M
    bias2d = bias.astype(jnp.float32).reshape(1, C)

    return pl.pallas_call(
        _conv_kernel,
        out_shape=jax.ShapeDtypeStruct((M, C), jnp.bfloat16),
        grid_spec=pltpu.PrefetchScalarGridSpec(
            num_scalar_prefetch=0,
            grid=(M // bm,),
            in_specs=[
                pl.BlockSpec((bm, K), lambda i: (i, 0)),
                pl.BlockSpec((K, C), lambda i: (0, 0)),
                pl.BlockSpec((1, C), lambda i: (0, 0)),
            ],
            out_specs=pl.BlockSpec((bm, C), lambda i: (i, 0)),
        ),
        compiler_params=pltpu.CompilerParams(
            dimension_semantics=("parallel",)),
    )(a.astype(jnp.float32), w_mat.astype(jnp.float32), bias2d)


# ---------------------------------------------------------------------------
# Kernel 2: FC layer  out = flat @ W^T + bias, W kept in torch (N_out, K) layout
# (lane-dense, bf16).  K is reduced over an "arbitrary" grid axis with the output
# block resident in VMEM as the f32 accumulator; bias is the step-0 init value.
# ---------------------------------------------------------------------------
def _fc_kernel(x_ref, w_ref, b_ref, o_ref):
    @pl.when(pl.program_id(0) == 0)
    def _():
        o_ref[...] = jnp.broadcast_to(b_ref[...], o_ref.shape)

    o_ref[...] += jax.lax.dot_general(
        x_ref[...], w_ref[...],
        dimension_numbers=(((1,), (1,)), ((), ())),
        preferred_element_type=jnp.float32)


def fc_pallas(flat, w, bias, *, k_chunks=4):
    """flat: (M, K) bf16, w: (N_out, K) bf16 [torch layout], bias: (N_out,) -> (M, N_out) f32."""
    M, K = flat.shape
    Nout, K2 = w.shape
    assert K == K2 and bias.shape == (Nout,)
    assert K % k_chunks == 0 and (K // k_chunks) % 128 == 0
    kc = K // k_chunks
    bias2d = bias.astype(jnp.float32).reshape(1, Nout)

    return pl.pallas_call(
        _fc_kernel,
        out_shape=jax.ShapeDtypeStruct((M, Nout), jnp.float32),
        grid_spec=pltpu.PrefetchScalarGridSpec(
            num_scalar_prefetch=0,
            grid=(k_chunks,),
            in_specs=[
                pl.BlockSpec((M, kc), lambda k: (0, k)),
                pl.BlockSpec((Nout, kc), lambda k: (0, k)),
                pl.BlockSpec((1, Nout), lambda k: (0, 0)),
            ],
            out_specs=pl.BlockSpec((M, Nout), lambda k: (0, 0)),
        ),
        compiler_params=pltpu.CompilerParams(
            dimension_semantics=("arbitrary",)),
    )(flat, w, bias2d)


# ---------------------------------------------------------------------------
# Parameters (torch layouts) and one-time preparation (outside the jitted fwd).
# ---------------------------------------------------------------------------
def init_params(key):
    """PyTorch-default-like uniform(-1/sqrt(fan_in), 1/sqrt(fan_in)) init."""
    ks = jax.random.split(key, 6)

    def u(k, shape, fan_in):
        bnd = 1.0 / float(fan_in) ** 0.5
        return jax.random.uniform(k, shape, jnp.float32, -bnd, bnd)

    wt = u(ks[0], (1, 32, 3, 3), 1 * 9)       # ConvTranspose2d weight (Cin, Cout, kH, kW)
    bt = u(ks[1], (32,), 1 * 9)               # ConvTranspose2d bias
    w2 = u(ks[2], (64, 32, 3, 3), 32 * 9)     # Conv2d weight (Cout, Cin, kH, kW)
    b2 = u(ks[3], (64,), 32 * 9)              # Conv2d bias
    wf = u(ks[4], (10, 50176), 50176)         # Linear weight (out, in)  NCHW-flatten cols
    bf = u(ks[5], (10,), 50176)               # Linear bias
    return wt, bt, w2, b2, wf, bf


def prepare_params(params):
    """One-time (outside jit) algebraic prep; keeps forward-pass semantics exact.

    1) Compose ConvTranspose2d(1->32,3,s2) followed by Conv2d(32->64,3,s2) -- there is
       no activation between them -- into a single 3x3 stride-1 SAME conv (1 -> 64)
       on the 28x28 input:
         out2[oc,p,q] = b_eff[oc] + sum_{dy,dx} x[p+dy, q+dx] * W_eff[oc, dy+1, dx+1]
       with W_eff[oc,dy+1,dx+1] = sum_c sum_{kh-kh1=2dy} sum_{kw-kw1=2dx}
                                   w2[oc,c,kh,kw] * wt[0,c,kh1,kw1]
       and  b_eff = b2 + (sum_{kh,kw} w2) @ bt.
    2) Permute the Linear weight's columns from NCHW-flatten (oc*784 + pq) to the
       (pq*64 + oc) order the conv kernel emits, and cast it to bf16.
    """
    wt, bt, w2, b2, wf, bf = params

    w_eff = jnp.zeros((64, 3, 3), jnp.float32)
    for kh in range(3):
        for kh1 in range(3):
            if (kh - kh1) % 2:
                continue
            dy = (kh - kh1) // 2
            for kw in range(3):
                for kw1 in range(3):
                    if (kw - kw1) % 2:
                        continue
                    dx = (kw - kw1) // 2
                    w_eff = w_eff.at[:, dy + 1, dx + 1].add(
                        w2[:, :, kh, kw] @ wt[0, :, kh1, kw1])

    w_mat = w_eff.transpose(1, 2, 0).reshape(9, 64)          # rows t = (dy+1)*3 + (dx+1)
    b_eff = b2 + w2.sum(axis=(2, 3)) @ bt                     # (64,)

    wf_p = (wf.reshape(10, 64, 28 * 28)                       # (j, oc, pq)
              .transpose(0, 2, 1)                             # (j, pq, oc)
              .reshape(10, 50176)
              .astype(jnp.bfloat16))                          # halve the HBM stream
    return w_mat, b_eff, wf_p, bf


# ---------------------------------------------------------------------------
# Forward (jitted): pad + tiny im2col in XLA, then 2 Pallas kernels.
# ---------------------------------------------------------------------------
def forward(x, prepared):
    w_mat, b_eff, wf_p, bf = prepared
    N = x.shape[0]
    assert x.shape == (N, 1, 28, 28), "fc expects 64*28*28 = 50176 features"

    # 3x3 SAME im2col of the 28x28 single-channel input (tiny: <60 KB of source data).
    xp = jnp.pad(x[:, 0].astype(jnp.float32), ((0, 0), (1, 1), (1, 1)))       # (N, 30, 30)
    patches = jnp.stack(
        [xp[:, kh:kh + 28, kw:kw + 28] for kh in range(3) for kw in range(3)],
        axis=-1)                                                              # (N, 28, 28, 9)
    a = patches.reshape(N * 28 * 28, 9)

    # Fused ConvTranspose2d + Conv2d + ReLU (composed weights), bf16 output.
    h2 = conv_pallas(a, w_mat, b_eff)                 # (N*784, 64), row = n*784 + p*28 + q

    # Flatten in the (pq, oc) order matching the pre-permuted FC weight columns.
    flat = h2.reshape(N, 28 * 28 * 64)                # (N, 50176) bf16

    # Linear(50176 -> 10); the module returns this PRE-ReLU value.
    return fc_pallas(flat, wf_p, bf)                  # (N, 10) f32


if __name__ == "__main__":
    key = jax.random.PRNGKey(0)
    kx, kp = jax.random.split(key)
    x = jax.random.normal(kx, (2, 1, 28, 28), jnp.float32)

    params = init_params(kp)
    prepared = prepare_params(params)     # one-time weight composition / permutation / bf16 cast

    fwd = jax.jit(forward)
    out = fwd(x, prepared)
    jax.block_until_ready(out)

    assert out.shape == (2, 10) and out.dtype == jnp.float32
    print("KERNEL_OK")
</pallas_src>

<mosaic_0001>
module attributes {stable_mosaic.version = 11 : i64} {
  func.func @_conv_kernel(%arg0: i32, %arg1: memref<784x9xf32, #tpu.memory_space<vmem>>, %arg2: memref<9x64xf32, #tpu.memory_space<vmem>>, %arg3: memref<1x64xf32, #tpu.memory_space<vmem>>, %arg4: memref<784x64xbf16, #tpu.memory_space<vmem>>) attributes {dimension_semantics = [#tpu.dimension_semantics<parallel>], iteration_bounds = array<i64: 2>, scalar_prefetch = 0 : i64, scratch_operands = 0 : i64, tpu.core_type = #tpu.core_type<tc>, window_params = [{transform_indices = @transform_0, window_bounds = array<i64: 784, 9>}, {pipeline_mode = #tpu.pipeline_mode<synchronous>, transform_indices = @transform_1, window_bounds = array<i64: 9, 64>}, {pipeline_mode = #tpu.pipeline_mode<synchronous>, transform_indices = @transform_2, window_bounds = array<i64: 1, 64>}, {transform_indices = @transform_3, window_bounds = array<i64: 784, 64>}]} {
    %c0 = arith.constant 0 : index
    %c0_0 = arith.constant 0 : index
    %0 = vector.load %arg1[%c0, %c0_0] : memref<784x9xf32, #tpu.memory_space<vmem>>, vector<784x9xf32>
    %c0_1 = arith.constant 0 : index
    %c0_2 = arith.constant 0 : index
    %1 = vector.load %arg2[%c0_1, %c0_2] : memref<9x64xf32, #tpu.memory_space<vmem>>, vector<9x64xf32>
    %cst = arith.constant dense<0.000000e+00> : vector<784x64xf32>
    %2 = tpu.matmul %0, %1, %cst {dimension_numbers = #tpu.dot_dimension_numbers<[1], [0], [0], [1], [0, 0, 1, 1], [], []>} : vector<784x9xf32>, vector<9x64xf32>, vector<784x64xf32> -> vector<784x64xf32>
    %c0_3 = arith.constant 0 : index
    %c0_4 = arith.constant 0 : index
    %3 = vector.load %arg3[%c0_3, %c0_4] : memref<1x64xf32, #tpu.memory_space<vmem>>, vector<1x64xf32>
    %4 = vector.broadcast %3 : vector<1x64xf32> to vector<784x64xf32>
    %5 = arith.addf %2, %4 : vector<784x64xf32>
    %cst_5 = arith.constant 0.000000e+00 : f32
    %6 = vector.broadcast %cst_5 : f32 to vector<784x64xf32>
    %7 = arith.maximumf %5, %6 : vector<784x64xf32>
    %8 = arith.truncf %7 : vector<784x64xf32> to vector<784x64xbf16>
    %c0_6 = arith.constant 0 : index
    %c0_7 = arith.constant 0 : index
    %9 = vector.load %arg4[%c0_6, %c0_7] : memref<784x64xbf16, #tpu.memory_space<vmem>>, vector<784x64xbf16>
    tpu.vector_store %arg4[%c0_6, %c0_7], %8 {strides = array<i32>} : memref<784x64xbf16, #tpu.memory_space<vmem>>, vector<784x64xbf16>,
    return
  }
  func.func @transform_0(%arg0: i32) -> (i32, i32) {
    %c0_i32 = arith.constant 0 : i32
    %c0_i32_0 = arith.constant 0 : i32
    return %arg0, %c0_i32 : i32, i32
  }
  func.func @transform_1(%arg0: i32) -> (i32, i32) {
    %c0_i32 = arith.constant 0 : i32
    %c0_i32_0 = arith.constant 0 : i32
    %c0_i32_1 = arith.constant 0 : i32
    return %c0_i32, %c0_i32_0 : i32, i32
  }
  func.func @transform_2(%arg0: i32) -> (i32, i32) {
    %c0_i32 = arith.constant 0 : i32
    %c0_i32_0 = arith.constant 0 : i32
    %c0_i32_1 = arith.constant 0 : i32
    return %c0_i32, %c0_i32_0 : i32, i32
  }
  func.func @transform_3(%arg0: i32) -> (i32, i32) {
    %c0_i32 = arith.constant 0 : i32
    %c0_i32_0 = arith.constant 0 : i32
    return %arg0, %c0_i32 : i32, i32
  }
}

module attributes {stable_mosaic.version = 11 : i64} {
  func.func @_fc_kernel(%arg0: i32, %arg1: memref<2x12544xbf16, #tpu.memory_space<vmem>>, %arg2: memref<10x12544xbf16, #tpu.memory_space<vmem>>, %arg3: memref<1x10xf32, #tpu.memory_space<vmem>>, %arg4: memref<2x10xf32, #tpu.memory_space<vmem>>) attributes {dimension_semantics = [#tpu.dimension_semantics<arbitrary>], iteration_bounds = array<i64: 4>, scalar_prefetch = 0 : i64, scratch_operands = 0 : i64, tpu.core_type = #tpu.core_type<tc>, window_params = [{transform_indices = @transform_0, window_bounds = array<i64: 2, 12544>}, {transform_indices = @transform_1, window_bounds = array<i64: 10, 12544>}, {pipeline_mode = #tpu.pipeline_mode<synchronous>, transform_indices = @transform_2, window_bounds = array<i64: 1, 10>}, {pipeline_mode = #tpu.pipeline_mode<synchronous>, transform_indices = @transform_3, window_bounds = array<i64: 2, 10>}]} {
    %c0_i32 = arith.constant 0 : i32
    %0 = arith.cmpi eq, %arg0, %c0_i32 : i32
    %1 = arith.extui %0 : i1 to i32
    %c0_i32_0 = arith.constant 0 : i32
    %2 = arith.cmpi ne, %1, %c0_i32_0 : i32
    scf.if %2 {
      %c0_8 = arith.constant 0 : index
      %c0_9 = arith.constant 0 : index
      %9 = vector.load %arg3[%c0_8, %c0_9] : memref<1x10xf32, #tpu.memory_space<vmem>>, vector<1x10xf32>
      %10 = vector.shape_cast %9 : vector<1x10xf32> to vector<1x10xf32>
      %11 = vector.broadcast %10 : vector<1x10xf32> to vector<2x10xf32>
      %c0_10 = arith.constant 0 : index
      %c0_11 = arith.constant 0 : index
      %12 = vector.load %arg4[%c0_10, %c0_11] : memref<2x10xf32, #tpu.memory_space<vmem>>, vector<2x10xf32>
      tpu.vector_store %arg4[%c0_10, %c0_11], %11 {strides = array<i32>} : memref<2x10xf32, #tpu.memory_space<vmem>>, vector<2x10xf32>,
    } else {
    }
    %c0 = arith.constant 0 : index
    %c0_1 = arith.constant 0 : index
    %3 = vector.load %arg4[%c0, %c0_1] : memref<2x10xf32, #tpu.memory_space<vmem>>, vector<2x10xf32>
    %c0_2 = arith.constant 0 : index
    %c0_3 = arith.constant 0 : index
    %4 = vector.load %arg1[%c0_2, %c0_3] : memref<2x12544xbf16, #tpu.memory_space<vmem>>, vector<2x12544xbf16>
    %c0_4 = arith.constant 0 : index
    %c0_5 = arith.constant 0 : index
    %5 = vector.load %arg2[%c0_4, %c0_5] : memref<10x12544xbf16, #tpu.memory_space<vmem>>, vector<10x12544xbf16>
    %cst = arith.constant dense<0.000000e+00> : vector<2x10xf32>
    %6 = tpu.matmul %4, %5, %cst {dimension_numbers = #tpu.dot_dimension_numbers<[1], [1], [0], [0], [0, 0, 1, 0], [], []>} : vector<2x12544xbf16>, vector<10x12544xbf16>, vector<2x10xf32> -> vector<2x10xf32>
    %7 = arith.addf %3, %6 : vector<2x10xf32>
    %c0_6 = arith.constant 0 : index
    %c0_7 = arith.constant 0 : index
    %8 = vector.load %arg4[%c0_6, %c0_7] : memref<2x10xf32, #tpu.memory_space<vmem>>, vector<2x10xf32>
    tpu.vector_store %arg4[%c0_6, %c0_7], %7 {strides = array<i32>} : memref<2x10xf32, #tpu.memory_space<vmem>>, vector<2x10xf32>,
    return
  }
  func.func @transform_0(%arg0: i32) -> (i32, i32) {
    %c0_i32 = arith.constant 0 : i32
    %c0_i32_0 = arith.constant 0 : i32
    return %c0_i32, %arg0 : i32, i32
  }
  func.func @transform_1(%arg0: i32) -> (i32, i32) {
    %c0_i32 = arith.constant 0 : i32
    %c0_i32_0 = arith.constant 0 : i32
    return %c0_i32, %arg0 : i32, i32
  }
  func.func @transform_2(%arg0: i32) -> (i32, i32) {
    %c0_i32 = arith.constant 0 : i32
    %c0_i32_0 = arith.constant 0 : i32
    %c0_i32_1 = arith.constant 0 : i32
    return %c0_i32, %c0_i32_0 : i32, i32
  }
  func.func @transform_3(%arg0: i32) -> (i32, i32) {
    %c0_i32 = arith.constant 0 : i32
    %c0_i32_0 = arith.constant 0 : i32
    %c0_i32_1 = arith.constant 0 : i32
    return %c0_i32, %c0_i32_0 : i32, i32
  }
}

</mosaic_0001>

<llo_original>
// kernel: forward.2
$region0: #{forward.2}
  #allocation0 [shape = 'u32[]', space=smem, size = 0x4, offset = 0x4, fixed_abs, tag = 'smem constant byte address 0x4 - core index']
  #allocation1 [shape = 'u32[144,128]{1,0:T(1,128)}', space=vmem, size = 0x12000, scoped, tag = 'internal scratch']
  %s0 = inlined_call_operand.vmem [shape: f32[1568,9], index: 0, kind: input, shape index: {}]
  %s1 = inlined_call_operand.vmem [shape: f32[9,64], index: 1, kind: input, shape index: {}]
  %s2 = inlined_call_operand.vmem [shape: f32[1,64], index: 2, kind: input, shape index: {}]
  %s3 = inlined_call_operand.vmem [shape: bf16[1568,64], index: 3, kind: output, shape index: {}]
  %s4 = sld [smem:[#allocation0]]
  $region45: #{forward.2} parent=0
    _
  %s6 = ssub.s32 1, %s4
  %s7 = scalar_select 0, %s6, %s4
  loop: start=0, step=1, limit=4
  $region2: #{forward.2} parent=0 // loop_pre_header
    _
  $region3: #{forward.2} parent=0 // loop_header
    %s9 = sphi 0, %s13
    %p10 = scmp.ge.s32.totalorder %s9, 4
    %s19 = sphi 0, %s21
    %s22 = sphi 0, %s19
    %s23 = sphi 0, %s22
    %s39 = sphi 0, %s23
    %s43 = sphi 0, %s43
    %s45 = sphi 0, %s43
    %s46 = sphi 0, %s45
    %s60 = sphi 0, %s46
    %s64 = sphi 0, %s64
    %s66 = sphi 0, %s64
    %s67 = sphi 0, %s66
    %s81 = sphi 0, %s67
    %s87 = sphi 0, %s89
    %s90 = sphi 0, %s87
    %s91 = sphi 0, %s90
    %s107 = sphi 0, %s91
  $region4: #{forward.2} parent=0 // loop_header_branch
    %12 = sbr.rel (%p10) target = $region8
  $region5: #{forward.2} parent=0 // loop_body
    %s14 = ssub.s32 %s9, 1
    %s15 = ssub.s32 %s9, 2
    %s16 = sadd.s32 %s9, 1
    %s17 = ssub.s32 %s9, %s16
    %p18 = scmp.eq.s32.totalorder %s17, 0
    %s20 = sadd.s32 %s19, 1
    %s21 = scalar_select %p18, %s19, %s20
    %p24 = pneg %p18
    %p25 = scmp.eq.s32.totalorder %s9, 1
    %p26 = por %p24, %p25
    %p27 = scmp.ne.s32.totalorder %s19, %s22
    %p28 = scmp.eq.s32.totalorder %s9, 0
    %p29 = por %p27, %p28
    %p30 = scmp.ne.s32.totalorder %s19, %s22
    %p31 = scmp.eq.s32.totalorder %s14, 1
    %p32 = por %p30, %p31
    %p33 = scmp.ne.s32.totalorder %s22, %s23
    %p34 = scmp.eq.s32.totalorder %s14, 0
    %p35 = por %p33, %p34
    %p36 = scmp.ne.s32.totalorder %s22, %s23
    %p37 = scmp.eq.s32.totalorder %s15, 1
    %p38 = por %p36, %p37
    %p40 = scmp.ne.s32.totalorder %s23, %s39
    %p41 = scmp.eq.s32.totalorder %s15, 0
    %p42 = por %p40, %p41
    %s44 = sadd.s32 %s43, 1
    %p47 = scmp.eq.s32.totalorder %s9, 1
    %p48 = scmp.ne.s32.totalorder %s43, %s45
    %p49 = scmp.eq.s32.totalorder %s9, 0
    %p50 = por %p48, %p49
    %p51 = scmp.ne.s32.totalorder %s43, %s45
    %p52 = scmp.eq.s32.totalorder %s14, 1
    %p53 = por %p51, %p52
    %p54 = scmp.ne.s32.totalorder %s45, %s46
    %p55 = scmp.eq.s32.totalorder %s14, 0
    %p56 = por %p54, %p55
    %p57 = scmp.ne.s32.totalorder %s45, %s46
    %p58 = scmp.eq.s32.totalorder %s15, 1
    %p59 = por %p57, %p58
    %p61 = scmp.ne.s32.totalorder %s46, %s60
    %p62 = scmp.eq.s32.totalorder %s15, 0
    %p63 = por %p61, %p62
    %s65 = sadd.s32 %s64, 1
    %p68 = scmp.eq.s32.totalorder %s9, 1
    %p69 = scmp.ne.s32.totalorder %s64, %s66
    %p70 = scmp.eq.s32.totalorder %s9, 0
    %p71 = por %p69, %p70
    %p72 = scmp.ne.s32.totalorder %s64, %s66
    %p73 = scmp.eq.s32.totalorder %s14, 1
    %p74 = por %p72, %p73
    %p75 = scmp.ne.s32.totalorder %s66, %s67
    %p76 = scmp.eq.s32.totalorder %s14, 0
    %p77 = por %p75, %p76
    %p78 = scmp.ne.s32.totalorder %s66, %s67
    %p79 = scmp.eq.s32.totalorder %s15, 1
    %p80 = por %p78, %p79
    %p82 = scmp.ne.s32.totalorder %s67, %s81
    %p83 = scmp.eq.s32.totalorder %s15, 0
    %p84 = por %p82, %p83
    %s85 = ssub.s32 %s9, %s16
    %p86 = scmp.eq.s32.totalorder %s85, 0
    %s88 = sadd.s32 %s87, 1
    %s89 = scalar_select %p86, %s87, %s88
    %p92 = pneg %p86
    %p93 = scmp.eq.s32.totalorder %s9, 1
    %p94 = por %p92, %p93
    %p95 = scmp.ne.s32.totalorder %s87, %s90
    %p96 = scmp.eq.s32.totalorder %s9, 0
    %p97 = por %p95, %p96
    %p98 = scmp.ne.s32.totalorder %s87, %s90
    %p99 = scmp.eq.s32.totalorder %s14, 1
    %p100 = por %p98, %p99
    %p101 = scmp.ne.s32.totalorder %s90, %s91
    %p102 = scmp.eq.s32.totalorder %s14, 0
    %p103 = por %p101, %p102
    %p104 = scmp.ne.s32.totalorder %s90, %s91
    %p105 = scmp.eq.s32.totalorder %s15, 1
    %p106 = por %p104, %p105
    %p108 = scmp.ne.s32.totalorder %s91, %s107
    %p109 = scmp.eq.s32.totalorder %s15, 0
    %p110 = por %p108, %p109
    %p111 = scmp.le.s32.totalorder 1, %s9
    %p112 = scmp.lt.s32.totalorder %s9, 3
    %p113 = pnand %p111, %p112
    %p114 = pneg %p113
    // Predicated region
    $region9: #{forward.2} parent=5 // pred_check
      _
    $region10: #{forward.2} parent=5 // pred_check_branch
      %116 = sbr.rel (%p113) target = $region12
    $region11: #{forward.2} parent=5 // pred_region
      %s117 = ssub.s32 %s9, 1
      // Predicated region
      $region13: #{forward.2} parent=11 // pred_check
        %p118 = pneg %p56
      $region14: #{forward.2} parent=11 // pred_check_branch
        %120 = sbr.rel (%p118) target = $region16
      $region15: #{forward.2} parent=11 // pred_region
        _
      $region16: #{forward.2} parent=11 // pred_fallthru
        _
      // Predicated region
      $region17: #{forward.2} parent=11 // pred_check
        %p121 = pneg %p77
      $region18: #{forward.2} parent=11 // pred_check_branch
        %123 = sbr.rel (%p121) target = $region20
      $region19: #{forward.2} parent=11 // pred_region
        _
      $region20: #{forward.2} parent=11 // pred_fallthru
        _
    $region12: #{forward.2} parent=5 // pred_fallthru
      _
    %p124 = scmp.lt.s32.totalorder %s9, 2
    // Predicated region
    $region21: #{forward.2} parent=5 // pred_check
      %p125 = pneg %p124
    $region22: #{forward.2} parent=5 // pred_check_branch
      %127 = sbr.rel (%p125) target = $region24
    $region23: #{forward.2} parent=5 // pred_region
      // Predicated region
      $region25: #{forward.2} parent=23 // pred_check
        %p128 = pneg %p29
      $region26: #{forward.2} parent=23 // pred_check_branch
        %130 = sbr.rel (%p128) target = $region28
      $region27: #{forward.2} parent=23 // pred_region
        %s131 = smul.u32 98, %s9
        %p132 = scmp.lt.s32.totalorder %s131, 195
        %s133 = scalar_select %p132, %s131, 195
        %s134 = smul.addr %s133, 8
        %s135 = scalar_lea.vmem %s0, %s134
        %s136 = smul.u32 98, %s9
      $region28: #{forward.2} parent=23 // pred_fallthru
        _
    $region24: #{forward.2} parent=5 // pred_fallthru
      _
    %p137 = scmp.le.s32.totalorder 1, %s9
    %p138 = scmp.lt.s32.totalorder %s9, 3
    %p139 = pnand %p137, %p138
    %p140 = pneg %p139
    // Predicated region
    $region29: #{forward.2} parent=5 // pred_check
      _
    $region30: #{forward.2} parent=5 // pred_check_branch
      %142 = sbr.rel (%p139) target = $region32
    $region31: #{forward.2} parent=5 // pred_region
      %s143 = ssub.s32 %s9, 1
      %s144 = smul.u32 98, %s14
      %p145 = scmp.lt.s32.totalorder %s144, 195
      %s146 = scalar_select %p145, %s144, 195
      %s147 = smul.addr %s146, 8
      %s148 = scalar_lea.vmem %s0, %s147
      %p149 = pneg %p35
      %p150 = pneg %p32
      %p151 = pneg %p56
      %p152 = pneg %p53
      %p153 = pneg %p77
      %p154 = pneg %p74
      %p155 = pneg %p103
      %p156 = pneg %p100
      %s157 = smul.u32 98, %s14
      %p158 = scmp.lt.s32.totalorder %s157, 195
      %s159 = scalar_select %p158, %s157, 195
      %s160 = smul.addr %s159, 4
      %s161 = scalar_lea.vmem %s3, %s160
      %s162 = smul.u32 98, %s14
      %p163 = scmp.lt.s32.totalorder %s162, 195
      %s164 = scalar_select %p163, %s162, 195
      %s165 = smul.addr %s164, 8
      %s166 = scalar_lea.vmem %s0, %s165
      %s167 = smul.u32 98, %s14
      %s168 = smul.u32 98, %s14
      %p169 = scmp.lt.s32.totalorder %s168, 195
      %s170 = scalar_select %p169, %s168, 195
      %s171 = smul.addr %s170, 4
      %s172 = scalar_lea.vmem %s3, %s171
      %s173 = smul.u32 98, %s14
      %v174 = vld [vmem:[%s166] sm:$0xff]
      %v175 = vld [vmem:[%s166 + $0x8] sm:$0xff]
      %v176 = vld [vmem:[%s166 + $0x10] sm:$0xff]
      %v177 = vld [vmem:[%s166 + $0x18] sm:$0xff]
      %v178 = vld [vmem:[%s166 + $0x20] sm:$0xff]
      %v179 = vld [vmem:[%s166 + $0x28] sm:$0xff]
      %v180 = vld [vmem:[%s166 + $0x30] sm:$0xff]
      %v181 = vld [vmem:[%s166 + $0x38] sm:$0xff]
      %v182 = vld [vmem:[%s166 + $0x40] sm:$0xff]
      %v183 = vld [vmem:[%s166 + $0x48] sm:$0xff]
      %v184 = vld [vmem:[%s166 + $0x50] sm:$0xff]
      %v185 = vld [vmem:[%s166 + $0x58] sm:$0xff]
      %v186 = vld [vmem:[%s166 + $0x60] sm:$0xff]
      %v187 = vld [vmem:[%s166 + $0x68] sm:$0xff]
      %v188 = vld [vmem:[%s166 + $0x70] sm:$0xff]
      %v189 = vld [vmem:[%s166 + $0x78] sm:$0xff]
      %v190 = vld [vmem:[%s166 + $0x80] sm:$0xff]
      %v191 = vld [vmem:[%s166 + $0x88] sm:$0xff]
      %v192 = vld [vmem:[%s166 + $0x90] sm:$0xff]
      %v193 = vld [vmem:[%s166 + $0x98] sm:$0xff]
      %v194 = vld [vmem:[%s166 + $0xa0] sm:$0xff]
      %v195 = vld [vmem:[%s166 + $0xa8] sm:$0xff]
      %v196 = vld [vmem:[%s166 + $0xb0] sm:$0xff]
      %v197 = vld [vmem:[%s166 + $0xb8] sm:$0xff]
      %v198 = vld [vmem:[%s166 + $0xc0] sm:$0xff]
      %v199 = vld [vmem:[%s166 + $0xc8] sm:$0xff]
      %v200 = vld [vmem:[%s166 + $0xd0] sm:$0xff]
      %v201 = vld [vmem:[%s166 + $0xd8] sm:$0xff]
      %v202 = vld [vmem:[%s166 + $0xe0] sm:$0xff]
      %v203 = vld [vmem:[%s166 + $0xe8] sm:$0xff]
      %v204 = vld [vmem:[%s166 + $0xf0] sm:$0xff]
      %v205 = vld [vmem:[%s166 + $0xf8] sm:$0xff]
      %v206 = vld [vmem:[%s166 + $0x100] sm:$0xff]
      %v207 = vld [vmem:[%s166 + $0x108] sm:$0xff]
      %v208 = vld [vmem:[%s166 + $0x110] sm:$0xff]
      %v209 = vld [vmem:[%s166 + $0x118] sm:$0xff]
      %v210 = vld [vmem:[%s166 + $0x120] sm:$0xff]
      %v211 = vld [vmem:[%s166 + $0x128] sm:$0xff]
      %v212 = vld [vmem:[%s166 + $0x130] sm:$0xff]
      %v213 = vld [vmem:[%s166 + $0x138] sm:$0xff]
      %v214 = vld [vmem:[%s166 + $0x140] sm:$0xff]
      %v215 = vld [vmem:[%s166 + $0x148] sm:$0xff]
      %v216 = vld [vmem:[%s166 + $0x150] sm:$0xff]
      %v217 = vld [vmem:[%s166 + $0x158] sm:$0xff]
      %v218 = vld [vmem:[%s166 + $0x160] sm:$0xff]
      %v219 = vld [vmem:[%s166 + $0x168] sm:$0xff]
      %v220 = vld [vmem:[%s166 + $0x170] sm:$0xff]
      %v221 = vld [vmem:[%s166 + $0x178] sm:$0xff]
      %v222 = vld [vmem:[%s166 + $0x180] sm:$0xff]
      %v223 = vld [vmem:[%s166 + $0x188] sm:$0xff]
      %v224 = vld [vmem:[%s166 + $0x190] sm:$0xff]
      %v225 = vld [vmem:[%s166 + $0x198] sm:$0xff]
      %v226 = vld [vmem:[%s166 + $0x1a0] sm:$0xff]
      %v227 = vld [vmem:[%s166 + $0x1a8] sm:$0xff]
      %v228 = vld [vmem:[%s166 + $0x1b0] sm:$0xff]
      %v229 = vld [vmem:[%s166 + $0x1b8] sm:$0xff]
      %v230 = vld [vmem:[%s166 + $0x1c0] sm:$0xff]
      %v231 = vld [vmem:[%s166 + $0x1c8] sm:$0xff]
      %v232 = vld [vmem:[%s166 + $0x1d0] sm:$0xff]
      %v233 = vld [vmem:[%s166 + $0x1d8] sm:$0xff]
      %v234 = vld [vmem:[%s166 + $0x1e0] sm:$0xff]
      %v235 = vld [vmem:[%s166 + $0x1e8] sm:$0xff]
      %v236 = vld [vmem:[%s166 + $0x1f0] sm:$0xff]
      %v237 = vld [vmem:[%s166 + $0x1f8] sm:$0xff]
      %v238 = vld [vmem:[%s166 + $0x200] sm:$0xff]
      %v239 = vld [vmem:[%s166 + $0x208] sm:$0xff]
      %v240 = vld [vmem:[%s166 + $0x210] sm:$0xff]
      %v241 = vld [vmem:[%s166 + $0x218] sm:$0xff]
      %v242 = vld [vmem:[%s166 + $0x220] sm:$0xff]
      %v243 = vld [vmem:[%s166 + $0x228] sm:$0xff]
      %v244 = vld [vmem:[%s166 + $0x230] sm:$0xff]
      %v245 = vld [vmem:[%s166 + $0x238] sm:$0xff]
      %v246 = vld [vmem:[%s166 + $0x240] sm:$0xff]
      %v247 = vld [vmem:[%s166 + $0x248] sm:$0xff]
      %v248 = vld [vmem:[%s166 + $0x250] sm:$0xff]
      %v249 = vld [vmem:[%s166 + $0x258] sm:$0xff]
      %v250 = vld [vmem:[%s166 + $0x260] sm:$0xff]
      %v251 = vld [vmem:[%s166 + $0x268] sm:$0xff]
      %v252 = vld [vmem:[%s166 + $0x270] sm:$0xff]
      %v253 = vld [vmem:[%s166 + $0x278] sm:$0xff]
      %v254 = vld [vmem:[%s166 + $0x280] sm:$0xff]
      %v255 = vld [vmem:[%s166 + $0x288] sm:$0xff]
      %v256 = vld [vmem:[%s166 + $0x290] sm:$0xff]
      %v257 = vld [vmem:[%s166 + $0x298] sm:$0xff]
      %v258 = vld [vmem:[%s166 + $0x2a0] sm:$0xff]
      %v259 = vld [vmem:[%s166 + $0x2a8] sm:$0xff]
      %v260 = vld [vmem:[%s166 + $0x2b0] sm:$0xff]
      %v261 = vld [vmem:[%s166 + $0x2b8] sm:$0xff]
      %v262 = vld [vmem:[%s166 + $0x2c0] sm:$0xff]
      %v263 = vld [vmem:[%s166 + $0x2c8] sm:$0xff]
      %v264 = vld [vmem:[%s166 + $0x2d0] sm:$0xff]
      %v265 = vld [vmem:[%s166 + $0x2d8] sm:$0xff]
      %v266 = vld [vmem:[%s166 + $0x2e0] sm:$0xff]
      %v267 = vld [vmem:[%s166 + $0x2e8] sm:$0xff]
      %v268 = vld [vmem:[%s166 + $0x2f0] sm:$0xff]
      %v269 = vld [vmem:[%s166 + $0x2f8] sm:$0xff]
      %v270 = vld [vmem:[%s166 + $0x300] sm:$0xff]
      %v271 = vld [vmem:[%s166 + $0x308] sm:$0xff]
      %v272 = vld [vmem:[%s1] sm:$0xff]
      %v273 = vld [vmem:[%s1 + $0x8] sm:$0x1]
      %v274 = vld [vmem:[%s2] sm:$0x1]
      %v276 = vlaneseq
      %v277 = vshrl.u32 %v276, 7
      %v278 = vsub.s32 0, %v277
      %v279 = vrot.slane %v274, %v278
      %vm281 = vcmask 72704
      %v283 = vsel %vm281, %v174, 0
      %v286 = vsel %vm281, %v175, 0
      %v289 = vsel %vm281, %v176, 0
      %v292 = vsel %vm281, %v177, 0
      %v295 = vsel %vm281, %v178, 0
      %v298 = vsel %vm281, %v179, 0
      %v301 = vsel %vm281, %v180, 0
      %v304 = vsel %vm281, %v181, 0
      %v307 = vsel %vm281, %v182, 0
      %v310 = vsel %vm281, %v183, 0
      %v313 = vsel %vm281, %v184, 0
      %v316 = vsel %vm281, %v185, 0
      %v319 = vsel %vm281, %v186, 0
      %v322 = vsel %vm281, %v187, 0
      %v325 = vsel %vm281, %v188, 0
      %v328 = vsel %vm281, %v189, 0
      %v331 = vsel %vm281, %v190, 0
      %v334 = vsel %vm281, %v191, 0
      %v337 = vsel %vm281, %v192, 0
      %v340 = vsel %vm281, %v193, 0
      %v343 = vsel %vm281, %v194, 0
      %v346 = vsel %vm281, %v195, 0
      %v349 = vsel %vm281, %v196, 0
      %v352 = vsel %vm281, %v197, 0
      %v355 = vsel %vm281, %v198, 0
      %v358 = vsel %vm281, %v199, 0
      %v361 = vsel %vm281, %v200, 0
      %v364 = vsel %vm281, %v201, 0
      %v367 = vsel %vm281, %v202, 0
      %v370 = vsel %vm281, %v203, 0
      %v373 = vsel %vm281, %v204, 0
      %v376 = vsel %vm281, %v205, 0
      %v379 = vsel %vm281, %v206, 0
      %v382 = vsel %vm281, %v207, 0
      %v385 = vsel %vm281, %v208, 0
      %v388 = vsel %vm281, %v209, 0
      %v391 = vsel %vm281, %v210, 0
      %v394 = vsel %vm281, %v211, 0
      %v397 = vsel %vm281, %v212, 0
      %v400 = vsel %vm281, %v213, 0
      %v403 = vsel %vm281, %v214, 0
      %v406 = vsel %vm281, %v215, 0
      %v409 = vsel %vm281, %v216, 0
      %v412 = vsel %vm281, %v217, 0
      %v415 = vsel %vm281, %v218, 0
      %v418 = vsel %vm281, %v219, 0
      %v421 = vsel %vm281, %v220, 0
      %v424 = vsel %vm281, %v221, 0
      %v427 = vsel %vm281, %v222, 0
      %v430 = vsel %vm281, %v223, 0
      %v433 = vsel %vm281, %v224, 0
      %v436 = vsel %vm281, %v225, 0
      %v439 = vsel %vm281, %v226, 0
      %v442 = vsel %vm281, %v227, 0
      %v445 = vsel %vm281, %v228, 0
      %v448 = vsel %vm281, %v229, 0
      %v451 = vsel %vm281, %v230, 0
      %v454 = vsel %vm281, %v231, 0
      %v457 = vsel %vm281, %v232, 0
      %v460 = vsel %vm281, %v233, 0
      %v463 = vsel %vm281, %v234, 0
      %v466 = vsel %vm281, %v235, 0
      %v469 = vsel %vm281, %v236, 0
      %v472 = vsel %vm281, %v237, 0
      %v475 = vsel %vm281, %v238, 0
      %v478 = vsel %vm281, %v239, 0
      %v481 = vsel %vm281, %v240, 0
      %v484 = vsel %vm281, %v241, 0
      %v487 = vsel %vm281, %v242, 0
      %v490 = vsel %vm281, %v243, 0
      %v493 = vsel %vm281, %v244, 0
      %v496 = vsel %vm281, %v245, 0
      %v499 = vsel %vm281, %v246, 0
      %v502 = vsel %vm281, %v247, 0
      %v505 = vsel %vm281, %v248, 0
      %v508 = vsel %vm281, %v249, 0
      %v511 = vsel %vm281, %v250, 0
      %v514 = vsel %vm281, %v251, 0
      %v517 = vsel %vm281, %v252, 0
      %v520 = vsel %vm281, %v253, 0
      %v523 = vsel %vm281, %v254, 0
      %v526 = vsel %vm281, %v255, 0
      %v529 = vsel %vm281, %v256, 0
      %v532 = vsel %vm281, %v257, 0
      %v535 = vsel %vm281, %v258, 0
      %v538 = vsel %vm281, %v259, 0
      %v541 = vsel %vm281, %v260, 0
      %v544 = vsel %vm281, %v261, 0
      %v547 = vsel %vm281, %v262, 0
      %v550 = vsel %vm281, %v263, 0
      %v553 = vsel %vm281, %v264, 0
      %v556 = vsel %vm281, %v265, 0
      %v559 = vsel %vm281, %v266, 0
      %v562 = vsel %vm281, %v267, 0
      %v565 = vsel %vm281, %v268, 0
      %v568 = vsel %vm281, %v269, 0
      %v571 = vsel %vm281, %v270, 0
      %v574 = vsel %vm281, %v271, 0
      %vm576 = vcmask 1040384
      %v578 = vsel %vm576, %v273, 0
      %580 = vmatprep.subr.mxu0 0.0
      %581 = vmatpush1.msra.mxu0 0.0
      %582 = vmatprep.subr.mxu0 0.0
      %583 = vmatpush1.msra.mxu0 0.0
      %584 = vmatprep.subr.mxu0 0.0
      %585 = vmatpush1.msra.mxu0 0.0
      %586 = vmatprep.subr.mxu0 0.0
      %587 = vmatpush1.msra.mxu0 0.0
      %588 = vmatprep.subr.mxu0 0.0
      %589 = vmatpush1.msra.mxu0 0.0
      %590 = vmatprep.subr.mxu0 0.0
      %591 = vmatpush1.msra.mxu0 0.0
      %592 = vmatprep.subr.mxu0 0.0
      %593 = vmatpush1.msra.mxu0 0.0
      %594 = vmatprep.subr.mxu0 0.0
      %595 = vmatpush1.msra.mxu0 0.0
      %596 = vmatprep.subr.mxu0 0.0
      %597 = vmatpush1.msra.mxu0 0.0
      %598 = vmatprep.subr.mxu0 0.0
      %599 = vmatpush1.msra.mxu0 0.0
      %600 = vmatprep.subr.mxu0 0.0
      %601 = vmatpush1.msra.mxu0 0.0
      %602 = vmatprep.subr.mxu0 0.0
      %603 = vmatpush1.msra.mxu0 0.0
      %604 = vmatprep.subr.mxu0 0.0
      %605 = vmatpush1.msra.mxu0 0.0
      %606 = vmatprep.subr.mxu0 0.0
      %607 = vmatpush1.msra.mxu0 0.0
      %608 = vmatprep.subr.mxu0 0.0
      %609 = vmatpush1.msra.mxu0 %v578
      %610 = vmatprep.subr.mxu0 0.0
      %611 = vmatpush1.msra.mxu0 %v272
      %612 = vmatprep.subr.mxu0 0.0
      %613 = vmatpush2.msra.mxu0 0.0
      %614 = vmatprep.subr.mxu0 0.0
      %615 = vmatpush2.msra.mxu0 0.0
      %616 = vmatprep.subr.mxu0 0.0
      %617 = vmatpush2.msra.mxu0 0.0
      %618 = vmatprep.subr.mxu0 0.0
      %619 = vmatpush2.msra.mxu0 0.0
      %620 = vmatprep.subr.mxu0 0.0
      %621 = vmatpush2.msra.mxu0 0.0
      %622 = vmatprep.subr.mxu0 0.0
      %623 = vmatpush2.msra.mxu0 0.0
      %624 = vmatprep.subr.mxu0 0.0
      %625 = vmatpush2.msra.mxu0 0.0
      %626 = vmatprep.subr.mxu0 0.0
      %627 = vmatpush2.msra.mxu0 0.0
      %628 = vmatprep.subr.mxu0 0.0
      %629 = vmatpush2.msra.mxu0 0.0
      %630 = vmatprep.subr.mxu0 0.0
      %631 = vmatpush2.msra.mxu0 0.0
      %632 = vmatprep.subr.mxu0 0.0
      %633 = vmatpush2.msra.mxu0 0.0
      %634 = vmatprep.subr.mxu0 0.0
      %635 = vmatpush2.msra.mxu0 0.0
      %636 = vmatprep.subr.mxu0 0.0
      %637 = vmatpush2.msra.mxu0 0.0
      %638 = vmatprep.subr.mxu0 0.0
      %639 = vmatpush2.msra.mxu0 0.0
      %640 = vmatprep.subr.mxu0 0.0
      %641 = vmatpush2.msra.mxu0 0.0
      %642 = vmatprep.subr.mxu0 0.0
      %643 = vmatpush2.msra.mxu0 0.0
      %644 = vmatprep.mubr.f32.mxu0 0.0
      %645 = vmatmul.mubr.f32.gmra.mxu0 %v283
      %v646 = vpop.f32.mrf.mxu0
      %v647 = vadd.f32 %v279, %v646
      %v648 = vpop.f32.mrf.mxu0
      %649 = vmatprep.mubr.f32.mxu0 0.0
      %650 = vmatmul.mubr.f32.gmra.mxu0 %v286
      %v651 = vpop.f32.mrf.mxu0
      %v652 = vadd.f32 %v279, %v651
      %v653 = vpop.f32.mrf.mxu0
      %654 = vmatprep.mubr.f32.mxu0 0.0
      %655 = vmatmul.mubr.f32.gmra.mxu0 %v289
      %v656 = vpop.f32.mrf.mxu0
      %v657 = vadd.f32 %v279, %v656
      %v658 = vpop.f32.mrf.mxu0
      %659 = vmatprep.mubr.f32.mxu0 0.0
      %660 = vmatmul.mubr.f32.gmra.mxu0 %v292
      %v661 = vpop.f32.mrf.mxu0
      %v662 = vadd.f32 %v279, %v661
      %v663 = vpop.f32.mrf.mxu0
      %664 = vmatprep.mubr.f32.mxu0 0.0
      %665 = vmatmul.mubr.f32.gmra.mxu0 %v295
      %v666 = vpop.f32.mrf.mxu0
      %v667 = vadd.f32 %v279, %v666
      %v668 = vpop.f32.mrf.mxu0
      %669 = vmatprep.mubr.f32.mxu0 0.0
      %670 = vmatmul.mubr.f32.gmra.mxu0 %v298
      %v671 = vpop.f32.mrf.mxu0
      %v672 = vadd.f32 %v279, %v671
      %v673 = vpop.f32.mrf.mxu0
      %674 = vmatprep.mubr.f32.mxu0 0.0
      %675 = vmatmul.mubr.f32.gmra.mxu0 %v301
      %v676 = vpop.f32.mrf.mxu0
      %v677 = vadd.f32 %v279, %v676
      %v678 = vpop.f32.mrf.mxu0
      %679 = vmatprep.mubr.f32.mxu0 0.0
      %680 = vmatmul.mubr.f32.gmra.mxu0 %v304
      %v681 = vpop.f32.mrf.mxu0
      %v682 = vadd.f32 %v279, %v681
      %v683 = vpop.f32.mrf.mxu0
      %684 = vmatprep.mubr.f32.mxu0 0.0
      %685 = vmatmul.mubr.f32.gmra.mxu0 %v307
      %v686 = vpop.f32.mrf.mxu0
      %v687 = vadd.f32 %v279, %v686
      %v688 = vpop.f32.mrf.mxu0
      %689 = vmatprep.mubr.f32.mxu0 0.0
      %690 = vmatmul.mubr.f32.gmra.mxu0 %v310
      %v691 = vpop.f32.mrf.mxu0
      %v692 = vadd.f32 %v279, %v691
      %v693 = vpop.f32.mrf.mxu0
      %694 = vmatprep.mubr.f32.mxu0 0.0
      %695 = vmatmul.mubr.f32.gmra.mxu0 %v313
      %v696 = vpop.f32.mrf.mxu0
      %v697 = vadd.f32 %v279, %v696
      %v698 = vpop.f32.mrf.mxu0
      %699 = vmatprep.mubr.f32.mxu0 0.0
      %700 = vmatmul.mubr.f32.gmra.mxu0 %v316
      %v701 = vpop.f32.mrf.mxu0
      %v702 = vadd.f32 %v279, %v701
      %v703 = vpop.f32.mrf.mxu0
      %704 = vmatprep.mubr.f32.mxu0 0.0
      %705 = vmatmul.mubr.f32.gmra.mxu0 %v319
      %v706 = vpop.f32.mrf.mxu0
      %v707 = vadd.f32 %v279, %v706
      %v708 = vpop.f32.mrf.mxu0
      %709 = vmatprep.mubr.f32.mxu0 0.0
      %710 = vmatmul.mubr.f32.gmra.mxu0 %v322
      %v711 = vpop.f32.mrf.mxu0
      %v712 = vadd.f32 %v279, %v711
      %v713 = vpop.f32.mrf.mxu0
      %714 = vmatprep.mubr.f32.mxu0 0.0
      %715 = vmatmul.mubr.f32.gmra.mxu0 %v325
      %v716 = vpop.f32.mrf.mxu0
      %v717 = vadd.f32 %v279, %v716
      %v718 = vpop.f32.mrf.mxu0
      %719 = vmatprep.mubr.f32.mxu0 0.0
      %720 = vmatmul.mubr.f32.gmra.mxu0 %v328
      %v721 = vpop.f32.mrf.mxu0
      %v722 = vadd.f32 %v279, %v721
      %v723 = vpop.f32.mrf.mxu0
      %724 = vmatprep.mubr.f32.mxu0 0.0
      %725 = vmatmul.mubr.f32.gmra.mxu0 %v331
      %v726 = vpop.f32.mrf.mxu0
      %v727 = vadd.f32 %v279, %v726
      %v728 = vpop.f32.mrf.mxu0
      %729 = vmatprep.mubr.f32.mxu0 0.0
      %730 = vmatmul.mubr.f32.gmra.mxu0 %v334
      %v731 = vpop.f32.mrf.mxu0
      %v732 = vadd.f32 %v279, %v731
      %v733 = vpop.f32.mrf.mxu0
      %734 = vmatprep.mubr.f32.mxu0 0.0
      %735 = vmatmul.mubr.f32.gmra.mxu0 %v337
      %v736 = vpop.f32.mrf.mxu0
      %v737 = vadd.f32 %v279, %v736
      %v738 = vpop.f32.mrf.mxu0
      %739 = vmatprep.mubr.f32.mxu0 0.0
      %740 = vmatmul.mubr.f32.gmra.mxu0 %v340
      %v741 = vpop.f32.mrf.mxu0
      %v742 = vadd.f32 %v279, %v741
      %v743 = vpop.f32.mrf.mxu0
      %744 = vmatprep.mubr.f32.mxu0 0.0
      %745 = vmatmul.mubr.f32.gmra.mxu0 %v343
      %v746 = vpop.f32.mrf.mxu0
      %v747 = vadd.f32 %v279, %v746
      %v748 = vpop.f32.mrf.mxu0
      %749 = vmatprep.mubr.f32.mxu0 0.0
      %750 = vmatmul.mubr.f32.gmra.mxu0 %v346
      %v751 = vpop.f32.mrf.mxu0
      %v752 = vadd.f32 %v279, %v751
      %v753 = vpop.f32.mrf.mxu0
      %754 = vmatprep.mubr.f32.mxu0 0.0
      %755 = vmatmul.mubr.f32.gmra.mxu0 %v349
      %v756 = vpop.f32.mrf.mxu0
      %v757 = vadd.f32 %v279, %v756
      %v758 = vpop.f32.mrf.mxu0
      %759 = vmatprep.mubr.f32.mxu0 0.0
      %760 = vmatmul.mubr.f32.gmra.mxu0 %v352
      %v761 = vpop.f32.mrf.mxu0
      %v762 = vadd.f32 %v279, %v761
      %v763 = vpop.f32.mrf.mxu0
      %764 = vmatprep.mubr.f32.mxu0 0.0
      %765 = vmatmul.mubr.f32.gmra.mxu0 %v355
      %v766 = vpop.f32.mrf.mxu0
      %v767 = vadd.f32 %v279, %v766
      %v768 = vpop.f32.mrf.mxu0
      %769 = vmatprep.mubr.f32.mxu0 0.0
      %770 = vmatmul.mubr.f32.gmra.mxu0 %v358
      %v771 = vpop.f32.mrf.mxu0
      %v772 = vadd.f32 %v279, %v771
      %v773 = vpop.f32.mrf.mxu0
      %774 = vmatprep.mubr.f32.mxu0 0.0
      %775 = vmatmul.mubr.f32.gmra.mxu0 %v361
      %v776 = vpop.f32.mrf.mxu0
      %v777 = vadd.f32 %v279, %v776
      %v778 = vpop.f32.mrf.mxu0
      %779 = vmatprep.mubr.f32.mxu0 0.0
      %780 = vmatmul.mubr.f32.gmra.mxu0 %v364
      %v781 = vpop.f32.mrf.mxu0
      %v782 = vadd.f32 %v279, %v781
      %v783 = vpop.f32.mrf.mxu0
      %784 = vmatprep.mubr.f32.mxu0 0.0
      %785 = vmatmul.mubr.f32.gmra.mxu0 %v367
      %v786 = vpop.f32.mrf.mxu0
      %v787 = vadd.f32 %v279, %v786
      %v788 = vpop.f32.mrf.mxu0
      %789 = vmatprep.mubr.f32.mxu0 0.0
      %790 = vmatmul.mubr.f32.gmra.mxu0 %v370
      %v791 = vpop.f32.mrf.mxu0
      %v792 = vadd.f32 %v279, %v791
      %v793 = vpop.f32.mrf.mxu0
      %794 = vmatprep.mubr.f32.mxu0 0.0
      %795 = vmatmul.mubr.f32.gmra.mxu0 %v373
      %v796 = vpop.f32.mrf.mxu0
      %v797 = vadd.f32 %v279, %v796
      %v798 = vpop.f32.mrf.mxu0
      %799 = vmatprep.mubr.f32.mxu0 0.0
      %800 = vmatmul.mubr.f32.gmra.mxu0 %v376
      %v801 = vpop.f32.mrf.mxu0
      %v802 = vadd.f32 %v279, %v801
      %v803 = vpop.f32.mrf.mxu0
      %804 = vmatprep.mubr.f32.mxu0 0.0
      %805 = vmatmul.mubr.f32.gmra.mxu0 %v379
      %v806 = vpop.f32.mrf.mxu0
      %v807 = vadd.f32 %v279, %v806
      %v808 = vpop.f32.mrf.mxu0
      %809 = vmatprep.mubr.f32.mxu0 0.0
      %810 = vmatmul.mubr.f32.gmra.mxu0 %v382
      %v811 = vpop.f32.mrf.mxu0
      %v812 = vadd.f32 %v279, %v811
      %v813 = vpop.f32.mrf.mxu0
      %814 = vmatprep.mubr.f32.mxu0 0.0
      %815 = vmatmul.mubr.f32.gmra.mxu0 %v385
      %v816 = vpop.f32.mrf.mxu0
      %v817 = vadd.f32 %v279, %v816
      %v818 = vpop.f32.mrf.mxu0
      %819 = vmatprep.mubr.f32.mxu0 0.0
      %820 = vmatmul.mubr.f32.gmra.mxu0 %v388
      %v821 = vpop.f32.mrf.mxu0
      %v822 = vadd.f32 %v279, %v821
      %v823 = vpop.f32.mrf.mxu0
      %824 = vmatprep.mubr.f32.mxu0 0.0
      %825 = vmatmul.mubr.f32.gmra.mxu0 %v391
      %v826 = vpop.f32.mrf.mxu0
      %v827 = vadd.f32 %v279, %v826
      %v828 = vpop.f32.mrf.mxu0
      %829 = vmatprep.mubr.f32.mxu0 0.0
      %830 = vmatmul.mubr.f32.gmra.mxu0 %v394
      %v831 = vpop.f32.mrf.mxu0
      %v832 = vadd.f32 %v279, %v831
      %v833 = vpop.f32.mrf.mxu0
      %834 = vmatprep.mubr.f32.mxu0 0.0
      %835 = vmatmul.mubr.f32.gmra.mxu0 %v397
      %v836 = vpop.f32.mrf.mxu0
      %v837 = vadd.f32 %v279, %v836
      %v838 = vpop.f32.mrf.mxu0
      %839 = vmatprep.mubr.f32.mxu0 0.0
      %840 = vmatmul.mubr.f32.gmra.mxu0 %v400
      %v841 = vpop.f32.mrf.mxu0
      %v842 = vadd.f32 %v279, %v841
      %v843 = vpop.f32.mrf.mxu0
      %844 = vmatprep.mubr.f32.mxu0 0.0
      %845 = vmatmul.mubr.f32.gmra.mxu0 %v403
      %v846 = vpop.f32.mrf.mxu0
      %v847 = vadd.f32 %v279, %v846
      %v848 = vpop.f32.mrf.mxu0
      %849 = vmatprep.mubr.f32.mxu0 0.0
      %850 = vmatmul.mubr.f32.gmra.mxu0 %v406
      %v851 = vpop.f32.mrf.mxu0
      %v852 = vadd.f32 %v279, %v851
      %v853 = vpop.f32.mrf.mxu0
      %854 = vmatprep.mubr.f32.mxu0 0.0
      %855 = vmatmul.mubr.f32.gmra.mxu0 %v409
      %v856 = vpop.f32.mrf.mxu0
      %v857 = vadd.f32 %v279, %v856
      %v858 = vpop.f32.mrf.mxu0
      %859 = vmatprep.mubr.f32.mxu0 0.0
      %860 = vmatmul.mubr.f32.gmra.mxu0 %v412
      %v861 = vpop.f32.mrf.mxu0
      %v862 = vadd.f32 %v279, %v861
      %v863 = vpop.f32.mrf.mxu0
      %864 = vmatprep.mubr.f32.mxu0 0.0
      %865 = vmatmul.mubr.f32.gmra.mxu0 %v415
      %v866 = vpop.f32.mrf.mxu0
      %v867 = vadd.f32 %v279, %v866
      %v868 = vpop.f32.mrf.mxu0
      %869 = vmatprep.mubr.f32.mxu0 0.0
      %870 = vmatmul.mubr.f32.gmra.mxu0 %v418
      %v871 = vpop.f32.mrf.mxu0
      %v872 = vadd.f32 %v279, %v871
      %v873 = vpop.f32.mrf.mxu0
      %874 = vmatprep.mubr.f32.mxu0 0.0
      %875 = vmatmul.mubr.f32.gmra.mxu0 %v421
      %v876 = vpop.f32.mrf.mxu0
      %v877 = vadd.f32 %v279, %v876
      %v878 = vpop.f32.mrf.mxu0
      %879 = vmatprep.mubr.f32.mxu0 0.0
      %880 = vmatmul.mubr.f32.gmra.mxu0 %v424
      %v881 = vpop.f32.mrf.mxu0
      %v882 = vadd.f32 %v279, %v881
      %v883 = vpop.f32.mrf.mxu0
      %884 = vmatprep.mubr.f32.mxu0 0.0
      %885 = vmatmul.mubr.f32.gmra.mxu0 %v427
      %v886 = vpop.f32.mrf.mxu0
      %v887 = vadd.f32 %v279, %v886
      %v888 = vpop.f32.mrf.mxu0
      %889 = vmatprep.mubr.f32.mxu0 0.0
      %890 = vmatmul.mubr.f32.gmra.mxu0 %v430
      %v891 = vpop.f32.mrf.mxu0
      %v892 = vadd.f32 %v279, %v891
      %v893 = vpop.f32.mrf.mxu0
      %894 = vmatprep.mubr.f32.mxu0 0.0
      %895 = vmatmul.mubr.f32.gmra.mxu0 %v433
      %v896 = vpop.f32.mrf.mxu0
      %v897 = vadd.f32 %v279, %v896
      %v898 = vpop.f32.mrf.mxu0
      %899 = vmatprep.mubr.f32.mxu0 0.0
      %900 = vmatmul.mubr.f32.gmra.mxu0 %v436
      %v901 = vpop.f32.mrf.mxu0
      %v902 = vadd.f32 %v279, %v901
      %v903 = vpop.f32.mrf.mxu0
      %904 = vmatprep.mubr.f32.mxu0 0.0
      %905 = vmatmul.mubr.f32.gmra.mxu0 %v439
      %v906 = vpop.f32.mrf.mxu0
      %v907 = vadd.f32 %v279, %v906
      %v908 = vpop.f32.mrf.mxu0
      %909 = vmatprep.mubr.f32.mxu0 0.0
      %910 = vmatmul.mubr.f32.gmra.mxu0 %v442
      %v911 = vpop.f32.mrf.mxu0
      %v912 = vadd.f32 %v279, %v911
      %v913 = vpop.f32.mrf.mxu0
      %914 = vmatprep.mubr.f32.mxu0 0.0
      %915 = vmatmul.mubr.f32.gmra.mxu0 %v445
      %v916 = vpop.f32.mrf.mxu0
      %v917 = vadd.f32 %v279, %v916
      %v918 = vpop.f32.mrf.mxu0
      %919 = vmatprep.mubr.f32.mxu0 0.0
      %920 = vmatmul.mubr.f32.gmra.mxu0 %v448
      %v921 = vpop.f32.mrf.mxu0
      %v922 = vadd.f32 %v279, %v921
      %v923 = vpop.f32.mrf.mxu0
      %924 = vmatprep.mubr.f32.mxu0 0.0
      %925 = vmatmul.mubr.f32.gmra.mxu0 %v451
      %v926 = vpop.f32.mrf.mxu0
      %v927 = vadd.f32 %v279, %v926
      %v928 = vpop.f32.mrf.mxu0
      %929 = vmatprep.mubr.f32.mxu0 0.0
      %930 = vmatmul.mubr.f32.gmra.mxu0 %v454
      %v931 = vpop.f32.mrf.mxu0
      %v932 = vadd.f32 %v279, %v931
      %v933 = vpop.f32.mrf.mxu0
      %934 = vmatprep.mubr.f32.mxu0 0.0
      %935 = vmatmul.mubr.f32.gmra.mxu0 %v457
      %v936 = vpop.f32.mrf.mxu0
      %v937 = vadd.f32 %v279, %v936
      %v938 = vpop.f32.mrf.mxu0
      %939 = vmatprep.mubr.f32.mxu0 0.0
      %940 = vmatmul.mubr.f32.gmra.mxu0 %v460
      %v941 = vpop.f32.mrf.mxu0
      %v942 = vadd.f32 %v279, %v941
      %v943 = vpop.f32.mrf.mxu0
      %944 = vmatprep.mubr.f32.mxu0 0.0
      %945 = vmatmul.mubr.f32.gmra.mxu0 %v463
      %v946 = vpop.f32.mrf.mxu0
      %v947 = vadd.f32 %v279, %v946
      %v948 = vpop.f32.mrf.mxu0
      %949 = vmatprep.mubr.f32.mxu0 0.0
      %950 = vmatmul.mubr.f32.gmra.mxu0 %v466
      %v951 = vpop.f32.mrf.mxu0
      %v952 = vadd.f32 %v279, %v951
      %v953 = vpop.f32.mrf.mxu0
      %954 = vmatprep.mubr.f32.mxu0 0.0
      %955 = vmatmul.mubr.f32.gmra.mxu0 %v469
      %v956 = vpop.f32.mrf.mxu0
      %v957 = vadd.f32 %v279, %v956
      %v958 = vpop.f32.mrf.mxu0
      %959 = vmatprep.mubr.f32.mxu0 0.0
      %960 = vmatmul.mubr.f32.gmra.mxu0 %v472
      %v961 = vpop.f32.mrf.mxu0
      %v962 = vadd.f32 %v279, %v961
      %v963 = vpop.f32.mrf.mxu0
      %964 = vmatprep.mubr.f32.mxu0 0.0
      %965 = vmatmul.mubr.f32.gmra.mxu0 %v475
      %v966 = vpop.f32.mrf.mxu0
      %v967 = vadd.f32 %v279, %v966
      %v968 = vpop.f32.mrf.mxu0
      %969 = vmatprep.mubr.f32.mxu0 0.0
      %970 = vmatmul.mubr.f32.gmra.mxu0 %v478
      %v971 = vpop.f32.mrf.mxu0
      %v972 = vadd.f32 %v279, %v971
      %v973 = vpop.f32.mrf.mxu0
      %974 = vmatprep.mubr.f32.mxu0 0.0
      %975 = vmatmul.mubr.f32.gmra.mxu0 %v481
      %v976 = vpop.f32.mrf.mxu0
      %v977 = vadd.f32 %v279, %v976
      %v978 = vpop.f32.mrf.mxu0
      %979 = vmatprep.mubr.f32.mxu0 0.0
      %980 = vmatmul.mubr.f32.gmra.mxu0 %v484
      %v981 = vpop.f32.mrf.mxu0
      %v982 = vadd.f32 %v279, %v981
      %v983 = vpop.f32.mrf.mxu0
      %984 = vmatprep.mubr.f32.mxu0 0.0
      %985 = vmatmul.mubr.f32.gmra.mxu0 %v487
      %v986 = vpop.f32.mrf.mxu0
      %v987 = vadd.f32 %v279, %v986
      %v988 = vpop.f32.mrf.mxu0
      %989 = vmatprep.mubr.f32.mxu0 0.0
      %990 = vmatmul.mubr.f32.gmra.mxu0 %v490
      %v991 = vpop.f32.mrf.mxu0
      %v992 = vadd.f32 %v279, %v991
      %v993 = vpop.f32.mrf.mxu0
      %994 = vmatprep.mubr.f32.mxu0 0.0
      %995 = vmatmul.mubr.f32.gmra.mxu0 %v493
      %v996 = vpop.f32.mrf.mxu0
      %v997 = vadd.f32 %v279, %v996
      %v998 = vpop.f32.mrf.mxu0
      %999 = vmatprep.mubr.f32.mxu0 0.0
      %1000 = vmatmul.mubr.f32.gmra.mxu0 %v496
      %v1001 = vpop.f32.mrf.mxu0
      %v1002 = vadd.f32 %v279, %v1001
      %v1003 = vpop.f32.mrf.mxu0
      %1004 = vmatprep.mubr.f32.mxu0 0.0
      %1005 = vmatmul.mubr.f32.gmra.mxu0 %v499
      %v1006 = vpop.f32.mrf.mxu0
      %v1007 = vadd.f32 %v279, %v1006
      %v1008 = vpop.f32.mrf.mxu0
      %1009 = vmatprep.mubr.f32.mxu0 0.0
      %1010 = vmatmul.mubr.f32.gmra.mxu0 %v502
      %v1011 = vpop.f32.mrf.mxu0
      %v1012 = vadd.f32 %v279, %v1011
      %v1013 = vpop.f32.mrf.mxu0
      %1014 = vmatprep.mubr.f32.mxu0 0.0
      %1015 = vmatmul.mubr.f32.gmra.mxu0 %v505
      %v1016 = vpop.f32.mrf.mxu0
      %v1017 = vadd.f32 %v279, %v1016
      %v1018 = vpop.f32.mrf.mxu0
      %1019 = vmatprep.mubr.f32.mxu0 0.0
      %1020 = vmatmul.mubr.f32.gmra.mxu0 %v508
      %v1021 = vpop.f32.mrf.mxu0
      %v1022 = vadd.f32 %v279, %v1021
      %v1023 = vpop.f32.mrf.mxu0
      %1024 = vmatprep.mubr.f32.mxu0 0.0
      %1025 = vmatmul.mubr.f32.gmra.mxu0 %v511
      %v1026 = vpop.f32.mrf.mxu0
      %v1027 = vadd.f32 %v279, %v1026
      %v1028 = vpop.f32.mrf.mxu0
      %1029 = vmatprep.mubr.f32.mxu0 0.0
      %1030 = vmatmul.mubr.f32.gmra.mxu0 %v514
      %v1031 = vpop.f32.mrf.mxu0
      %v1032 = vadd.f32 %v279, %v1031
      %v1033 = vpop.f32.mrf.mxu0
      %1034 = vmatprep.mubr.f32.mxu0 0.0
      %1035 = vmatmul.mubr.f32.gmra.mxu0 %v517
      %v1036 = vpop.f32.mrf.mxu0
      %v1037 = vadd.f32 %v279, %v1036
      %v1038 = vpop.f32.mrf.mxu0
      %1039 = vmatprep.mubr.f32.mxu0 0.0
      %1040 = vmatmul.mubr.f32.gmra.mxu0 %v520
      %v1041 = vpop.f32.mrf.mxu0
      %v1042 = vadd.f32 %v279, %v1041
      %v1043 = vpop.f32.mrf.mxu0
      %1044 = vmatprep.mubr.f32.mxu0 0.0
      %1045 = vmatmul.mubr.f32.gmra.mxu0 %v523
      %v1046 = vpop.f32.mrf.mxu0
      %v1047 = vadd.f32 %v279, %v1046
      %v1048 = vpop.f32.mrf.mxu0
      %1049 = vmatprep.mubr.f32.mxu0 0.0
      %1050 = vmatmul.mubr.f32.gmra.mxu0 %v526
      %v1051 = vpop.f32.mrf.mxu0
      %v1052 = vadd.f32 %v279, %v1051
      %v1053 = vpop.f32.mrf.mxu0
      %1054 = vmatprep.mubr.f32.mxu0 0.0
      %1055 = vmatmul.mubr.f32.gmra.mxu0 %v529
      %v1056 = vpop.f32.mrf.mxu0
      %v1057 = vadd.f32 %v279, %v1056
      %v1058 = vpop.f32.mrf.mxu0
      %1059 = vmatprep.mubr.f32.mxu0 0.0
      %1060 = vmatmul.mubr.f32.gmra.mxu0 %v532
      %v1061 = vpop.f32.mrf.mxu0
      %v1062 = vadd.f32 %v279, %v1061
      %v1063 = vpop.f32.mrf.mxu0
      %1064 = vmatprep.mubr.f32.mxu0 0.0
      %1065 = vmatmul.mubr.f32.gmra.mxu0 %v535
      %v1066 = vpop.f32.mrf.mxu0
      %v1067 = vadd.f32 %v279, %v1066
      %v1068 = vpop.f32.mrf.mxu0
      %1069 = vmatprep.mubr.f32.mxu0 0.0
      %1070 = vmatmul.mubr.f32.gmra.mxu0 %v538
      %v1071 = vpop.f32.mrf.mxu0
      %v1072 = vadd.f32 %v279, %v1071
      %v1073 = vpop.f32.mrf.mxu0
      %1074 = vmatprep.mubr.f32.mxu0 0.0
      %1075 = vmatmul.mubr.f32.gmra.mxu0 %v541
      %v1076 = vpop.f32.mrf.mxu0
      %v1077 = vadd.f32 %v279, %v1076
      %v1078 = vpop.f32.mrf.mxu0
      %1079 = vmatprep.mubr.f32.mxu0 0.0
      %1080 = vmatmul.mubr.f32.gmra.mxu0 %v544
      %v1081 = vpop.f32.mrf.mxu0
      %v1082 = vadd.f32 %v279, %v1081
      %v1083 = vpop.f32.mrf.mxu0
      %1084 = vmatprep.mubr.f32.mxu0 0.0
      %1085 = vmatmul.mubr.f32.gmra.mxu0 %v547
      %v1086 = vpop.f32.mrf.mxu0
      %v1087 = vadd.f32 %v279, %v1086
      %v1088 = vpop.f32.mrf.mxu0
      %1089 = vmatprep.mubr.f32.mxu0 0.0
      %1090 = vmatmul.mubr.f32.gmra.mxu0 %v550
      %v1091 = vpop.f32.mrf.mxu0
      %v1092 = vadd.f32 %v279, %v1091
      %v1093 = vpop.f32.mrf.mxu0
      %1094 = vmatprep.mubr.f32.mxu0 0.0
      %1095 = vmatmul.mubr.f32.gmra.mxu0 %v553
      %v1096 = vpop.f32.mrf.mxu0
      %v1097 = vadd.f32 %v279, %v1096
      %v1098 = vpop.f32.mrf.mxu0
      %1099 = vmatprep.mubr.f32.mxu0 0.0
      %1100 = vmatmul.mubr.f32.gmra.mxu0 %v556
      %v1101 = vpop.f32.mrf.mxu0
      %v1102 = vadd.f32 %v279, %v1101
      %v1103 = vpop.f32.mrf.mxu0
      %1104 = vmatprep.mubr.f32.mxu0 0.0
      %1105 = vmatmul.mubr.f32.gmra.mxu0 %v559
      %v1106 = vpop.f32.mrf.mxu0
      %v1107 = vadd.f32 %v279, %v1106
      %v1108 = vpop.f32.mrf.mxu0
      %1109 = vmatprep.mubr.f32.mxu0 0.0
      %1110 = vmatmul.mubr.f32.gmra.mxu0 %v562
      %v1111 = vpop.f32.mrf.mxu0
      %v1112 = vadd.f32 %v279, %v1111
      %v1113 = vpop.f32.mrf.mxu0
      %1114 = vmatprep.mubr.f32.mxu0 0.0
      %1115 = vmatmul.mubr.f32.gmra.mxu0 %v565
      %v1116 = vpop.f32.mrf.mxu0
      %v1117 = vadd.f32 %v279, %v1116
      %v1118 = vpop.f32.mrf.mxu0
      %1119 = vmatprep.mubr.f32.mxu0 0.0
      %1120 = vmatmul.mubr.f32.gmra.mxu0 %v568
      %v1121 = vpop.f32.mrf.mxu0
      %v1122 = vadd.f32 %v279, %v1121
      %v1123 = vpop.f32.mrf.mxu0
      %1124 = vmatprep.mubr.f32.mxu0 0.0
      %1125 = vmatmul.mubr.f32.gmra.mxu0 %v571
      %v1126 = vpop.f32.mrf.mxu0
      %v1127 = vadd.f32 %v279, %v1126
      %v1128 = vpop.f32.mrf.mxu0
      %1129 = vmatprep.mubr.f32.mxu0 0.0
      %1130 = vmatmul.mubr.f32.gmra.mxu0 %v574
      %v1131 = vpop.f32.mrf.mxu0
      %v1132 = vadd.f32 %v279, %v1131
      %v1133 = vpop.f32.mrf.mxu0
      %1134 = vdwg.mxu0
      %v1135 = vmax.f32 %v647, 0.0
      %v1136 = vmax.f32 %v652, 0.0
      %v1137 = vmax.f32 %v657, 0.0
      %v1138 = vmax.f32 %v662, 0.0
      %v1139 = vmax.f32 %v667, 0.0
      %v1140 = vmax.f32 %v672, 0.0
      %v1141 = vmax.f32 %v677, 0.0
      %v1142 = vmax.f32 %v682, 0.0
      %v1143 = vmax.f32 %v687, 0.0
      %v1144 = vmax.f32 %v692, 0.0
      %v1145 = vmax.f32 %v697, 0.0
      %v1146 = vmax.f32 %v702, 0.0
      %v1147 = vmax.f32 %v707, 0.0
      %v1148 = vmax.f32 %v712, 0.0
      %v1149 = vmax.f32 %v717, 0.0
      %v1150 = vmax.f32 %v722, 0.0
      %v1151 = vmax.f32 %v727, 0.0
      %v1152 = vmax.f32 %v732, 0.0
      %v1153 = vmax.f32 %v737, 0.0
      %v1154 = vmax.f32 %v742, 0.0
      %v1155 = vmax.f32 %v747, 0.0
      %v1156 = vmax.f32 %v752, 0.0
      %v1157 = vmax.f32 %v757, 0.0
      %v1158 = vmax.f32 %v762, 0.0
      %v1159 = vmax.f32 %v767, 0.0
      %v1160 = vmax.f32 %v772, 0.0
      %v1161 = vmax.f32 %v777, 0.0
      %v1162 = vmax.f32 %v782, 0.0
      %v1163 = vmax.f32 %v787, 0.0
      %v1164 = vmax.f32 %v792, 0.0
      %v1165 = vmax.f32 %v797, 0.0
      %v1166 = vmax.f32 %v802, 0.0
      %v1167 = vmax.f32 %v807, 0.0
      %v1168 = vmax.f32 %v812, 0.0
      %v1169 = vmax.f32 %v817, 0.0
      %v1170 = vmax.f32 %v822, 0.0
      %v1171 = vmax.f32 %v827, 0.0
      %v1172 = vmax.f32 %v832, 0.0
      %v1173 = vmax.f32 %v837, 0.0
      %v1174 = vmax.f32 %v842, 0.0
      %v1175 = vmax.f32 %v847, 0.0
      %v1176 = vmax.f32 %v852, 0.0
      %v1177 = vmax.f32 %v857, 0.0
      %v1178 = vmax.f32 %v862, 0.0
      %v1179 = vmax.f32 %v867, 0.0
      %v1180 = vmax.f32 %v872, 0.0
      %v1181 = vmax.f32 %v877, 0.0
      %v1182 = vmax.f32 %v882, 0.0
      %v1183 = vmax.f32 %v887, 0.0
      %v1184 = vmax.f32 %v892, 0.0
      %v1185 = vmax.f32 %v897, 0.0
      %v1186 = vmax.f32 %v902, 0.0
      %v1187 = vmax.f32 %v907, 0.0
      %v1188 = vmax.f32 %v912, 0.0
      %v1189 = vmax.f32 %v917, 0.0
      %v1190 = vmax.f32 %v922, 0.0
      %v1191 = vmax.f32 %v927, 0.0
      %v1192 = vmax.f32 %v932, 0.0
      %v1193 = vmax.f32 %v937, 0.0
      %v1194 = vmax.f32 %v942, 0.0
      %v1195 = vmax.f32 %v947, 0.0
      %v1196 = vmax.f32 %v952, 0.0
      %v1197 = vmax.f32 %v957, 0.0
      %v1198 = vmax.f32 %v962, 0.0
      %v1199 = vmax.f32 %v967, 0.0
      %v1200 = vmax.f32 %v972, 0.0
      %v1201 = vmax.f32 %v977, 0.0
      %v1202 = vmax.f32 %v982, 0.0
      %v1203 = vmax.f32 %v987, 0.0
      %v1204 = vmax.f32 %v992, 0.0
      %v1205 = vmax.f32 %v997, 0.0
      %v1206 = vmax.f32 %v1002, 0.0
      %v1207 = vmax.f32 %v1007, 0.0
      %v1208 = vmax.f32 %v1012, 0.0
      %v1209 = vmax.f32 %v1017, 0.0
      %v1210 = vmax.f32 %v1022, 0.0
      %v1211 = vmax.f32 %v1027, 0.0
      %v1212 = vmax.f32 %v1032, 0.0
      %v1213 = vmax.f32 %v1037, 0.0
      %v1214 = vmax.f32 %v1042, 0.0
      %v1215 = vmax.f32 %v1047, 0.0
      %v1216 = vmax.f32 %v1052, 0.0
      %v1217 = vmax.f32 %v1057, 0.0
      %v1218 = vmax.f32 %v1062, 0.0
      %v1219 = vmax.f32 %v1067, 0.0
      %v1220 = vmax.f32 %v1072, 0.0
      %v1221 = vmax.f32 %v1077, 0.0
      %v1222 = vmax.f32 %v1082, 0.0
      %v1223 = vmax.f32 %v1087, 0.0
      %v1224 = vmax.f32 %v1092, 0.0
      %v1225 = vmax.f32 %v1097, 0.0
      %v1226 = vmax.f32 %v1102, 0.0
      %v1227 = vmax.f32 %v1107, 0.0
      %v1228 = vmax.f32 %v1112, 0.0
      %v1229 = vmax.f32 %v1117, 0.0
      %v1230 = vmax.f32 %v1122, 0.0
      %v1231 = vmax.f32 %v1127, 0.0
      %v1232 = vmax.f32 %v1132, 0.0
      %v1233 = vpack.c.bf16 %v1136, %v1135
      %v1234 = vpack.c.bf16 %v1138, %v1137
      %v1235 = vpack.c.bf16 %v1140, %v1139
      %v1236 = vpack.c.bf16 %v1142, %v1141
      %v1237 = vpack.c.bf16 %v1144, %v1143
      %v1238 = vpack.c.bf16 %v1146, %v1145
      %v1239 = vpack.c.bf16 %v1148, %v1147
      %v1240 = vpack.c.bf16 %v1150, %v1149
      %v1241 = vpack.c.bf16 %v1152, %v1151
      %v1242 = vpack.c.bf16 %v1154, %v1153
      %v1243 = vpack.c.bf16 %v1156, %v1155
      %v1244 = vpack.c.bf16 %v1158, %v1157
      %v1245 = vpack.c.bf16 %v1160, %v1159
      %v1246 = vpack.c.bf16 %v1162, %v1161
      %v1247 = vpack.c.bf16 %v1164, %v1163
      %v1248 = vpack.c.bf16 %v1166, %v1165
      %v1249 = vpack.c.bf16 %v1168, %v1167
      %v1250 = vpack.c.bf16 %v1170, %v1169
      %v1251 = vpack.c.bf16 %v1172, %v1171
      %v1252 = vpack.c.bf16 %v1174, %v1173
      %v1253 = vpack.c.bf16 %v1176, %v1175
      %v1254 = vpack.c.bf16 %v1178, %v1177
      %v1255 = vpack.c.bf16 %v1180, %v1179
      %v1256 = vpack.c.bf16 %v1182, %v1181
      %v1257 = vpack.c.bf16 %v1184, %v1183
      %v1258 = vpack.c.bf16 %v1186, %v1185
      %v1259 = vpack.c.bf16 %v1188, %v1187
      %v1260 = vpack.c.bf16 %v1190, %v1189
      %v1261 = vpack.c.bf16 %v1192, %v1191
      %v1262 = vpack.c.bf16 %v1194, %v1193
      %v1263 = vpack.c.bf16 %v1196, %v1195
      %v1264 = vpack.c.bf16 %v1198, %v1197
      %v1265 = vpack.c.bf16 %v1200, %v1199
      %v1266 = vpack.c.bf16 %v1202, %v1201
      %v1267 = vpack.c.bf16 %v1204, %v1203
      %v1268 = vpack.c.bf16 %v1206, %v1205
      %v1269 = vpack.c.bf16 %v1208, %v1207
      %v1270 = vpack.c.bf16 %v1210, %v1209
      %v1271 = vpack.c.bf16 %v1212, %v1211
      %v1272 = vpack.c.bf16 %v1214, %v1213
      %v1273 = vpack.c.bf16 %v1216, %v1215
      %v1274 = vpack.c.bf16 %v1218, %v1217
      %v1275 = vpack.c.bf16 %v1220, %v1219
      %v1276 = vpack.c.bf16 %v1222, %v1221
      %v1277 = vpack.c.bf16 %v1224, %v1223
      %v1278 = vpack.c.bf16 %v1226, %v1225
      %v1279 = vpack.c.bf16 %v1228, %v1227
      %v1280 = vpack.c.bf16 %v1230, %v1229
      %v1281 = vpack.c.bf16 %v1232, %v1231
      %v1331 = vunpack.c.l.b16 %v1233
      %v1332 = vunpack.c.h.b16 %v1233
      %v1333 = vunpack.c.l.b16 %v1234
      %v1334 = vunpack.c.h.b16 %v1234
      %v1335 = vunpack.c.l.b16 %v1235
      %v1336 = vunpack.c.h.b16 %v1235
      %v1337 = vunpack.c.l.b16 %v1236
      %v1338 = vunpack.c.h.b16 %v1236
      %v1339 = vunpack.c.l.b16 %v1237
      %v1340 = vunpack.c.h.b16 %v1237
      %v1341 = vunpack.c.l.b16 %v1238
      %v1342 = vunpack.c.h.b16 %v1238
      %v1343 = vunpack.c.l.b16 %v1239
      %v1344 = vunpack.c.h.b16 %v1239
      %v1345 = vunpack.c.l.b16 %v1240
      %v1346 = vunpack.c.h.b16 %v1240
      %v1347 = vunpack.c.l.b16 %v1241
      %v1348 = vunpack.c.h.b16 %v1241
      %v1349 = vunpack.c.l.b16 %v1242
      %v1350 = vunpack.c.h.b16 %v1242
      %v1351 = vunpack.c.l.b16 %v1243
      %v1352 = vunpack.c.h.b16 %v1243
      %v1353 = vunpack.c.l.b16 %v1244
      %v1354 = vunpack.c.h.b16 %v1244
      %v1355 = vunpack.c.l.b16 %v1245
      %v1356 = vunpack.c.h.b16 %v1245
      %v1357 = vunpack.c.l.b16 %v1246
      %v1358 = vunpack.c.h.b16 %v1246
      %v1359 = vunpack.c.l.b16 %v1247
      %v1360 = vunpack.c.h.b16 %v1247
      %v1361 = vunpack.c.l.b16 %v1248
      %v1362 = vunpack.c.h.b16 %v1248
      %v1363 = vunpack.c.l.b16 %v1249
      %v1364 = vunpack.c.h.b16 %v1249
      %v1365 = vunpack.c.l.b16 %v1250
      %v1366 = vunpack.c.h.b16 %v1250
      %v1367 = vunpack.c.l.b16 %v1251
      %v1368 = vunpack.c.h.b16 %v1251
      %v1369 = vunpack.c.l.b16 %v1252
      %v1370 = vunpack.c.h.b16 %v1252
      %v1371 = vunpack.c.l.b16 %v1253
      %v1372 = vunpack.c.h.b16 %v1253
      %v1373 = vunpack.c.l.b16 %v1254
      %v1374 = vunpack.c.h.b16 %v1254
      %v1375 = vunpack.c.l.b16 %v1255
      %v1376 = vunpack.c.h.b16 %v1255
      %v1377 = vunpack.c.l.b16 %v1256
      %v1378 = vunpack.c.h.b16 %v1256
      %v1379 = vunpack.c.l.b16 %v1257
      %v1380 = vunpack.c.h.b16 %v1257
      %v1381 = vunpack.c.l.b16 %v1258
      %v1382 = vunpack.c.h.b16 %v1258
      %v1383 = vunpack.c.l.b16 %v1259
      %v1384 = vunpack.c.h.b16 %v1259
      %v1385 = vunpack.c.l.b16 %v1260
      %v1386 = vunpack.c.h.b16 %v1260
      %v1387 = vunpack.c.l.b16 %v1261
      %v1388 = vunpack.c.h.b16 %v1261
      %v1389 = vunpack.c.l.b16 %v1262
      %v1390 = vunpack.c.h.b16 %v1262
      %v1391 = vunpack.c.l.b16 %v1263
      %v1392 = vunpack.c.h.b16 %v1263
      %v1393 = vunpack.c.l.b16 %v1264
      %v1394 = vunpack.c.h.b16 %v1264
      %v1395 = vunpack.c.l.b16 %v1265
      %v1396 = vunpack.c.h.b16 %v1265
      %v1397 = vunpack.c.l.b16 %v1266
      %v1398 = vunpack.c.h.b16 %v1266
      %v1399 = vunpack.c.l.b16 %v1267
      %v1400 = vunpack.c.h.b16 %v1267
      %v1401 = vunpack.c.l.b16 %v1268
      %v1402 = vunpack.c.h.b16 %v1268
      %v1403 = vunpack.c.l.b16 %v1269
      %v1404 = vunpack.c.h.b16 %v1269
      %v1405 = vunpack.c.l.b16 %v1270
      %v1406 = vunpack.c.h.b16 %v1270
      %v1407 = vunpack.c.l.b16 %v1271
      %v1408 = vunpack.c.h.b16 %v1271
      %v1409 = vunpack.c.l.b16 %v1272
      %v1410 = vunpack.c.h.b16 %v1272
      %v1411 = vunpack.c.l.b16 %v1273
      %v1412 = vunpack.c.h.b16 %v1273
      %v1413 = vunpack.c.l.b16 %v1274
      %v1414 = vunpack.c.h.b16 %v1274
      %v1415 = vunpack.c.l.b16 %v1275
      %v1416 = vunpack.c.h.b16 %v1275
      %v1417 = vunpack.c.l.b16 %v1276
      %v1418 = vunpack.c.h.b16 %v1276
      %v1419 = vunpack.c.l.b16 %v1277
      %v1420 = vunpack.c.h.b16 %v1277
      %v1421 = vunpack.c.l.b16 %v1278
      %v1422 = vunpack.c.h.b16 %v1278
      %v1423 = vunpack.c.l.b16 %v1279
      %v1424 = vunpack.c.h.b16 %v1279
      %v1425 = vunpack.c.l.b16 %v1280
      %v1426 = vunpack.c.h.b16 %v1280
      %v1427 = vunpack.c.l.b16 %v1281
      %v1428 = vunpack.c.h.b16 %v1281
      %v1429 = vpack.c.b16 %v1331, %v1331
      %v1430 = vpack.c.b16 %v1332, %v1332
      %v1431 = vpack.c.b16 %v1333, %v1333
      %v1432 = vpack.c.b16 %v1334, %v1334
      %v1433 = vpack.c.b16 %v1335, %v1335
      %v1434 = vpack.c.b16 %v1336, %v1336
      %v1435 = vpack.c.b16 %v1337, %v1337
      %v1436 = vpack.c.b16 %v1338, %v1338
      %v1437 = vpack.c.b16 %v1339, %v1339
      %v1438 = vpack.c.b16 %v1340, %v1340
      %v1439 = vpack.c.b16 %v1341, %v1341
      %v1440 = vpack.c.b16 %v1342, %v1342
      %v1441 = vpack.c.b16 %v1343, %v1343
      %v1442 = vpack.c.b16 %v1344, %v1344
      %v1443 = vpack.c.b16 %v1345, %v1345
      %v1444 = vpack.c.b16 %v1346, %v1346
      %v1445 = vpack.c.b16 %v1347, %v1347
      %v1446 = vpack.c.b16 %v1348, %v1348
      %v1447 = vpack.c.b16 %v1349, %v1349
      %v1448 = vpack.c.b16 %v1350, %v1350
      %v1449 = vpack.c.b16 %v1351, %v1351
      %v1450 = vpack.c.b16 %v1352, %v1352
      %v1451 = vpack.c.b16 %v1353, %v1353
      %v1452 = vpack.c.b16 %v1354, %v1354
      %v1453 = vpack.c.b16 %v1355, %v1355
      %v1454 = vpack.c.b16 %v1356, %v1356
      %v1455 = vpack.c.b16 %v1357, %v1357
      %v1456 = vpack.c.b16 %v1358, %v1358
      %v1457 = vpack.c.b16 %v1359, %v1359
      %v1458 = vpack.c.b16 %v1360, %v1360
      %v1459 = vpack.c.b16 %v1361, %v1361
      %v1460 = vpack.c.b16 %v1362, %v1362
      %v1461 = vpack.c.b16 %v1363, %v1363
      %v1462 = vpack.c.b16 %v1364, %v1364
      %v1463 = vpack.c.b16 %v1365, %v1365
      %v1464 = vpack.c.b16 %v1366, %v1366
      %v1465 = vpack.c.b16 %v1367, %v1367
      %v1466 = vpack.c.b16 %v1368, %v1368
      %v1467 = vpack.c.b16 %v1369, %v1369
      %v1468 = vpack.c.b16 %v1370, %v1370
      %v1469 = vpack.c.b16 %v1371, %v1371
      %v1470 = vpack.c.b16 %v1372, %v1372
      %v1471 = vpack.c.b16 %v1373, %v1373
      %v1472 = vpack.c.b16 %v1374, %v1374
      %v1473 = vpack.c.b16 %v1375, %v1375
      %v1474 = vpack.c.b16 %v1376, %v1376
      %v1475 = vpack.c.b16 %v1377, %v1377
      %v1476 = vpack.c.b16 %v1378, %v1378
      %v1477 = vpack.c.b16 %v1379, %v1379
      %v1478 = vpack.c.b16 %v1380, %v1380
      %v1479 = vpack.c.b16 %v1381, %v1381
      %v1480 = vpack.c.b16 %v1382, %v1382
      %v1481 = vpack.c.b16 %v1383, %v1383
      %v1482 = vpack.c.b16 %v1384, %v1384
      %v1483 = vpack.c.b16 %v1385, %v1385
      %v1484 = vpack.c.b16 %v1386, %v1386
      %v1485 = vpack.c.b16 %v1387, %v1387
      %v1486 = vpack.c.b16 %v1388, %v1388
      %v1487 = vpack.c.b16 %v1389, %v1389
      %v1488 = vpack.c.b16 %v1390, %v1390
      %v1489 = vpack.c.b16 %v1391, %v1391
      %v1490 = vpack.c.b16 %v1392, %v1392
      %v1491 = vpack.c.b16 %v1393, %v1393
      %v1492 = vpack.c.b16 %v1394, %v1394
      %v1493 = vpack.c.b16 %v1395, %v1395
      %v1494 = vpack.c.b16 %v1396, %v1396
      %v1495 = vpack.c.b16 %v1397, %v1397
      %v1496 = vpack.c.b16 %v1398, %v1398
      %v1497 = vpack.c.b16 %v1399, %v1399
      %v1498 = vpack.c.b16 %v1400, %v1400
      %v1499 = vpack.c.b16 %v1401, %v1401
      %v1500 = vpack.c.b16 %v1402, %v1402
      %v1501 = vpack.c.b16 %v1403, %v1403
      %v1502 = vpack.c.b16 %v1404, %v1404
      %v1503 = vpack.c.b16 %v1405, %v1405
      %v1504 = vpack.c.b16 %v1406, %v1406
      %v1505 = vpack.c.b16 %v1407, %v1407
      %v1506 = vpack.c.b16 %v1408, %v1408
      %v1507 = vpack.c.b16 %v1409, %v1409
      %v1508 = vpack.c.b16 %v1410, %v1410
      %v1509 = vpack.c.b16 %v1411, %v1411
      %v1510 = vpack.c.b16 %v1412, %v1412
      %v1511 = vpack.c.b16 %v1413, %v1413
      %v1512 = vpack.c.b16 %v1414, %v1414
      %v1513 = vpack.c.b16 %v1415, %v1415
      %v1514 = vpack.c.b16 %v1416, %v1416
      %v1515 = vpack.c.b16 %v1417, %v1417
      %v1516 = vpack.c.b16 %v1418, %v1418
      %v1517 = vpack.c.b16 %v1419, %v1419
      %v1518 = vpack.c.b16 %v1420, %v1420
      %v1519 = vpack.c.b16 %v1421, %v1421
      %v1520 = vpack.c.b16 %v1422, %v1422
      %v1521 = vpack.c.b16 %v1423, %v1423
      %v1522 = vpack.c.b16 %v1424, %v1424
      %v1523 = vpack.c.b16 %v1425, %v1425
      %v1524 = vpack.c.b16 %v1426, %v1426
      %v1525 = vpack.c.b16 %v1427, %v1427
      %v1526 = vpack.c.b16 %v1428, %v1428
      %vm1625 = vcmask 519168
      %1626 = vst.msk [vmem:[%s172] sm:$0xf] %vm1625, %v1429
      %1627 = vst.msk [vmem:[%s172 + $0x4] sm:$0xf] %vm1625, %v1430
      %1628 = vst.msk [vmem:[%s172 + $0x8] sm:$0xf] %vm1625, %v1431
      %1629 = vst.msk [vmem:[%s172 + $0xc] sm:$0xf] %vm1625, %v1432
      %1630 = vst.msk [vmem:[%s172 + $0x10] sm:$0xf] %vm1625, %v1433
      %1631 = vst.msk [vmem:[%s172 + $0x14] sm:$0xf] %vm1625, %v1434
      %1632 = vst.msk [vmem:[%s172 + $0x18] sm:$0xf] %vm1625, %v1435
      %1633 = vst.msk [vmem:[%s172 + $0x1c] sm:$0xf] %vm1625, %v1436
      %1634 = vst.msk [vmem:[%s172 + $0x20] sm:$0xf] %vm1625, %v1437
      %1635 = vst.msk [vmem:[%s172 + $0x24] sm:$0xf] %vm1625, %v1438
      %1636 = vst.msk [vmem:[%s172 + $0x28] sm:$0xf] %vm1625, %v1439
      %1637 = vst.msk [vmem:[%s172 + $0x2c] sm:$0xf] %vm1625, %v1440
      %1638 = vst.msk [vmem:[%s172 + $0x30] sm:$0xf] %vm1625, %v1441
      %1639 = vst.msk [vmem:[%s172 + $0x34] sm:$0xf] %vm1625, %v1442
      %1640 = vst.msk [vmem:[%s172 + $0x38] sm:$0xf] %vm1625, %v1443
      %1641 = vst.msk [vmem:[%s172 + $0x3c] sm:$0xf] %vm1625, %v1444
      %1642 = vst.msk [vmem:[%s172 + $0x40] sm:$0xf] %vm1625, %v1445
      %1643 = vst.msk [vmem:[%s172 + $0x44] sm:$0xf] %vm1625, %v1446
      %1644 = vst.msk [vmem:[%s172 + $0x48] sm:$0xf] %vm1625, %v1447
      %1645 = vst.msk [vmem:[%s172 + $0x4c] sm:$0xf] %vm1625, %v1448
      %1646 = vst.msk [vmem:[%s172 + $0x50] sm:$0xf] %vm1625, %v1449
      %1647 = vst.msk [vmem:[%s172 + $0x54] sm:$0xf] %vm1625, %v1450
      %1648 = vst.msk [vmem:[%s172 + $0x58] sm:$0xf] %vm1625, %v1451
      %1649 = vst.msk [vmem:[%s172 + $0x5c] sm:$0xf] %vm1625, %v1452
      %1650 = vst.msk [vmem:[%s172 + $0x60] sm:$0xf] %vm1625, %v1453
      %1651 = vst.msk [vmem:[%s172 + $0x64] sm:$0xf] %vm1625, %v1454
      %1652 = vst.msk [vmem:[%s172 + $0x68] sm:$0xf] %vm1625, %v1455
      %1653 = vst.msk [vmem:[%s172 + $0x6c] sm:$0xf] %vm1625, %v1456
      %1654 = vst.msk [vmem:[%s172 + $0x70] sm:$0xf] %vm1625, %v1457
      %1655 = vst.msk [vmem:[%s172 + $0x74] sm:$0xf] %vm1625, %v1458
      %1656 = vst.msk [vmem:[%s172 + $0x78] sm:$0xf] %vm1625, %v1459
      %1657 = vst.msk [vmem:[%s172 + $0x7c] sm:$0xf] %vm1625, %v1460
      %1658 = vst.msk [vmem:[%s172 + $0x80] sm:$0xf] %vm1625, %v1461
      %1659 = vst.msk [vmem:[%s172 + $0x84] sm:$0xf] %vm1625, %v1462
      %1660 = vst.msk [vmem:[%s172 + $0x88] sm:$0xf] %vm1625, %v1463
      %1661 = vst.msk [vmem:[%s172 + $0x8c] sm:$0xf] %vm1625, %v1464
      %1662 = vst.msk [vmem:[%s172 + $0x90] sm:$0xf] %vm1625, %v1465
      %1663 = vst.msk [vmem:[%s172 + $0x94] sm:$0xf] %vm1625, %v1466
      %1664 = vst.msk [vmem:[%s172 + $0x98] sm:$0xf] %vm1625, %v1467
      %1665 = vst.msk [vmem:[%s172 + $0x9c] sm:$0xf] %vm1625, %v1468
      %1666 = vst.msk [vmem:[%s172 + $0xa0] sm:$0xf] %vm1625, %v1469
      %1667 = vst.msk [vmem:[%s172 + $0xa4] sm:$0xf] %vm1625, %v1470
      %1668 = vst.msk [vmem:[%s172 + $0xa8] sm:$0xf] %vm1625, %v1471
      %1669 = vst.msk [vmem:[%s172 + $0xac] sm:$0xf] %vm1625, %v1472
      %1670 = vst.msk [vmem:[%s172 + $0xb0] sm:$0xf] %vm1625, %v1473
      %1671 = vst.msk [vmem:[%s172 + $0xb4] sm:$0xf] %vm1625, %v1474
      %1672 = vst.msk [vmem:[%s172 + $0xb8] sm:$0xf] %vm1625, %v1475
      %1673 = vst.msk [vmem:[%s172 + $0xbc] sm:$0xf] %vm1625, %v1476
      %1674 = vst.msk [vmem:[%s172 + $0xc0] sm:$0xf] %vm1625, %v1477
      %1675 = vst.msk [vmem:[%s172 + $0xc4] sm:$0xf] %vm1625, %v1478
      %1676 = vst.msk [vmem:[%s172 + $0xc8] sm:$0xf] %vm1625, %v1479
      %1677 = vst.msk [vmem:[%s172 + $0xcc] sm:$0xf] %vm1625, %v1480
      %1678 = vst.msk [vmem:[%s172 + $0xd0] sm:$0xf] %vm1625, %v1481
      %1679 = vst.msk [vmem:[%s172 + $0xd4] sm:$0xf] %vm1625, %v1482
      %1680 = vst.msk [vmem:[%s172 + $0xd8] sm:$0xf] %vm1625, %v1483
      %1681 = vst.msk [vmem:[%s172 + $0xdc] sm:$0xf] %vm1625, %v1484
      %1682 = vst.msk [vmem:[%s172 + $0xe0] sm:$0xf] %vm1625, %v1485
      %1683 = vst.msk [vmem:[%s172 + $0xe4] sm:$0xf] %vm1625, %v1486
      %1684 = vst.msk [vmem:[%s172 + $0xe8] sm:$0xf] %vm1625, %v1487
      %1685 = vst.msk [vmem:[%s172 + $0xec] sm:$0xf] %vm1625, %v1488
      %1686 = vst.msk [vmem:[%s172 + $0xf0] sm:$0xf] %vm1625, %v1489
      %1687 = vst.msk [vmem:[%s172 + $0xf4] sm:$0xf] %vm1625, %v1490
      %1688 = vst.msk [vmem:[%s172 + $0xf8] sm:$0xf] %vm1625, %v1491
      %1689 = vst.msk [vmem:[%s172 + $0xfc] sm:$0xf] %vm1625, %v1492
      %1690 = vst.msk [vmem:[%s172 + $0x100] sm:$0xf] %vm1625, %v1493
      %1691 = vst.msk [vmem:[%s172 + $0x104] sm:$0xf] %vm1625, %v1494
      %1692 = vst.msk [vmem:[%s172 + $0x108] sm:$0xf] %vm1625, %v1495
      %1693 = vst.msk [vmem:[%s172 + $0x10c] sm:$0xf] %vm1625, %v1496
      %1694 = vst.msk [vmem:[%s172 + $0x110] sm:$0xf] %vm1625, %v1497
      %1695 = vst.msk [vmem:[%s172 + $0x114] sm:$0xf] %vm1625, %v1498
      %1696 = vst.msk [vmem:[%s172 + $0x118] sm:$0xf] %vm1625, %v1499
      %1697 = vst.msk [vmem:[%s172 + $0x11c] sm:$0xf] %vm1625, %v1500
      %1698 = vst.msk [vmem:[%s172 + $0x120] sm:$0xf] %vm1625, %v1501
      %1699 = vst.msk [vmem:[%s172 + $0x124] sm:$0xf] %vm1625, %v1502
      %1700 = vst.msk [vmem:[%s172 + $0x128] sm:$0xf] %vm1625, %v1503
      %1701 = vst.msk [vmem:[%s172 + $0x12c] sm:$0xf] %vm1625, %v1504
      %1702 = vst.msk [vmem:[%s172 + $0x130] sm:$0xf] %vm1625, %v1505
      %1703 = vst.msk [vmem:[%s172 + $0x134] sm:$0xf] %vm1625, %v1506
      %1704 = vst.msk [vmem:[%s172 + $0x138] sm:$0xf] %vm1625, %v1507
      %1705 = vst.msk [vmem:[%s172 + $0x13c] sm:$0xf] %vm1625, %v1508
      %1706 = vst.msk [vmem:[%s172 + $0x140] sm:$0xf] %vm1625, %v1509
      %1707 = vst.msk [vmem:[%s172 + $0x144] sm:$0xf] %vm1625, %v1510
      %1708 = vst.msk [vmem:[%s172 + $0x148] sm:$0xf] %vm1625, %v1511
      %1709 = vst.msk [vmem:[%s172 + $0x14c] sm:$0xf] %vm1625, %v1512
      %1710 = vst.msk [vmem:[%s172 + $0x150] sm:$0xf] %vm1625, %v1513
      %1711 = vst.msk [vmem:[%s172 + $0x154] sm:$0xf] %vm1625, %v1514
      %1712 = vst.msk [vmem:[%s172 + $0x158] sm:$0xf] %vm1625, %v1515
      %1713 = vst.msk [vmem:[%s172 + $0x15c] sm:$0xf] %vm1625, %v1516
      %1714 = vst.msk [vmem:[%s172 + $0x160] sm:$0xf] %vm1625, %v1517
      %1715 = vst.msk [vmem:[%s172 + $0x164] sm:$0xf] %vm1625, %v1518
      %1716 = vst.msk [vmem:[%s172 + $0x168] sm:$0xf] %vm1625, %v1519
      %1717 = vst.msk [vmem:[%s172 + $0x16c] sm:$0xf] %vm1625, %v1520
      %1718 = vst.msk [vmem:[%s172 + $0x170] sm:$0xf] %vm1625, %v1521
      %1719 = vst.msk [vmem:[%s172 + $0x174] sm:$0xf] %vm1625, %v1522
      %1720 = vst.msk [vmem:[%s172 + $0x178] sm:$0xf] %vm1625, %v1523
      %1721 = vst.msk [vmem:[%s172 + $0x17c] sm:$0xf] %vm1625, %v1524
      %1722 = vst.msk [vmem:[%s172 + $0x180] sm:$0xf] %vm1625, %v1525
      %1723 = vst.msk [vmem:[%s172 + $0x184] sm:$0xf] %vm1625, %v1526
      %s1724 = smul.u32 98, %s14
      %p1725 = scmp.lt.s32.totalorder %s1724, 195
      %s1726 = scalar_select %p1725, %s1724, 195
      %s1727 = smul.addr %s1726, 4
      %s1728 = scalar_lea.vmem %s3, %s1727
      // Predicated region
      $region33: #{forward.2} parent=31 // pred_check
        %p1729 = pneg %p100
      $region34: #{forward.2} parent=31 // pred_check_branch
        %1731 = sbr.rel (%p1729) target = $region36
      $region35: #{forward.2} parent=31 // pred_region
        %s1732 = smul.u32 98, %s14
      $region36: #{forward.2} parent=31 // pred_fallthru
        _
    $region32: #{forward.2} parent=5 // pred_fallthru
      _
    %p1733 = scmp.le.s32.totalorder 2, %s9
    // Predicated region
    $region37: #{forward.2} parent=5 // pred_check
      %p1734 = pneg %p1733
    $region38: #{forward.2} parent=5 // pred_check_branch
      %1736 = sbr.rel (%p1734) target = $region40
    $region39: #{forward.2} parent=5 // pred_region
      %s1737 = ssub.s32 %s9, 2
      // Predicated region
      $region41: #{forward.2} parent=39 // pred_check
        %p1738 = pneg %p106
      $region42: #{forward.2} parent=39 // pred_check_branch
        %1740 = sbr.rel (%p1738) target = $region44
      $region43: #{forward.2} parent=39 // pred_region
        %s1741 = smul.u32 98, %s15
        %p1742 = scmp.lt.s32.totalorder %s1741, 195
        %s1743 = scalar_select %p1742, %s1741, 195
        %s1744 = smul.addr %s1743, 4
        %s1745 = scalar_lea.vmem %s3, %s1744
      $region44: #{forward.2} parent=39 // pred_fallthru
        _
    $region40: #{forward.2} parent=5 // pred_fallthru
      _
  $region6: #{forward.2} parent=0 // loop_footer
    %s13 = sadd.s32 1, %s9
  $region7: #{forward.2} parent=0 // loop_footer_branch
    %8 = sbr.rel target = $region3
  $region8: #{forward.2} parent=0 // loop_exit
    _

// kernel: forward.3
$region0: #{forward.3}
  #allocation0 [shape = 'u32[]', space=smem, size = 0x4, offset = 0x4, fixed_abs, tag = 'smem constant byte address 0x4 - core index']
  #allocation1 [shape = 'u32[144,128]{1,0:T(1,128)}', space=vmem, size = 0x12000, scoped, tag = 'internal scratch']
  %s0 = inlined_call_operand.vmem [shape: bf16[2,50176], index: 0, kind: input, shape index: {}]
  %s1 = inlined_call_operand.vmem [shape: bf16[10,50176], index: 1, kind: input, shape index: {}]
  %s2 = inlined_call_operand.vmem [shape: f32[1,10], index: 2, kind: input, shape index: {}]
  %s3 = inlined_call_operand.hbm [shape: f32[2,10], index: 3, kind: output, shape index: {}]
  %s4 = sld [smem:[#allocation0]]
  $region72: #{forward.3} parent=0
    _
  %s6 = ssub.s32 1, %s4
  %s7 = scalar_select 0, %s6, %s4
  $region1: #{forward.3} parent=0
    #allocation2 [shape = 'u8[802816]{0}', space=vmem, size = 0xc4000, scoped, tag = 'input window, operand 1']
    #allocation3 [shape = 'u8[1024]{0}', space=vmem, size = 0x400, scoped, tag = 'output window, operand 0, single buffered']
    #allocation4 [shape = 's32[2]{0}', space=sflag, size = 0x8, scoped, tag = 'scoped memory for forward.3']
    %8 = vsyncpa [#allocation4], 0
    loop: start=0, step=1, limit=6
    $region2: #{forward.3} parent=1 // loop_pre_header
      _
    $region3: #{forward.3} parent=1 // loop_header
      %s10 = sphi 0, %s14
      %p11 = scmp.ge.s32.totalorder %s10, 6
      %s20 = sphi 0, %s22
      %s23 = sphi 0, %s20
      %s24 = sphi 0, %s23
      %s40 = sphi 0, %s24
      %s46 = sphi 0, %s48
      %s49 = sphi 0, %s46
      %s50 = sphi 0, %s49
      %s66 = sphi 0, %s50
      %s70 = sphi 0, %s70
      %s72 = sphi 0, %s70
      %s73 = sphi 0, %s72
      %s87 = sphi 0, %s73
      %s91 = sphi 0, %s91
      %s93 = sphi 0, %s91
      %s94 = sphi 0, %s93
      %s108 = sphi 0, %s94
    $region4: #{forward.3} parent=1 // loop_header_branch
      %13 = sbr.rel (%p11) target = $region8
    $region5: #{forward.3} parent=1 // loop_body
      %s15 = ssub.s32 %s10, 1
      %s16 = ssub.s32 %s10, 2
      %s17 = sadd.s32 %s10, 1
      %s18 = ssub.s32 %s10, %s17
      %p19 = scmp.eq.s32.totalorder %s18, 0
      %s21 = sadd.s32 %s20, 1
      %s22 = scalar_select %p19, %s20, %s21
      %p25 = pneg %p19
      %p26 = scmp.eq.s32.totalorder %s10, 3
      %p27 = por %p25, %p26
      %p28 = scmp.ne.s32.totalorder %s20, %s23
      %p29 = scmp.eq.s32.totalorder %s10, 0
      %p30 = por %p28, %p29
      %p31 = scmp.ne.s32.totalorder %s20, %s23
      %p32 = scmp.eq.s32.totalorder %s15, 3
      %p33 = por %p31, %p32
      %p34 = scmp.ne.s32.totalorder %s23, %s24
      %p35 = scmp.eq.s32.totalorder %s15, 0
      %p36 = por %p34, %p35
      %p37 = scmp.ne.s32.totalorder %s23, %s24
      %p38 = scmp.eq.s32.totalorder %s16, 3
      %p39 = por %p37, %p38
      %p41 = scmp.ne.s32.totalorder %s24, %s40
      %p42 = scmp.eq.s32.totalorder %s16, 0
      %p43 = por %p41, %p42
      %s44 = ssub.s32 %s10, %s17
      %p45 = scmp.eq.s32.totalorder %s44, 0
      %s47 = sadd.s32 %s46, 1
      %s48 = scalar_select %p45, %s46, %s47
      %p51 = pneg %p45
      %p52 = scmp.eq.s32.totalorder %s10, 3
      %p53 = por %p51, %p52
      %p54 = scmp.ne.s32.totalorder %s46, %s49
      %p55 = scmp.eq.s32.totalorder %s10, 0
      %p56 = por %p54, %p55
      %p57 = scmp.ne.s32.totalorder %s46, %s49
      %p58 = scmp.eq.s32.totalorder %s15, 3
      %p59 = por %p57, %p58
      %p60 = scmp.ne.s32.totalorder %s49, %s50
      %p61 = scmp.eq.s32.totalorder %s15, 0
      %p62 = por %p60, %p61
      %p63 = scmp.ne.s32.totalorder %s49, %s50
      %p64 = scmp.eq.s32.totalorder %s16, 3
      %p65 = por %p63, %p64
      %p67 = scmp.ne.s32.totalorder %s50, %s66
      %p68 = scmp.eq.s32.totalorder %s16, 0
      %p69 = por %p67, %p68
      %s71 = sadd.s32 %s70, 1
      %p74 = scmp.eq.s32.totalorder %s10, 3
      %p75 = scmp.ne.s32.totalorder %s70, %s72
      %p76 = scmp.eq.s32.totalorder %s10, 0
      %p77 = por %p75, %p76
      %p78 = scmp.ne.s32.totalorder %s70, %s72
      %p79 = scmp.eq.s32.totalorder %s15, 3
      %p80 = por %p78, %p79
      %p81 = scmp.ne.s32.totalorder %s72, %s73
      %p82 = scmp.eq.s32.totalorder %s15, 0
      %p83 = por %p81, %p82
      %p84 = scmp.ne.s32.totalorder %s72, %s73
      %p85 = scmp.eq.s32.totalorder %s16, 3
      %p86 = por %p84, %p85
      %p88 = scmp.ne.s32.totalorder %s73, %s87
      %p89 = scmp.eq.s32.totalorder %s16, 0
      %p90 = por %p88, %p89
      %s92 = sadd.s32 %s91, 1
      %p95 = scmp.eq.s32.totalorder %s10, 3
      %p96 = scmp.ne.s32.totalorder %s91, %s93
      %p97 = scmp.eq.s32.totalorder %s10, 0
      %p98 = por %p96, %p97
      %p99 = scmp.ne.s32.totalorder %s91, %s93
      %p100 = scmp.eq.s32.totalorder %s15, 3
      %p101 = por %p99, %p100
      %p102 = scmp.ne.s32.totalorder %s93, %s94
      %p103 = scmp.eq.s32.totalorder %s15, 0
      %p104 = por %p102, %p103
      %p105 = scmp.ne.s32.totalorder %s93, %s94
      %p106 = scmp.eq.s32.totalorder %s16, 3
      %p107 = por %p105, %p106
      %p109 = scmp.ne.s32.totalorder %s94, %s108
      %p110 = scmp.eq.s32.totalorder %s16, 0
      %p111 = por %p109, %p110
      %p112 = scmp.le.s32.totalorder 1, %s10
      %p113 = scmp.lt.s32.totalorder %s10, 5
      %p114 = pnand %p112, %p113
      %p115 = pneg %p114
      // Predicated region
      $region9: #{forward.3} parent=5 // pred_check
        _
      $region10: #{forward.3} parent=5 // pred_check_branch
        %117 = sbr.rel (%p114) target = $region12
      $region11: #{forward.3} parent=5 // pred_region
        %s118 = ssub.s32 %s10, 1
        // Predicated region
        $region13: #{forward.3} parent=11 // pred_check
          %p119 = pneg %p83
        $region14: #{forward.3} parent=11 // pred_check_branch
          %121 = sbr.rel (%p119) target = $region16
        $region15: #{forward.3} parent=11 // pred_region
          _
        $region16: #{forward.3} parent=11 // pred_fallthru
          _
      $region12: #{forward.3} parent=5 // pred_fallthru
        _
      %p122 = scmp.lt.s32.totalorder %s10, 4
      // Predicated region
      $region17: #{forward.3} parent=5 // pred_check
        %p123 = pneg %p122
      $region18: #{forward.3} parent=5 // pred_check_branch
        %125 = sbr.rel (%p123) target = $region20
      $region19: #{forward.3} parent=5 // pred_region
        // Predicated region
        $region21: #{forward.3} parent=19 // pred_check
          %p126 = pneg %p30
        $region22: #{forward.3} parent=19 // pred_check_branch
          %128 = sbr.rel (%p126) target = $region24
        $region23: #{forward.3} parent=19 // pred_region
          %s129 = smul.u32 98, %s10
          %p130 = scmp.lt.s32.totalorder %s129, 391
          %s131 = scalar_select %p130, %s129, 391
          %s132 = scalar_lea.vmem %s0, %s131
          %s133 = smul.u32 98, %s10
        $region24: #{forward.3} parent=19 // pred_fallthru
          _
        // Predicated region
        $region25: #{forward.3} parent=19 // pred_check
          %p134 = pneg %p56
        $region26: #{forward.3} parent=19 // pred_check_branch
          %136 = sbr.rel (%p134) target = $region28
        $region27: #{forward.3} parent=19 // pred_region
          %s137 = sand.u32 %s46, 1
          %s138 = sand.u32 %s46, 1
          %s139 = smul.addr %s138, 784
          %s140 = scalar_lea.vmem [#allocation2], %s139
          %s141 = smul.u32 98, %s10
          %s142 = smul.addr %s141, 4
          %s143 = scalar_lea.vmem %s1, %s142
          // Predicated region
          $region29: #{forward.3} parent=27 // pred_check
            _
          $region30: #{forward.3} parent=27 // pred_check_branch
            %145 = sbr.rel (0) target = $region32
          $region31: #{forward.3} parent=27 // pred_region
            // Predicated region
            $region33: #{forward.3} parent=31 // pred_check
              _
            $region34: #{forward.3} parent=31 // pred_check_branch
              %147 = sbr.rel (0) target = $region36
            $region35: #{forward.3} parent=31 // pred_region
              loop: start=0, step=1, limit=1
              $region37: #{forward.3} parent=35 // loop_pre_header
                _
              $region38: #{forward.3} parent=35 // loop_header
                %s149 = sphi 0, %s153
                %p150 = scmp.ge.s32.totalorder %s149, 1
                %s154 = sphi %s143, %s143
                %s155 = sphi %s140, %s140
              $region39: #{forward.3} parent=35 // loop_header_branch
                %152 = sbr.rel (%p150) target = $region43
              $region40: #{forward.3} parent=35 // loop_body
                %v156 = vld [vmem:[%s154] sm:$0xff]
                %157 = vst [vmem:[%s155] sm:$0xff] %v156
                %v158 = vld [vmem:[%s154 + $0x8] sm:$0xff]
                %159 = vst [vmem:[%s155 + $0x8] sm:$0xff] %v158
                %v160 = vld [vmem:[%s154 + $0x10] sm:$0xff]
                %161 = vst [vmem:[%s155 + $0x10] sm:$0xff] %v160
                %v162 = vld [vmem:[%s154 + $0x18] sm:$0xff]
                %163 = vst [vmem:[%s155 + $0x18] sm:$0xff] %v162
                %v164 = vld [vmem:[%s154 + $0x20] sm:$0xff]
                %165 = vst [vmem:[%s155 + $0x20] sm:$0xff] %v164
                %v166 = vld [vmem:[%s154 + $0x28] sm:$0xff]
                %167 = vst [vmem:[%s155 + $0x28] sm:$0xff] %v166
                %v168 = vld [vmem:[%s154 + $0x30] sm:$0xff]
                %169 = vst [vmem:[%s155 + $0x30] sm:$0xff] %v168
                %v170 = vld [vmem:[%s154 + $0x38] sm:$0xff]
                %171 = vst [vmem:[%s155 + $0x38] sm:$0xff] %v170
                %v172 = vld [vmem:[%s154 + $0x40] sm:$0xff]
                %173 = vst [vmem:[%s155 + $0x40] sm:$0xff] %v172
                %v174 = vld [vmem:[%s154 + $0x48] sm:$0xff]
                %175 = vst [vmem:[%s155 + $0x48] sm:$0xff] %v174
                %v176 = vld [vmem:[%s154 + $0x50] sm:$0xff]
                %177 = vst [vmem:[%s155 + $0x50] sm:$0xff] %v176
                %v178 = vld [vmem:[%s154 + $0x58] sm:$0xff]
                %179 = vst [vmem:[%s155 + $0x58] sm:$0xff] %v178
                %v180 = vld [vmem:[%s154 + $0x60] sm:$0xff]
                %181 = vst [vmem:[%s155 + $0x60] sm:$0xff] %v180
                %v182 = vld [vmem:[%s154 + $0x68] sm:$0xff]
                %183 = vst [vmem:[%s155 + $0x68] sm:$0xff] %v182
                %v184 = vld [vmem:[%s154 + $0x70] sm:$0xff]
                %185 = vst [vmem:[%s155 + $0x70] sm:$0xff] %v184
                %v186 = vld [vmem:[%s154 + $0x78] sm:$0xff]
                %187 = vst [vmem:[%s155 + $0x78] sm:$0xff] %v186
                %v188 = vld [vmem:[%s154 + $0x80] sm:$0xff]
                %189 = vst [vmem:[%s155 + $0x80] sm:$0xff] %v188
                %v190 = vld [vmem:[%s154 + $0x88] sm:$0xff]
                %191 = vst [vmem:[%s155 + $0x88] sm:$0xff] %v190
                %v192 = vld [vmem:[%s154 + $0x90] sm:$0xff]
                %193 = vst [vmem:[%s155 + $0x90] sm:$0xff] %v192
                %v194 = vld [vmem:[%s154 + $0x98] sm:$0xff]
                %195 = vst [vmem:[%s155 + $0x98] sm:$0xff] %v194
                %v196 = vld [vmem:[%s154 + $0xa0] sm:$0xff]
                %197 = vst [vmem:[%s155 + $0xa0] sm:$0xff] %v196
                %v198 = vld [vmem:[%s154 + $0xa8] sm:$0xff]
                %199 = vst [vmem:[%s155 + $0xa8] sm:$0xff] %v198
                %v200 = vld [vmem:[%s154 + $0xb0] sm:$0xff]
                %201 = vst [vmem:[%s155 + $0xb0] sm:$0xff] %v200
                %v202 = vld [vmem:[%s154 + $0xb8] sm:$0xff]
                %203 = vst [vmem:[%s155 + $0xb8] sm:$0xff] %v202
                %v204 = vld [vmem:[%s154 + $0xc0] sm:$0xff]
                %205 = vst [vmem:[%s155 + $0xc0] sm:$0xff] %v204
                %v206 = vld [vmem:[%s154 + $0xc8] sm:$0xff]
                %207 = vst [vmem:[%s155 + $0xc8] sm:$0xff] %v206
                %v208 = vld [vmem:[%s154 + $0xd0] sm:$0xff]
                %209 = vst [vmem:[%s155 + $0xd0] sm:$0xff] %v208
                %v210 = vld [vmem:[%s154 + $0xd8] sm:$0xff]
                %211 = vst [vmem:[%s155 + $0xd8] sm:$0xff] %v210
                %v212 = vld [vmem:[%s154 + $0xe0] sm:$0xff]
                %213 = vst [vmem:[%s155 + $0xe0] sm:$0xff] %v212
                %v214 = vld [vmem:[%s154 + $0xe8] sm:$0xff]
                %215 = vst [vmem:[%s155 + $0xe8] sm:$0xff] %v214
                %v216 = vld [vmem:[%s154 + $0xf0] sm:$0xff]
                %217 = vst [vmem:[%s155 + $0xf0] sm:$0xff] %v216
                %v218 = vld [vmem:[%s154 + $0xf8] sm:$0xff]
                %219 = vst [vmem:[%s155 + $0xf8] sm:$0xff] %v218
                %v220 = vld [vmem:[%s154 + $0x100] sm:$0xff]
                %221 = vst [vmem:[%s155 + $0x100] sm:$0xff] %v220
                %v222 = vld [vmem:[%s154 + $0x108] sm:$0xff]
                %223 = vst [vmem:[%s155 + $0x108] sm:$0xff] %v222
                %v224 = vld [vmem:[%s154 + $0x110] sm:$0xff]
                %225 = vst [vmem:[%s155 + $0x110] sm:$0xff] %v224
                %v226 = vld [vmem:[%s154 + $0x118] sm:$0xff]
                %227 = vst [vmem:[%s155 + $0x118] sm:$0xff] %v226
                %v228 = vld [vmem:[%s154 + $0x120] sm:$0xff]
                %229 = vst [vmem:[%s155 + $0x120] sm:$0xff] %v228
                %v230 = vld [vmem:[%s154 + $0x128] sm:$0xff]
                %231 = vst [vmem:[%s155 + $0x128] sm:$0xff] %v230
                %v232 = vld [vmem:[%s154 + $0x130] sm:$0xff]
                %233 = vst [vmem:[%s155 + $0x130] sm:$0xff] %v232
                %v234 = vld [vmem:[%s154 + $0x138] sm:$0xff]
                %235 = vst [vmem:[%s155 + $0x138] sm:$0xff] %v234
                %v236 = vld [vmem:[%s154 + $0x140] sm:$0xff]
                %237 = vst [vmem:[%s155 + $0x140] sm:$0xff] %v236
                %v238 = vld [vmem:[%s154 + $0x148] sm:$0xff]
                %239 = vst [vmem:[%s155 + $0x148] sm:$0xff] %v238
                %v240 = vld [vmem:[%s154 + $0x150] sm:$0xff]
                %241 = vst [vmem:[%s155 + $0x150] sm:$0xff] %v240
                %v242 = vld [vmem:[%s154 + $0x158] sm:$0xff]
                %243 = vst [vmem:[%s155 + $0x158] sm:$0xff] %v242
                %v244 = vld [vmem:[%s154 + $0x160] sm:$0xff]
                %245 = vst [vmem:[%s155 + $0x160] sm:$0xff] %v244
                %v246 = vld [vmem:[%s154 + $0x168] sm:$0xff]
                %247 = vst [vmem:[%s155 + $0x168] sm:$0xff] %v246
                %v248 = vld [vmem:[%s154 + $0x170] sm:$0xff]
                %249 = vst [vmem:[%s155 + $0x170] sm:$0xff] %v248
                %v250 = vld [vmem:[%s154 + $0x178] sm:$0xff]
                %251 = vst [vmem:[%s155 + $0x178] sm:$0xff] %v250
                %v252 = vld [vmem:[%s154 + $0x180] sm:$0xff]
                %253 = vst [vmem:[%s155 + $0x180] sm:$0xff] %v252
                %v254 = vld [vmem:[%s154 + $0x620] sm:$0xff]
                %255 = vst [vmem:[%s155 + $0x188] sm:$0xff] %v254
                %v256 = vld [vmem:[%s154 + $0x628] sm:$0xff]
                %257 = vst [vmem:[%s155 + $0x190] sm:$0xff] %v256
                %v258 = vld [vmem:[%s154 + $0x630] sm:$0xff]
                %259 = vst [vmem:[%s155 + $0x198] sm:$0xff] %v258
                %v260 = vld [vmem:[%s154 + $0x638] sm:$0xff]
                %261 = vst [vmem:[%s155 + $0x1a0] sm:$0xff] %v260
                %v262 = vld [vmem:[%s154 + $0x640] sm:$0xff]
                %263 = vst [vmem:[%s155 + $0x1a8] sm:$0xff] %v262
                %v264 = vld [vmem:[%s154 + $0x648] sm:$0xff]
                %265 = vst [vmem:[%s155 + $0x1b0] sm:$0xff] %v264
                %v266 = vld [vmem:[%s154 + $0x650] sm:$0xff]
                %267 = vst [vmem:[%s155 + $0x1b8] sm:$0xff] %v266
                %v268 = vld [vmem:[%s154 + $0x658] sm:$0xff]
                %269 = vst [vmem:[%s155 + $0x1c0] sm:$0xff] %v268
                %v270 = vld [vmem:[%s154 + $0x660] sm:$0xff]
                %271 = vst [vmem:[%s155 + $0x1c8] sm:$0xff] %v270
                %v272 = vld [vmem:[%s154 + $0x668] sm:$0xff]
                %273 = vst [vmem:[%s155 + $0x1d0] sm:$0xff] %v272
                %v274 = vld [vmem:[%s154 + $0x670] sm:$0xff]
                %275 = vst [vmem:[%s155 + $0x1d8] sm:$0xff] %v274
                %v276 = vld [vmem:[%s154 + $0x678] sm:$0xff]
                %277 = vst [vmem:[%s155 + $0x1e0] sm:$0xff] %v276
                %v278 = vld [vmem:[%s154 + $0x680] sm:$0xff]
                %279 = vst [vmem:[%s155 + $0x1e8] sm:$0xff] %v278
                %v280 = vld [vmem:[%s154 + $0x688] sm:$0xff]
                %281 = vst [vmem:[%s155 + $0x1f0] sm:$0xff] %v280
                %v282 = vld [vmem:[%s154 + $0x690] sm:$0xff]
                %283 = vst [vmem:[%s155 + $0x1f8] sm:$0xff] %v282
                %v284 = vld [vmem:[%s154 + $0x698] sm:$0xff]
                %285 = vst [vmem:[%s155 + $0x200] sm:$0xff] %v284
                %v286 = vld [vmem:[%s154 + $0x6a0] sm:$0xff]
                %287 = vst [vmem:[%s155 + $0x208] sm:$0xff] %v286
                %v288 = vld [vmem:[%s154 + $0x6a8] sm:$0xff]
                %289 = vst [vmem:[%s155 + $0x210] sm:$0xff] %v288
                %v290 = vld [vmem:[%s154 + $0x6b0] sm:$0xff]
                %291 = vst [vmem:[%s155 + $0x218] sm:$0xff] %v290
                %v292 = vld [vmem:[%s154 + $0x6b8] sm:$0xff]
                %293 = vst [vmem:[%s155 + $0x220] sm:$0xff] %v292
                %v294 = vld [vmem:[%s154 + $0x6c0] sm:$0xff]
                %295 = vst [vmem:[%s155 + $0x228] sm:$0xff] %v294
                %v296 = vld [vmem:[%s154 + $0x6c8] sm:$0xff]
                %297 = vst [vmem:[%s155 + $0x230] sm:$0xff] %v296
                %v298 = vld [vmem:[%s154 + $0x6d0] sm:$0xff]
                %299 = vst [vmem:[%s155 + $0x238] sm:$0xff] %v298
                %v300 = vld [vmem:[%s154 + $0x6d8] sm:$0xff]
                %301 = vst [vmem:[%s155 + $0x240] sm:$0xff] %v300
                %v302 = vld [vmem:[%s154 + $0x6e0] sm:$0xff]
                %303 = vst [vmem:[%s155 + $0x248] sm:$0xff] %v302
                %v304 = vld [vmem:[%s154 + $0x6e8] sm:$0xff]
                %305 = vst [vmem:[%s155 + $0x250] sm:$0xff] %v304
                %v306 = vld [vmem:[%s154 + $0x6f0] sm:$0xff]
                %307 = vst [vmem:[%s155 + $0x258] sm:$0xff] %v306
                %v308 = vld [vmem:[%s154 + $0x6f8] sm:$0xff]
                %309 = vst [vmem:[%s155 + $0x260] sm:$0xff] %v308
                %v310 = vld [vmem:[%s154 + $0x700] sm:$0xff]
                %311 = vst [vmem:[%s155 + $0x268] sm:$0xff] %v310
                %v312 = vld [vmem:[%s154 + $0x708] sm:$0xff]
                %313 = vst [vmem:[%s155 + $0x270] sm:$0xff] %v312
                %v314 = vld [vmem:[%s154 + $0x710] sm:$0xff]
                %315 = vst [vmem:[%s155 + $0x278] sm:$0xff] %v314
                %v316 = vld [vmem:[%s154 + $0x718] sm:$0xff]
                %317 = vst [vmem:[%s155 + $0x280] sm:$0xff] %v316
                %v318 = vld [vmem:[%s154 + $0x720] sm:$0xff]
                %319 = vst [vmem:[%s155 + $0x288] sm:$0xff] %v318
                %v320 = vld [vmem:[%s154 + $0x728] sm:$0xff]
                %321 = vst [vmem:[%s155 + $0x290] sm:$0xff] %v320
                %v322 = vld [vmem:[%s154 + $0x730] sm:$0xff]
                %323 = vst [vmem:[%s155 + $0x298] sm:$0xff] %v322
                %v324 = vld [vmem:[%s154 + $0x738] sm:$0xff]
                %325 = vst [vmem:[%s155 + $0x2a0] sm:$0xff] %v324
                %v326 = vld [vmem:[%s154 + $0x740] sm:$0xff]
                %327 = vst [vmem:[%s155 + $0x2a8] sm:$0xff] %v326
                %v328 = vld [vmem:[%s154 + $0x748] sm:$0xff]
                %329 = vst [vmem:[%s155 + $0x2b0] sm:$0xff] %v328
                %v330 = vld [vmem:[%s154 + $0x750] sm:$0xff]
                %331 = vst [vmem:[%s155 + $0x2b8] sm:$0xff] %v330
                %v332 = vld [vmem:[%s154 + $0x758] sm:$0xff]
                %333 = vst [vmem:[%s155 + $0x2c0] sm:$0xff] %v332
                %v334 = vld [vmem:[%s154 + $0x760] sm:$0xff]
                %335 = vst [vmem:[%s155 + $0x2c8] sm:$0xff] %v334
                %v336 = vld [vmem:[%s154 + $0x768] sm:$0xff]
                %337 = vst [vmem:[%s155 + $0x2d0] sm:$0xff] %v336
                %v338 = vld [vmem:[%s154 + $0x770] sm:$0xff]
                %339 = vst [vmem:[%s155 + $0x2d8] sm:$0xff] %v338
                %v340 = vld [vmem:[%s154 + $0x778] sm:$0xff]
                %341 = vst [vmem:[%s155 + $0x2e0] sm:$0xff] %v340
                %v342 = vld [vmem:[%s154 + $0x780] sm:$0xff]
                %343 = vst [vmem:[%s155 + $0x2e8] sm:$0xff] %v342
                %v344 = vld [vmem:[%s154 + $0x788] sm:$0xff]
                %345 = vst [vmem:[%s155 + $0x2f0] sm:$0xff] %v344
                %v346 = vld [vmem:[%s154 + $0x790] sm:$0xff]
                %347 = vst [vmem:[%s155 + $0x2f8] sm:$0xff] %v346
                %v348 = vld [vmem:[%s154 + $0x798] sm:$0xff]
                %349 = vst [vmem:[%s155 + $0x300] sm:$0xff] %v348
                %v350 = vld [vmem:[%s154 + $0x7a0] sm:$0xff]
                %351 = vst [vmem:[%s155 + $0x308] sm:$0xff] %v350
              $region41: #{forward.3} parent=35 // loop_footer
                %s153 = sadd.s32 1, %s149
              $region42: #{forward.3} parent=35 // loop_footer_branch
                %148 = sbr.rel target = $region38
              $region43: #{forward.3} parent=35 // loop_exit
                _
            $region36: #{forward.3} parent=31 // pred_fallthru
              _
            // Predicated region
            $region44: #{forward.3} parent=31 // pred_check
              _
            $region45: #{forward.3} parent=31 // pred_check_branch
              %353 = sbr.rel target = $region47
            $region46: #{forward.3} parent=31 // pred_region
              _
            $region47: #{forward.3} parent=31 // pred_fallthru
              _
          $region32: #{forward.3} parent=27 // pred_fallthru
            _
          %354 = vnop
        $region28: #{forward.3} parent=19 // pred_fallthru
          _
      $region20: #{forward.3} parent=5 // pred_fallthru
        _
      %p355 = scmp.le.s32.totalorder 1, %s10
      %p356 = scmp.lt.s32.totalorder %s10, 5
      %p357 = pnand %p355, %p356
      %p358 = pneg %p357
      // Predicated region
      $region48: #{forward.3} parent=5 // pred_check
        _
      $region49: #{forward.3} parent=5 // pred_check_branch
        %360 = sbr.rel (%p357) target = $region51
      $region50: #{forward.3} parent=5 // pred_region
        %s361 = ssub.s32 %s10, 1
        %s362 = sand.u32 %s49, 1
        %s363 = sand.u32 %s49, 1
        %s364 = smul.addr %s363, 784
        %s365 = scalar_lea.vmem [#allocation2], %s364
        // Predicated region
        $region52: #{forward.3} parent=50 // pred_check
          %p366 = pneg %p62
        $region53: #{forward.3} parent=50 // pred_check_branch
          %368 = sbr.rel (%p366) target = $region55
        $region54: #{forward.3} parent=50 // pred_region
          _
        $region55: #{forward.3} parent=50 // pred_fallthru
          _
        %s369 = smul.u32 98, %s15
        %p370 = scmp.lt.s32.totalorder %s369, 391
        %s371 = scalar_select %p370, %s369, 391
        %s372 = scalar_lea.vmem %s0, %s371
        %p373 = pneg %p36
        %p374 = pneg %p33
        %s375 = sand.u32 %s49, 1
        %s376 = sand.u32 %s49, 1
        %s377 = smul.addr %s376, 784
        %s378 = scalar_lea.vmem [#allocation2], %s377
        %p379 = pneg %p62
        %p380 = pneg %p59
        %p381 = pneg %p83
        %p382 = pneg %p80
        %p383 = pneg %p104
        %p384 = pneg %p101
        %s385 = smul.u32 98, %s15
        %p386 = scmp.lt.s32.totalorder %s385, 391
        %s387 = scalar_select %p386, %s385, 391
        %s388 = scalar_lea.vmem %s0, %s387
        %s389 = smul.u32 98, %s15
        %s390 = smul.u32 98, %s15
        %p392 = scmp.eq.s32.totalorder %s15, 0
        // Predicated region
        $region56: #{forward.3} parent=50 // pred_check
          %p393 = pneg %p392
        $region57: #{forward.3} parent=50 // pred_check_branch
          %395 = sbr.rel (%p393) target = $region59
        $region58: #{forward.3} parent=50 // pred_region
          %v396 = vld [vmem:[%s2] sm:$0x1]
          %v398 = vlaneseq
          %v399 = vshrl.u32 %v398, 7
          %v400 = vsub.s32 0, %v399
          %v401 = vrot.slane %v396, %v400
          %vm403 = vcmask 74752
          %404 = vst.msk [vmem:[#allocation3] sm:$0x3] %vm403, %v401
        $region59: #{forward.3} parent=50 // pred_fallthru
          _
        %v405 = vld [vmem:[#allocation3] sm:$0x3]
        %v406 = vld [vmem:[%s388] sm:$0xff]
        %v407 = vld [vmem:[%s388 + $0x8] sm:$0xff]
        %v408 = vld [vmem:[%s388 + $0x10] sm:$0xff]
        %v409 = vld [vmem:[%s388 + $0x18] sm:$0xff]
        %v410 = vld [vmem:[%s388 + $0x20] sm:$0xff]
        %v411 = vld [vmem:[%s388 + $0x28] sm:$0xff]
        %v412 = vld [vmem:[%s388 + $0x30] sm:$0xff]
        %v413 = vld [vmem:[%s388 + $0x38] sm:$0xff]
        %v414 = vld [vmem:[%s388 + $0x40] sm:$0xff]
        %v415 = vld [vmem:[%s388 + $0x48] sm:$0xff]
        %v416 = vld [vmem:[%s388 + $0x50] sm:$0xff]
        %v417 = vld [vmem:[%s388 + $0x58] sm:$0xff]
        %v418 = vld [vmem:[%s388 + $0x60] sm:$0x3]
        %v419 = vld [vmem:[%s365] sm:$0xff]
        %v420 = vld [vmem:[%s365 + $0x8] sm:$0xff]
        %v421 = vld [vmem:[%s365 + $0x10] sm:$0xff]
        %v422 = vld [vmem:[%s365 + $0x18] sm:$0xff]
        %v423 = vld [vmem:[%s365 + $0x20] sm:$0xff]
        %v424 = vld [vmem:[%s365 + $0x28] sm:$0xff]
        %v425 = vld [vmem:[%s365 + $0x30] sm:$0xff]
        %v426 = vld [vmem:[%s365 + $0x38] sm:$0xff]
        %v427 = vld [vmem:[%s365 + $0x40] sm:$0xff]
        %v428 = vld [vmem:[%s365 + $0x48] sm:$0xff]
        %v429 = vld [vmem:[%s365 + $0x50] sm:$0xff]
        %v430 = vld [vmem:[%s365 + $0x58] sm:$0xff]
        %v431 = vld [vmem:[%s365 + $0x60] sm:$0xff]
        %v432 = vld [vmem:[%s365 + $0x68] sm:$0xff]
        %v433 = vld [vmem:[%s365 + $0x70] sm:$0xff]
        %v434 = vld [vmem:[%s365 + $0x78] sm:$0xff]
        %v435 = vld [vmem:[%s365 + $0x80] sm:$0xff]
        %v436 = vld [vmem:[%s365 + $0x88] sm:$0xff]
        %v437 = vld [vmem:[%s365 + $0x90] sm:$0xff]
        %v438 = vld [vmem:[%s365 + $0x98] sm:$0xff]
        %v439 = vld [vmem:[%s365 + $0xa0] sm:$0xff]
        %v440 = vld [vmem:[%s365 + $0xa8] sm:$0xff]
        %v441 = vld [vmem:[%s365 + $0xb0] sm:$0xff]
        %v442 = vld [vmem:[%s365 + $0xb8] sm:$0xff]
        %v443 = vld [vmem:[%s365 + $0xc0] sm:$0xff]
        %v444 = vld [vmem:[%s365 + $0xc8] sm:$0xff]
        %v445 = vld [vmem:[%s365 + $0xd0] sm:$0xff]
        %v446 = vld [vmem:[%s365 + $0xd8] sm:$0xff]
        %v447 = vld [vmem:[%s365 + $0xe0] sm:$0xff]
        %v448 = vld [vmem:[%s365 + $0xe8] sm:$0xff]
        %v449 = vld [vmem:[%s365 + $0xf0] sm:$0xff]
        %v450 = vld [vmem:[%s365 + $0xf8] sm:$0xff]
        %v451 = vld [vmem:[%s365 + $0x100] sm:$0xff]
        %v452 = vld [vmem:[%s365 + $0x108] sm:$0xff]
        %v453 = vld [vmem:[%s365 + $0x110] sm:$0xff]
        %v454 = vld [vmem:[%s365 + $0x118] sm:$0xff]
        %v455 = vld [vmem:[%s365 + $0x120] sm:$0xff]
        %v456 = vld [vmem:[%s365 + $0x128] sm:$0xff]
        %v457 = vld [vmem:[%s365 + $0x130] sm:$0xff]
        %v458 = vld [vmem:[%s365 + $0x138] sm:$0xff]
        %v459 = vld [vmem:[%s365 + $0x140] sm:$0xff]
        %v460 = vld [vmem:[%s365 + $0x148] sm:$0xff]
        %v461 = vld [vmem:[%s365 + $0x150] sm:$0xff]
        %v462 = vld [vmem:[%s365 + $0x158] sm:$0xff]
        %v463 = vld [vmem:[%s365 + $0x160] sm:$0xff]
        %v464 = vld [vmem:[%s365 + $0x168] sm:$0xff]
        %v465 = vld [vmem:[%s365 + $0x170] sm:$0xff]
        %v466 = vld [vmem:[%s365 + $0x178] sm:$0xff]
        %v467 = vld [vmem:[%s365 + $0x180] sm:$0xff]
        %v468 = vld [vmem:[%s365 + $0x188] sm:$0x11]
        %v469 = vld [vmem:[%s365 + $0x190] sm:$0x11]
        %v470 = vld [vmem:[%s365 + $0x198] sm:$0x11]
        %v471 = vld [vmem:[%s365 + $0x1a0] sm:$0x11]
        %v472 = vld [vmem:[%s365 + $0x1a8] sm:$0x11]
        %v473 = vld [vmem:[%s365 + $0x1b0] sm:$0x11]
        %v474 = vld [vmem:[%s365 + $0x1b8] sm:$0x11]
        %v475 = vld [vmem:[%s365 + $0x1c0] sm:$0x11]
        %v476 = vld [vmem:[%s365 + $0x1c8] sm:$0x11]
        %v477 = vld [vmem:[%s365 + $0x1d0] sm:$0x11]
        %v478 = vld [vmem:[%s365 + $0x1d8] sm:$0x11]
        %v479 = vld [vmem:[%s365 + $0x1e0] sm:$0x11]
        %v480 = vld [vmem:[%s365 + $0x1e8] sm:$0x11]
        %v481 = vld [vmem:[%s365 + $0x1f0] sm:$0x11]
        %v482 = vld [vmem:[%s365 + $0x1f8] sm:$0x11]
        %v483 = vld [vmem:[%s365 + $0x200] sm:$0x11]
        %v484 = vld [vmem:[%s365 + $0x208] sm:$0x11]
        %v485 = vld [vmem:[%s365 + $0x210] sm:$0x11]
        %v486 = vld [vmem:[%s365 + $0x218] sm:$0x11]
        %v487 = vld [vmem:[%s365 + $0x220] sm:$0x11]
        %v488 = vld [vmem:[%s365 + $0x228] sm:$0x11]
        %v489 = vld [vmem:[%s365 + $0x230] sm:$0x11]
        %v490 = vld [vmem:[%s365 + $0x238] sm:$0x11]
        %v491 = vld [vmem:[%s365 + $0x240] sm:$0x11]
        %v492 = vld [vmem:[%s365 + $0x248] sm:$0x11]
        %v493 = vld [vmem:[%s365 + $0x250] sm:$0x11]
        %v494 = vld [vmem:[%s365 + $0x258] sm:$0x11]
        %v495 = vld [vmem:[%s365 + $0x260] sm:$0x11]
        %v496 = vld [vmem:[%s365 + $0x268] sm:$0x11]
        %v497 = vld [vmem:[%s365 + $0x270] sm:$0x11]
        %v498 = vld [vmem:[%s365 + $0x278] sm:$0x11]
        %v499 = vld [vmem:[%s365 + $0x280] sm:$0x11]
        %v500 = vld [vmem:[%s365 + $0x288] sm:$0x11]
        %v501 = vld [vmem:[%s365 + $0x290] sm:$0x11]
        %v502 = vld [vmem:[%s365 + $0x298] sm:$0x11]
        %v503 = vld [vmem:[%s365 + $0x2a0] sm:$0x11]
        %v504 = vld [vmem:[%s365 + $0x2a8] sm:$0x11]
        %v505 = vld [vmem:[%s365 + $0x2b0] sm:$0x11]
        %v506 = vld [vmem:[%s365 + $0x2b8] sm:$0x11]
        %v507 = vld [vmem:[%s365 + $0x2c0] sm:$0x11]
        %v508 = vld [vmem:[%s365 + $0x2c8] sm:$0x11]
        %v509 = vld [vmem:[%s365 + $0x2d0] sm:$0x11]
        %v510 = vld [vmem:[%s365 + $0x2d8] sm:$0x11]
        %v511 = vld [vmem:[%s365 + $0x2e0] sm:$0x11]
        %v512 = vld [vmem:[%s365 + $0x2e8] sm:$0x11]
        %v513 = vld [vmem:[%s365 + $0x2f0] sm:$0x11]
        %v514 = vld [vmem:[%s365 + $0x2f8] sm:$0x11]
        %v515 = vld [vmem:[%s365 + $0x300] sm:$0x11]
        %v516 = vld [vmem:[%s365 + $0x308] sm:$0x11]
        %v530 = vcombine.high %v406, %v406
        %v532 = vunpack.c.l.s4 1966171168
        %v533 = vunpack.c.0.s8 %v532
        %v534 = vlaneseq
        %v535 = vshrl.u32 %v534, 7
        %v536 = vsub.s32 %v533, %v535
        %v537 = vrot.slane %v406, %v536
        %v539 = vunpack.c.l.s4 1966171168
        %v540 = vunpack.c.0.s8 %v539
        %v541 = vlaneseq
        %v542 = vshrl.u32 %v541, 7
        %v543 = vsub.s32 %v540, %v542
        %v544 = vrot.slane %v530, %v543
        %v545 = vcombine.high %v537, %v537
        %v546 = vcombine.high %v544, %v544
        %v548 = vunpack.c.l.s4 1966171168
        %v549 = vunpack.c.0.s8 %v548
        %v550 = vlaneseq
        %v551 = vshrl.u32 %v550, 7
        %v552 = vsub.s32 %v549, %v551
        %v553 = vrot.slane %v537, %v552
        %v555 = vunpack.c.l.s4 1966171168
        %v556 = vunpack.c.0.s8 %v555
        %v557 = vlaneseq
        %v558 = vshrl.u32 %v557, 7
        %v559 = vsub.s32 %v556, %v558
        %v560 = vrot.slane %v544, %v559
        %v562 = vunpack.c.l.s4 1966171168
        %v563 = vunpack.c.0.s8 %v562
        %v564 = vlaneseq
        %v565 = vshrl.u32 %v564, 7
        %v566 = vsub.s32 %v563, %v565
        %v567 = vrot.slane %v545, %v566
        %v569 = vunpack.c.l.s4 1966171168
        %v570 = vunpack.c.0.s8 %v569
        %v571 = vlaneseq
        %v572 = vshrl.u32 %v571, 7
        %v573 = vsub.s32 %v570, %v572
        %v574 = vrot.slane %v546, %v573
        %v575 = vcombine.high %v553, %v553
        %v576 = vcombine.high %v560, %v560
        %v577 = vcombine.high %v567, %v567
        %v578 = vcombine.high %v574, %v574
        %v579 = vcombine.high %v407, %v407
        %v581 = vunpack.c.l.s4 1966171168
        %v582 = vunpack.c.0.s8 %v581
        %v583 = vlaneseq
        %v584 = vshrl.u32 %v583, 7
        %v585 = vsub.s32 %v582, %v584
        %v586 = vrot.slane %v407, %v585
        %v588 = vunpack.c.l.s4 1966171168
        %v589 = vunpack.c.0.s8 %v588
        %v590 = vlaneseq
        %v591 = vshrl.u32 %v590, 7
        %v592 = vsub.s32 %v589, %v591
        %v593 = vrot.slane %v579, %v592
        %v594 = vcombine.high %v586, %v586
        %v595 = vcombine.high %v593, %v593
        %v597 = vunpack.c.l.s4 1966171168
        %v598 = vunpack.c.0.s8 %v597
        %v599 = vlaneseq
        %v600 = vshrl.u32 %v599, 7
        %v601 = vsub.s32 %v598, %v600
        %v602 = vrot.slane %v586, %v601
        %v604 = vunpack.c.l.s4 1966171168
        %v605 = vunpack.c.0.s8 %v604
        %v606 = vlaneseq
        %v607 = vshrl.u32 %v606, 7
        %v608 = vsub.s32 %v605, %v607
        %v609 = vrot.slane %v593, %v608
        %v611 = vunpack.c.l.s4 1966171168
        %v612 = vunpack.c.0.s8 %v611
        %v613 = vlaneseq
        %v614 = vshrl.u32 %v613, 7
        %v615 = vsub.s32 %v612, %v614
        %v616 = vrot.slane %v594, %v615
        %v618 = vunpack.c.l.s4 1966171168
        %v619 = vunpack.c.0.s8 %v618
        %v620 = vlaneseq
        %v621 = vshrl.u32 %v620, 7
        %v622 = vsub.s32 %v619, %v621
        %v623 = vrot.slane %v595, %v622
        %v624 = vcombine.high %v602, %v602
        %v625 = vcombine.high %v609, %v609
        %v626 = vcombine.high %v616, %v616
        %v627 = vcombine.high %v623, %v623
        %v628 = vcombine.high %v408, %v408
        %v630 = vunpack.c.l.s4 1966171168
        %v631 = vunpack.c.0.s8 %v630
        %v632 = vlaneseq
        %v633 = vshrl.u32 %v632, 7
        %v634 = vsub.s32 %v631, %v633
        %v635 = vrot.slane %v408, %v634
        %v637 = vunpack.c.l.s4 1966171168
        %v638 = vunpack.c.0.s8 %v637
        %v639 = vlaneseq
        %v640 = vshrl.u32 %v639, 7
        %v641 = vsub.s32 %v638, %v640
        %v642 = vrot.slane %v628, %v641
        %v643 = vcombine.high %v635, %v635
        %v644 = vcombine.high %v642, %v642
        %v646 = vunpack.c.l.s4 1966171168
        %v647 = vunpack.c.0.s8 %v646
        %v648 = vlaneseq
        %v649 = vshrl.u32 %v648, 7
        %v650 = vsub.s32 %v647, %v649
        %v651 = vrot.slane %v635, %v650
        %v653 = vunpack.c.l.s4 1966171168
        %v654 = vunpack.c.0.s8 %v653
        %v655 = vlaneseq
        %v656 = vshrl.u32 %v655, 7
        %v657 = vsub.s32 %v654, %v656
        %v658 = vrot.slane %v642, %v657
        %v660 = vunpack.c.l.s4 1966171168
        %v661 = vunpack.c.0.s8 %v660
        %v662 = vlaneseq
        %v663 = vshrl.u32 %v662, 7
        %v664 = vsub.s32 %v661, %v663
        %v665 = vrot.slane %v643, %v664
        %v667 = vunpack.c.l.s4 1966171168
        %v668 = vunpack.c.0.s8 %v667
        %v669 = vlaneseq
        %v670 = vshrl.u32 %v669, 7
        %v671 = vsub.s32 %v668, %v670
        %v672 = vrot.slane %v644, %v671
        %v673 = vcombine.high %v651, %v651
        %v674 = vcombine.high %v658, %v658
        %v675 = vcombine.high %v665, %v665
        %v676 = vcombine.high %v672, %v672
        %v677 = vcombine.high %v409, %v409
        %v679 = vunpack.c.l.s4 1966171168
        %v680 = vunpack.c.0.s8 %v679
        %v681 = vlaneseq
        %v682 = vshrl.u32 %v681, 7
        %v683 = vsub.s32 %v680, %v682
        %v684 = vrot.slane %v409, %v683
        %v686 = vunpack.c.l.s4 1966171168
        %v687 = vunpack.c.0.s8 %v686
        %v688 = vlaneseq
        %v689 = vshrl.u32 %v688, 7
        %v690 = vsub.s32 %v687, %v689
        %v691 = vrot.slane %v677, %v690
        %v692 = vcombine.high %v684, %v684
        %v693 = vcombine.high %v691, %v691
        %v695 = vunpack.c.l.s4 1966171168
        %v696 = vunpack.c.0.s8 %v695
        %v697 = vlaneseq
        %v698 = vshrl.u32 %v697, 7
        %v699 = vsub.s32 %v696, %v698
        %v700 = vrot.slane %v684, %v699
        %v702 = vunpack.c.l.s4 1966171168
        %v703 = vunpack.c.0.s8 %v702
        %v704 = vlaneseq
        %v705 = vshrl.u32 %v704, 7
        %v706 = vsub.s32 %v703, %v705
        %v707 = vrot.slane %v691, %v706
        %v709 = vunpack.c.l.s4 1966171168
        %v710 = vunpack.c.0.s8 %v709
        %v711 = vlaneseq
        %v712 = vshrl.u32 %v711, 7
        %v713 = vsub.s32 %v710, %v712
        %v714 = vrot.slane %v692, %v713
        %v716 = vunpack.c.l.s4 1966171168
        %v717 = vunpack.c.0.s8 %v716
        %v718 = vlaneseq
        %v719 = vshrl.u32 %v718, 7
        %v720 = vsub.s32 %v717, %v719
        %v721 = vrot.slane %v693, %v720
        %v722 = vcombine.high %v700, %v700
        %v723 = vcombine.high %v707, %v707
        %v724 = vcombine.high %v714, %v714
        %v725 = vcombine.high %v721, %v721
        %v726 = vcombine.high %v410, %v410
        %v728 = vunpack.c.l.s4 1966171168
        %v729 = vunpack.c.0.s8 %v728
        %v730 = vlaneseq
        %v731 = vshrl.u32 %v730, 7
        %v732 = vsub.s32 %v729, %v731
        %v733 = vrot.slane %v410, %v732
        %v735 = vunpack.c.l.s4 1966171168
        %v736 = vunpack.c.0.s8 %v735
        %v737 = vlaneseq
        %v738 = vshrl.u32 %v737, 7
        %v739 = vsub.s32 %v736, %v738
        %v740 = vrot.slane %v726, %v739
        %v741 = vcombine.high %v733, %v733
        %v742 = vcombine.high %v740, %v740
        %v744 = vunpack.c.l.s4 1966171168
        %v745 = vunpack.c.0.s8 %v744
        %v746 = vlaneseq
        %v747 = vshrl.u32 %v746, 7
        %v748 = vsub.s32 %v745, %v747
        %v749 = vrot.slane %v733, %v748
        %v751 = vunpack.c.l.s4 1966171168
        %v752 = vunpack.c.0.s8 %v751
        %v753 = vlaneseq
        %v754 = vshrl.u32 %v753, 7
        %v755 = vsub.s32 %v752, %v754
        %v756 = vrot.slane %v740, %v755
        %v758 = vunpack.c.l.s4 1966171168
        %v759 = vunpack.c.0.s8 %v758
        %v760 = vlaneseq
        %v761 = vshrl.u32 %v760, 7
        %v762 = vsub.s32 %v759, %v761
        %v763 = vrot.slane %v741, %v762
        %v765 = vunpack.c.l.s4 1966171168
        %v766 = vunpack.c.0.s8 %v765
        %v767 = vlaneseq
        %v768 = vshrl.u32 %v767, 7
        %v769 = vsub.s32 %v766, %v768
        %v770 = vrot.slane %v742, %v769
        %v771 = vcombine.high %v749, %v749
        %v772 = vcombine.high %v756, %v756
        %v773 = vcombine.high %v763, %v763
        %v774 = vcombine.high %v770, %v770
        %v775 = vcombine.high %v411, %v411
        %v777 = vunpack.c.l.s4 1966171168
        %v778 = vunpack.c.0.s8 %v777
        %v779 = vlaneseq
        %v780 = vshrl.u32 %v779, 7
        %v781 = vsub.s32 %v778, %v780
        %v782 = vrot.slane %v411, %v781
        %v784 = vunpack.c.l.s4 1966171168
        %v785 = vunpack.c.0.s8 %v784
        %v786 = vlaneseq
        %v787 = vshrl.u32 %v786, 7
        %v788 = vsub.s32 %v785, %v787
        %v789 = vrot.slane %v775, %v788
        %v790 = vcombine.high %v782, %v782
        %v791 = vcombine.high %v789, %v789
        %v793 = vunpack.c.l.s4 1966171168
        %v794 = vunpack.c.0.s8 %v793
        %v795 = vlaneseq
        %v796 = vshrl.u32 %v795, 7
        %v797 = vsub.s32 %v794, %v796
        %v798 = vrot.slane %v782, %v797
        %v800 = vunpack.c.l.s4 1966171168
        %v801 = vunpack.c.0.s8 %v800
        %v802 = vlaneseq
        %v803 = vshrl.u32 %v802, 7
        %v804 = vsub.s32 %v801, %v803
        %v805 = vrot.slane %v789, %v804
        %v807 = vunpack.c.l.s4 1966171168
        %v808 = vunpack.c.0.s8 %v807
        %v809 = vlaneseq
        %v810 = vshrl.u32 %v809, 7
        %v811 = vsub.s32 %v808, %v810
        %v812 = vrot.slane %v790, %v811
        %v814 = vunpack.c.l.s4 1966171168
        %v815 = vunpack.c.0.s8 %v814
        %v816 = vlaneseq
        %v817 = vshrl.u32 %v816, 7
        %v818 = vsub.s32 %v815, %v817
        %v819 = vrot.slane %v791, %v818
        %v820 = vcombine.high %v798, %v798
        %v821 = vcombine.high %v805, %v805
        %v822 = vcombine.high %v812, %v812
        %v823 = vcombine.high %v819, %v819
        %v824 = vcombine.high %v412, %v412
        %v826 = vunpack.c.l.s4 1966171168
        %v827 = vunpack.c.0.s8 %v826
        %v828 = vlaneseq
        %v829 = vshrl.u32 %v828, 7
        %v830 = vsub.s32 %v827, %v829
        %v831 = vrot.slane %v412, %v830
        %v833 = vunpack.c.l.s4 1966171168
        %v834 = vunpack.c.0.s8 %v833
        %v835 = vlaneseq
        %v836 = vshrl.u32 %v835, 7
        %v837 = vsub.s32 %v834, %v836
        %v838 = vrot.slane %v824, %v837
        %v839 = vcombine.high %v831, %v831
        %v840 = vcombine.high %v838, %v838
        %v842 = vunpack.c.l.s4 1966171168
        %v843 = vunpack.c.0.s8 %v842
        %v844 = vlaneseq
        %v845 = vshrl.u32 %v844, 7
        %v846 = vsub.s32 %v843, %v845
        %v847 = vrot.slane %v831, %v846
        %v849 = vunpack.c.l.s4 1966171168
        %v850 = vunpack.c.0.s8 %v849
        %v851 = vlaneseq
        %v852 = vshrl.u32 %v851, 7
        %v853 = vsub.s32 %v850, %v852
        %v854 = vrot.slane %v838, %v853
        %v856 = vunpack.c.l.s4 1966171168
        %v857 = vunpack.c.0.s8 %v856
        %v858 = vlaneseq
        %v859 = vshrl.u32 %v858, 7
        %v860 = vsub.s32 %v857, %v859
        %v861 = vrot.slane %v839, %v860
        %v863 = vunpack.c.l.s4 1966171168
        %v864 = vunpack.c.0.s8 %v863
        %v865 = vlaneseq
        %v866 = vshrl.u32 %v865, 7
        %v867 = vsub.s32 %v864, %v866
        %v868 = vrot.slane %v840, %v867
        %v869 = vcombine.high %v847, %v847
        %v870 = vcombine.high %v854, %v854
        %v871 = vcombine.high %v861, %v861
        %v872 = vcombine.high %v868, %v868
        %v873 = vcombine.high %v413, %v413
        %v875 = vunpack.c.l.s4 1966171168
        %v876 = vunpack.c.0.s8 %v875
        %v877 = vlaneseq
        %v878 = vshrl.u32 %v877, 7
        %v879 = vsub.s32 %v876, %v878
        %v880 = vrot.slane %v413, %v879
        %v882 = vunpack.c.l.s4 1966171168
        %v883 = vunpack.c.0.s8 %v882
        %v884 = vlaneseq
        %v885 = vshrl.u32 %v884, 7
        %v886 = vsub.s32 %v883, %v885
        %v887 = vrot.slane %v873, %v886
        %v888 = vcombine.high %v880, %v880
        %v889 = vcombine.high %v887, %v887
        %v891 = vunpack.c.l.s4 1966171168
        %v892 = vunpack.c.0.s8 %v891
        %v893 = vlaneseq
        %v894 = vshrl.u32 %v893, 7
        %v895 = vsub.s32 %v892, %v894
        %v896 = vrot.slane %v880, %v895
        %v898 = vunpack.c.l.s4 1966171168
        %v899 = vunpack.c.0.s8 %v898
        %v900 = vlaneseq
        %v901 = vshrl.u32 %v900, 7
        %v902 = vsub.s32 %v899, %v901
        %v903 = vrot.slane %v887, %v902
        %v905 = vunpack.c.l.s4 1966171168
        %v906 = vunpack.c.0.s8 %v905
        %v907 = vlaneseq
        %v908 = vshrl.u32 %v907, 7
        %v909 = vsub.s32 %v906, %v908
        %v910 = vrot.slane %v888, %v909
        %v912 = vunpack.c.l.s4 1966171168
        %v913 = vunpack.c.0.s8 %v912
        %v914 = vlaneseq
        %v915 = vshrl.u32 %v914, 7
        %v916 = vsub.s32 %v913, %v915
        %v917 = vrot.slane %v889, %v916
        %v918 = vcombine.high %v896, %v896
        %v919 = vcombine.high %v903, %v903
        %v920 = vcombine.high %v910, %v910
        %v921 = vcombine.high %v917, %v917
        %v922 = vcombine.high %v414, %v414
        %v924 = vunpack.c.l.s4 1966171168
        %v925 = vunpack.c.0.s8 %v924
        %v926 = vlaneseq
        %v927 = vshrl.u32 %v926, 7
        %v928 = vsub.s32 %v925, %v927
        %v929 = vrot.slane %v414, %v928
        %v931 = vunpack.c.l.s4 1966171168
        %v932 = vunpack.c.0.s8 %v931
        %v933 = vlaneseq
        %v934 = vshrl.u32 %v933, 7
        %v935 = vsub.s32 %v932, %v934
        %v936 = vrot.slane %v922, %v935
        %v937 = vcombine.high %v929, %v929
        %v938 = vcombine.high %v936, %v936
        %v940 = vunpack.c.l.s4 1966171168
        %v941 = vunpack.c.0.s8 %v940
        %v942 = vlaneseq
        %v943 = vshrl.u32 %v942, 7
        %v944 = vsub.s32 %v941, %v943
        %v945 = vrot.slane %v929, %v944
        %v947 = vunpack.c.l.s4 1966171168
        %v948 = vunpack.c.0.s8 %v947
        %v949 = vlaneseq
        %v950 = vshrl.u32 %v949, 7
        %v951 = vsub.s32 %v948, %v950
        %v952 = vrot.slane %v936, %v951
        %v954 = vunpack.c.l.s4 1966171168
        %v955 = vunpack.c.0.s8 %v954
        %v956 = vlaneseq
        %v957 = vshrl.u32 %v956, 7
        %v958 = vsub.s32 %v955, %v957
        %v959 = vrot.slane %v937, %v958
        %v961 = vunpack.c.l.s4 1966171168
        %v962 = vunpack.c.0.s8 %v961
        %v963 = vlaneseq
        %v964 = vshrl.u32 %v963, 7
        %v965 = vsub.s32 %v962, %v964
        %v966 = vrot.slane %v938, %v965
        %v967 = vcombine.high %v945, %v945
        %v968 = vcombine.high %v952, %v952
        %v969 = vcombine.high %v959, %v959
        %v970 = vcombine.high %v966, %v966
        %v971 = vcombine.high %v415, %v415
        %v973 = vunpack.c.l.s4 1966171168
        %v974 = vunpack.c.0.s8 %v973
        %v975 = vlaneseq
        %v976 = vshrl.u32 %v975, 7
        %v977 = vsub.s32 %v974, %v976
        %v978 = vrot.slane %v415, %v977
        %v980 = vunpack.c.l.s4 1966171168
        %v981 = vunpack.c.0.s8 %v980
        %v982 = vlaneseq
        %v983 = vshrl.u32 %v982, 7
        %v984 = vsub.s32 %v981, %v983
        %v985 = vrot.slane %v971, %v984
        %v986 = vcombine.high %v978, %v978
        %v987 = vcombine.high %v985, %v985
        %v989 = vunpack.c.l.s4 1966171168
        %v990 = vunpack.c.0.s8 %v989
        %v991 = vlaneseq
        %v992 = vshrl.u32 %v991, 7
        %v993 = vsub.s32 %v990, %v992
        %v994 = vrot.slane %v978, %v993
        %v996 = vunpack.c.l.s4 1966171168
        %v997 = vunpack.c.0.s8 %v996
        %v998 = vlaneseq
        %v999 = vshrl.u32 %v998, 7
        %v1000 = vsub.s32 %v997, %v999
        %v1001 = vrot.slane %v985, %v1000
        %v1003 = vunpack.c.l.s4 1966171168
        %v1004 = vunpack.c.0.s8 %v1003
        %v1005 = vlaneseq
        %v1006 = vshrl.u32 %v1005, 7
        %v1007 = vsub.s32 %v1004, %v1006
        %v1008 = vrot.slane %v986, %v1007
        %v1010 = vunpack.c.l.s4 1966171168
        %v1011 = vunpack.c.0.s8 %v1010
        %v1012 = vlaneseq
        %v1013 = vshrl.u32 %v1012, 7
        %v1014 = vsub.s32 %v1011, %v1013
        %v1015 = vrot.slane %v987, %v1014
        %v1016 = vcombine.high %v994, %v994
        %v1017 = vcombine.high %v1001, %v1001
        %v1018 = vcombine.high %v1008, %v1008
        %v1019 = vcombine.high %v1015, %v1015
        %v1020 = vcombine.high %v416, %v416
        %v1022 = vunpack.c.l.s4 1966171168
        %v1023 = vunpack.c.0.s8 %v1022
        %v1024 = vlaneseq
        %v1025 = vshrl.u32 %v1024, 7
        %v1026 = vsub.s32 %v1023, %v1025
        %v1027 = vrot.slane %v416, %v1026
        %v1029 = vunpack.c.l.s4 1966171168
        %v1030 = vunpack.c.0.s8 %v1029
        %v1031 = vlaneseq
        %v1032 = vshrl.u32 %v1031, 7
        %v1033 = vsub.s32 %v1030, %v1032
        %v1034 = vrot.slane %v1020, %v1033
        %v1035 = vcombine.high %v1027, %v1027
        %v1036 = vcombine.high %v1034, %v1034
        %v1038 = vunpack.c.l.s4 1966171168
        %v1039 = vunpack.c.0.s8 %v1038
        %v1040 = vlaneseq
        %v1041 = vshrl.u32 %v1040, 7
        %v1042 = vsub.s32 %v1039, %v1041
        %v1043 = vrot.slane %v1027, %v1042
        %v1045 = vunpack.c.l.s4 1966171168
        %v1046 = vunpack.c.0.s8 %v1045
        %v1047 = vlaneseq
        %v1048 = vshrl.u32 %v1047, 7
        %v1049 = vsub.s32 %v1046, %v1048
        %v1050 = vrot.slane %v1034, %v1049
        %v1052 = vunpack.c.l.s4 1966171168
        %v1053 = vunpack.c.0.s8 %v1052
        %v1054 = vlaneseq
        %v1055 = vshrl.u32 %v1054, 7
        %v1056 = vsub.s32 %v1053, %v1055
        %v1057 = vrot.slane %v1035, %v1056
        %v1059 = vunpack.c.l.s4 1966171168
        %v1060 = vunpack.c.0.s8 %v1059
        %v1061 = vlaneseq
        %v1062 = vshrl.u32 %v1061, 7
        %v1063 = vsub.s32 %v1060, %v1062
        %v1064 = vrot.slane %v1036, %v1063
        %v1065 = vcombine.high %v1043, %v1043
        %v1066 = vcombine.high %v1050, %v1050
        %v1067 = vcombine.high %v1057, %v1057
        %v1068 = vcombine.high %v1064, %v1064
        %v1069 = vcombine.high %v417, %v417
        %v1071 = vunpack.c.l.s4 1966171168
        %v1072 = vunpack.c.0.s8 %v1071
        %v1073 = vlaneseq
        %v1074 = vshrl.u32 %v1073, 7
        %v1075 = vsub.s32 %v1072, %v1074
        %v1076 = vrot.slane %v417, %v1075
        %v1078 = vunpack.c.l.s4 1966171168
        %v1079 = vunpack.c.0.s8 %v1078
        %v1080 = vlaneseq
        %v1081 = vshrl.u32 %v1080, 7
        %v1082 = vsub.s32 %v1079, %v1081
        %v1083 = vrot.slane %v1069, %v1082
        %v1084 = vcombine.high %v1076, %v1076
        %v1085 = vcombine.high %v1083, %v1083
        %v1087 = vunpack.c.l.s4 1966171168
        %v1088 = vunpack.c.0.s8 %v1087
        %v1089 = vlaneseq
        %v1090 = vshrl.u32 %v1089, 7
        %v1091 = vsub.s32 %v1088, %v1090
        %v1092 = vrot.slane %v1076, %v1091
        %v1094 = vunpack.c.l.s4 1966171168
        %v1095 = vunpack.c.0.s8 %v1094
        %v1096 = vlaneseq
        %v1097 = vshrl.u32 %v1096, 7
        %v1098 = vsub.s32 %v1095, %v1097
        %v1099 = vrot.slane %v1083, %v1098
        %v1101 = vunpack.c.l.s4 1966171168
        %v1102 = vunpack.c.0.s8 %v1101
        %v1103 = vlaneseq
        %v1104 = vshrl.u32 %v1103, 7
        %v1105 = vsub.s32 %v1102, %v1104
        %v1106 = vrot.slane %v1084, %v1105
        %v1108 = vunpack.c.l.s4 1966171168
        %v1109 = vunpack.c.0.s8 %v1108
        %v1110 = vlaneseq
        %v1111 = vshrl.u32 %v1110, 7
        %v1112 = vsub.s32 %v1109, %v1111
        %v1113 = vrot.slane %v1085, %v1112
        %v1114 = vcombine.high %v1092, %v1092
        %v1115 = vcombine.high %v1099, %v1099
        %v1116 = vcombine.high %v1106, %v1106
        %v1117 = vcombine.high %v1113, %v1113
        %v1119 = vunpack.c.l.s4 1966171168
        %v1120 = vunpack.c.0.s8 %v1119
        %v1121 = vlaneseq
        %v1122 = vshrl.u32 %v1121, 7
        %v1123 = vsub.s32 %v1120, %v1122
        %v1124 = vrot.slane %v418, %v1123
        %v1125 = vcombine.high %v1124, %v1124
        %v1127 = vunpack.c.l.s4 1966171168
        %v1128 = vunpack.c.0.s8 %v1127
        %v1129 = vlaneseq
        %v1130 = vshrl.u32 %v1129, 7
        %v1131 = vsub.s32 %v1128, %v1130
        %v1132 = vrot.slane %v1124, %v1131
        %v1134 = vunpack.c.l.s4 1966171168
        %v1135 = vunpack.c.0.s8 %v1134
        %v1136 = vlaneseq
        %v1137 = vshrl.u32 %v1136, 7
        %v1138 = vsub.s32 %v1135, %v1137
        %v1139 = vrot.slane %v1125, %v1138
        %v1336 = vunpack.c.l.b16 %v419
        %v1337 = vunpack.c.h.b16 %v419
        %v1338 = vunpack.c.l.b16 %v420
        %v1339 = vunpack.c.h.b16 %v420
        %v1340 = vunpack.c.l.b16 %v421
        %v1341 = vunpack.c.h.b16 %v421
        %v1342 = vunpack.c.l.b16 %v422
        %v1343 = vunpack.c.h.b16 %v422
        %v1344 = vunpack.c.l.b16 %v423
        %v1345 = vunpack.c.h.b16 %v423
        %v1346 = vunpack.c.l.b16 %v424
        %v1347 = vunpack.c.h.b16 %v424
        %v1348 = vunpack.c.l.b16 %v425
        %v1349 = vunpack.c.h.b16 %v425
        %v1350 = vunpack.c.l.b16 %v426
        %v1351 = vunpack.c.h.b16 %v426
        %v1352 = vunpack.c.l.b16 %v427
        %v1353 = vunpack.c.h.b16 %v427
        %v1354 = vunpack.c.l.b16 %v428
        %v1355 = vunpack.c.h.b16 %v428
        %v1356 = vunpack.c.l.b16 %v429
        %v1357 = vunpack.c.h.b16 %v429
        %v1358 = vunpack.c.l.b16 %v430
        %v1359 = vunpack.c.h.b16 %v430
        %v1360 = vunpack.c.l.b16 %v431
        %v1361 = vunpack.c.h.b16 %v431
        %v1362 = vunpack.c.l.b16 %v432
        %v1363 = vunpack.c.h.b16 %v432
        %v1364 = vunpack.c.l.b16 %v433
        %v1365 = vunpack.c.h.b16 %v433
        %v1366 = vunpack.c.l.b16 %v434
        %v1367 = vunpack.c.h.b16 %v434
        %v1368 = vunpack.c.l.b16 %v435
        %v1369 = vunpack.c.h.b16 %v435
        %v1370 = vunpack.c.l.b16 %v436
        %v1371 = vunpack.c.h.b16 %v436
        %v1372 = vunpack.c.l.b16 %v437
        %v1373 = vunpack.c.h.b16 %v437
        %v1374 = vunpack.c.l.b16 %v438
        %v1375 = vunpack.c.h.b16 %v438
        %v1376 = vunpack.c.l.b16 %v439
        %v1377 = vunpack.c.h.b16 %v439
        %v1378 = vunpack.c.l.b16 %v440
        %v1379 = vunpack.c.h.b16 %v440
        %v1380 = vunpack.c.l.b16 %v441
        %v1381 = vunpack.c.h.b16 %v441
        %v1382 = vunpack.c.l.b16 %v442
        %v1383 = vunpack.c.h.b16 %v442
        %v1384 = vunpack.c.l.b16 %v443
        %v1385 = vunpack.c.h.b16 %v443
        %v1386 = vunpack.c.l.b16 %v444
        %v1387 = vunpack.c.h.b16 %v444
        %v1388 = vunpack.c.l.b16 %v445
        %v1389 = vunpack.c.h.b16 %v445
        %v1390 = vunpack.c.l.b16 %v446
        %v1391 = vunpack.c.h.b16 %v446
        %v1392 = vunpack.c.l.b16 %v447
        %v1393 = vunpack.c.h.b16 %v447
        %v1394 = vunpack.c.l.b16 %v448
        %v1395 = vunpack.c.h.b16 %v448
        %v1396 = vunpack.c.l.b16 %v449
        %v1397 = vunpack.c.h.b16 %v449
        %v1398 = vunpack.c.l.b16 %v450
        %v1399 = vunpack.c.h.b16 %v450
        %v1400 = vunpack.c.l.b16 %v451
        %v1401 = vunpack.c.h.b16 %v451
        %v1402 = vunpack.c.l.b16 %v452
        %v1403 = vunpack.c.h.b16 %v452
        %v1404 = vunpack.c.l.b16 %v453
        %v1405 = vunpack.c.h.b16 %v453
        %v1406 = vunpack.c.l.b16 %v454
        %v1407 = vunpack.c.h.b16 %v454
        %v1408 = vunpack.c.l.b16 %v455
        %v1409 = vunpack.c.h.b16 %v455
        %v1410 = vunpack.c.l.b16 %v456
        %v1411 = vunpack.c.h.b16 %v456
        %v1412 = vunpack.c.l.b16 %v457
        %v1413 = vunpack.c.h.b16 %v457
        %v1414 = vunpack.c.l.b16 %v458
        %v1415 = vunpack.c.h.b16 %v458
        %v1416 = vunpack.c.l.b16 %v459
        %v1417 = vunpack.c.h.b16 %v459
        %v1418 = vunpack.c.l.b16 %v460
        %v1419 = vunpack.c.h.b16 %v460
        %v1420 = vunpack.c.l.b16 %v461
        %v1421 = vunpack.c.h.b16 %v461
        %v1422 = vunpack.c.l.b16 %v462
        %v1423 = vunpack.c.h.b16 %v462
        %v1424 = vunpack.c.l.b16 %v463
        %v1425 = vunpack.c.h.b16 %v463
        %v1426 = vunpack.c.l.b16 %v464
        %v1427 = vunpack.c.h.b16 %v464
        %v1428 = vunpack.c.l.b16 %v465
        %v1429 = vunpack.c.h.b16 %v465
        %v1430 = vunpack.c.l.b16 %v466
        %v1431 = vunpack.c.h.b16 %v466
        %v1432 = vunpack.c.l.b16 %v467
        %v1433 = vunpack.c.h.b16 %v467
        %v1434 = vunpack.c.l.b16 %v468
        %v1435 = vunpack.c.h.b16 %v468
        %v1436 = vunpack.c.l.b16 %v469
        %v1437 = vunpack.c.h.b16 %v469
        %v1438 = vunpack.c.l.b16 %v470
        %v1439 = vunpack.c.h.b16 %v470
        %v1440 = vunpack.c.l.b16 %v471
        %v1441 = vunpack.c.h.b16 %v471
        %v1442 = vunpack.c.l.b16 %v472
        %v1443 = vunpack.c.h.b16 %v472
        %v1444 = vunpack.c.l.b16 %v473
        %v1445 = vunpack.c.h.b16 %v473
        %v1446 = vunpack.c.l.b16 %v474
        %v1447 = vunpack.c.h.b16 %v474
        %v1448 = vunpack.c.l.b16 %v475
        %v1449 = vunpack.c.h.b16 %v475
        %v1450 = vunpack.c.l.b16 %v476
        %v1451 = vunpack.c.h.b16 %v476
        %v1452 = vunpack.c.l.b16 %v477
        %v1453 = vunpack.c.h.b16 %v477
        %v1454 = vunpack.c.l.b16 %v478
        %v1455 = vunpack.c.h.b16 %v478
        %v1456 = vunpack.c.l.b16 %v479
        %v1457 = vunpack.c.h.b16 %v479
        %v1458 = vunpack.c.l.b16 %v480
        %v1459 = vunpack.c.h.b16 %v480
        %v1460 = vunpack.c.l.b16 %v481
        %v1461 = vunpack.c.h.b16 %v481
        %v1462 = vunpack.c.l.b16 %v482
        %v1463 = vunpack.c.h.b16 %v482
        %v1464 = vunpack.c.l.b16 %v483
        %v1465 = vunpack.c.h.b16 %v483
        %v1466 = vunpack.c.l.b16 %v484
        %v1467 = vunpack.c.h.b16 %v484
        %v1468 = vunpack.c.l.b16 %v485
        %v1469 = vunpack.c.h.b16 %v485
        %v1470 = vunpack.c.l.b16 %v486
        %v1471 = vunpack.c.h.b16 %v486
        %v1472 = vunpack.c.l.b16 %v487
        %v1473 = vunpack.c.h.b16 %v487
        %v1474 = vunpack.c.l.b16 %v488
        %v1475 = vunpack.c.h.b16 %v488
        %v1476 = vunpack.c.l.b16 %v489
        %v1477 = vunpack.c.h.b16 %v489
        %v1478 = vunpack.c.l.b16 %v490
        %v1479 = vunpack.c.h.b16 %v490
        %v1480 = vunpack.c.l.b16 %v491
        %v1481 = vunpack.c.h.b16 %v491
        %v1482 = vunpack.c.l.b16 %v492
        %v1483 = vunpack.c.h.b16 %v492
        %v1484 = vunpack.c.l.b16 %v493
        %v1485 = vunpack.c.h.b16 %v493
        %v1486 = vunpack.c.l.b16 %v494
        %v1487 = vunpack.c.h.b16 %v494
        %v1488 = vunpack.c.l.b16 %v495
        %v1489 = vunpack.c.h.b16 %v495
        %v1490 = vunpack.c.l.b16 %v496
        %v1491 = vunpack.c.h.b16 %v496
        %v1492 = vunpack.c.l.b16 %v497
        %v1493 = vunpack.c.h.b16 %v497
        %v1494 = vunpack.c.l.b16 %v498
        %v1495 = vunpack.c.h.b16 %v498
        %v1496 = vunpack.c.l.b16 %v499
        %v1497 = vunpack.c.h.b16 %v499
        %v1498 = vunpack.c.l.b16 %v500
        %v1499 = vunpack.c.h.b16 %v500
        %v1500 = vunpack.c.l.b16 %v501
        %v1501 = vunpack.c.h.b16 %v501
        %v1502 = vunpack.c.l.b16 %v502
        %v1503 = vunpack.c.h.b16 %v502
        %v1504 = vunpack.c.l.b16 %v503
        %v1505 = vunpack.c.h.b16 %v503
        %v1506 = vunpack.c.l.b16 %v504
        %v1507 = vunpack.c.h.b16 %v504
        %v1508 = vunpack.c.l.b16 %v505
        %v1509 = vunpack.c.h.b16 %v505
        %v1510 = vunpack.c.l.b16 %v506
        %v1511 = vunpack.c.h.b16 %v506
        %v1512 = vunpack.c.l.b16 %v507
        %v1513 = vunpack.c.h.b16 %v507
        %v1514 = vunpack.c.l.b16 %v508
        %v1515 = vunpack.c.h.b16 %v508
        %v1516 = vunpack.c.l.b16 %v509
        %v1517 = vunpack.c.h.b16 %v509
        %v1518 = vunpack.c.l.b16 %v510
        %v1519 = vunpack.c.h.b16 %v510
        %v1520 = vunpack.c.l.b16 %v511
        %v1521 = vunpack.c.h.b16 %v511
        %v1522 = vunpack.c.l.b16 %v512
        %v1523 = vunpack.c.h.b16 %v512
        %v1524 = vunpack.c.l.b16 %v513
        %v1525 = vunpack.c.h.b16 %v513
        %v1526 = vunpack.c.l.b16 %v514
        %v1527 = vunpack.c.h.b16 %v514
        %v1528 = vunpack.c.l.b16 %v515
        %v1529 = vunpack.c.h.b16 %v515
        %v1530 = vunpack.c.l.b16 %v516
        %v1531 = vunpack.c.h.b16 %v516
        %v1532 = vpack.c.b16 %v1434, %v1336
        %v1533 = vpack.c.b16 %v1435, %v1337
        %v1534 = vpack.c.b16 %v1436, %v1338
        %v1535 = vpack.c.b16 %v1437, %v1339
        %v1536 = vpack.c.b16 %v1438, %v1340
        %v1537 = vpack.c.b16 %v1439, %v1341
        %v1538 = vpack.c.b16 %v1440, %v1342
        %v1539 = vpack.c.b16 %v1441, %v1343
        %v1540 = vpack.c.b16 %v1442, %v1344
        %v1541 = vpack.c.b16 %v1443, %v1345
        %v1542 = vpack.c.b16 %v1444, %v1346
        %v1543 = vpack.c.b16 %v1445, %v1347
        %v1544 = vpack.c.b16 %v1446, %v1348
        %v1545 = vpack.c.b16 %v1447, %v1349
        %v1546 = vpack.c.b16 %v1448, %v1350
        %v1547 = vpack.c.b16 %v1449, %v1351
        %v1548 = vpack.c.b16 %v1450, %v1352
        %v1549 = vpack.c.b16 %v1451, %v1353
        %v1550 = vpack.c.b16 %v1452, %v1354
        %v1551 = vpack.c.b16 %v1453, %v1355
        %v1552 = vpack.c.b16 %v1454, %v1356
        %v1553 = vpack.c.b16 %v1455, %v1357
        %v1554 = vpack.c.b16 %v1456, %v1358
        %v1555 = vpack.c.b16 %v1457, %v1359
        %v1556 = vpack.c.b16 %v1458, %v1360
        %v1557 = vpack.c.b16 %v1459, %v1361
        %v1558 = vpack.c.b16 %v1460, %v1362
        %v1559 = vpack.c.b16 %v1461, %v1363
        %v1560 = vpack.c.b16 %v1462, %v1364
        %v1561 = vpack.c.b16 %v1463, %v1365
        %v1562 = vpack.c.b16 %v1464, %v1366
        %v1563 = vpack.c.b16 %v1465, %v1367
        %v1564 = vpack.c.b16 %v1466, %v1368
        %v1565 = vpack.c.b16 %v1467, %v1369
        %v1566 = vpack.c.b16 %v1468, %v1370
        %v1567 = vpack.c.b16 %v1469, %v1371
        %v1568 = vpack.c.b16 %v1470, %v1372
        %v1569 = vpack.c.b16 %v1471, %v1373
        %v1570 = vpack.c.b16 %v1472, %v1374
        %v1571 = vpack.c.b16 %v1473, %v1375
        %v1572 = vpack.c.b16 %v1474, %v1376
        %v1573 = vpack.c.b16 %v1475, %v1377
        %v1574 = vpack.c.b16 %v1476, %v1378
        %v1575 = vpack.c.b16 %v1477, %v1379
        %v1576 = vpack.c.b16 %v1478, %v1380
        %v1577 = vpack.c.b16 %v1479, %v1381
        %v1578 = vpack.c.b16 %v1480, %v1382
        %v1579 = vpack.c.b16 %v1481, %v1383
        %v1580 = vpack.c.b16 %v1482, %v1384
        %v1581 = vpack.c.b16 %v1483, %v1385
        %v1582 = vpack.c.b16 %v1484, %v1386
        %v1583 = vpack.c.b16 %v1485, %v1387
        %v1584 = vpack.c.b16 %v1486, %v1388
        %v1585 = vpack.c.b16 %v1487, %v1389
        %v1586 = vpack.c.b16 %v1488, %v1390
        %v1587 = vpack.c.b16 %v1489, %v1391
        %v1588 = vpack.c.b16 %v1490, %v1392
        %v1589 = vpack.c.b16 %v1491, %v1393
        %v1590 = vpack.c.b16 %v1492, %v1394
        %v1591 = vpack.c.b16 %v1493, %v1395
        %v1592 = vpack.c.b16 %v1494, %v1396
        %v1593 = vpack.c.b16 %v1495, %v1397
        %v1594 = vpack.c.b16 %v1496, %v1398
        %v1595 = vpack.c.b16 %v1497, %v1399
        %v1596 = vpack.c.b16 %v1498, %v1400
        %v1597 = vpack.c.b16 %v1499, %v1401
        %v1598 = vpack.c.b16 %v1500, %v1402
        %v1599 = vpack.c.b16 %v1501, %v1403
        %v1600 = vpack.c.b16 %v1502, %v1404
        %v1601 = vpack.c.b16 %v1503, %v1405
        %v1602 = vpack.c.b16 %v1504, %v1406
        %v1603 = vpack.c.b16 %v1505, %v1407
        %v1604 = vpack.c.b16 %v1506, %v1408
        %v1605 = vpack.c.b16 %v1507, %v1409
        %v1606 = vpack.c.b16 %v1508, %v1410
        %v1607 = vpack.c.b16 %v1509, %v1411
        %v1608 = vpack.c.b16 %v1510, %v1412
        %v1609 = vpack.c.b16 %v1511, %v1413
        %v1610 = vpack.c.b16 %v1512, %v1414
        %v1611 = vpack.c.b16 %v1513, %v1415
        %v1612 = vpack.c.b16 %v1514, %v1416
        %v1613 = vpack.c.b16 %v1515, %v1417
        %v1614 = vpack.c.b16 %v1516, %v1418
        %v1615 = vpack.c.b16 %v1517, %v1419
        %v1616 = vpack.c.b16 %v1518, %v1420
        %v1617 = vpack.c.b16 %v1519, %v1421
        %v1618 = vpack.c.b16 %v1520, %v1422
        %v1619 = vpack.c.b16 %v1521, %v1423
        %v1620 = vpack.c.b16 %v1522, %v1424
        %v1621 = vpack.c.b16 %v1523, %v1425
        %v1622 = vpack.c.b16 %v1524, %v1426
        %v1623 = vpack.c.b16 %v1525, %v1427
        %v1624 = vpack.c.b16 %v1526, %v1428
        %v1625 = vpack.c.b16 %v1527, %v1429
        %v1626 = vpack.c.b16 %v1528, %v1430
        %v1627 = vpack.c.b16 %v1529, %v1431
        %v1628 = vpack.c.b16 %v1530, %v1432
        %v1629 = vpack.c.b16 %v1531, %v1433
        %1728 = vmatprep.subr.bf16.mxu0 0
        %1729 = vmatpush1.bf16.xpose.msra.mxu0 0
        %1730 = vmatprep.subr.bf16.mxu0 0
        %1731 = vmatpush1.bf16.xpose.msra.mxu0 0
        %1732 = vmatprep.subr.bf16.mxu0 0
        %1733 = vmatpush1.bf16.xpose.msra.mxu0 0
        %1734 = vmatprep.subr.bf16.mxu0 0
        %1735 = vmatpush1.bf16.xpose.msra.mxu0 0
        %1736 = vmatprep.subr.bf16.mxu0 0
        %1737 = vmatpush1.bf16.xpose.msra.mxu0 0
        %1738 = vmatprep.subr.bf16.mxu0 0
        %1739 = vmatpush1.bf16.xpose.msra.mxu0 0
        %1740 = vmatprep.subr.bf16.mxu0 0
        %1741 = vmatpush1.bf16.xpose.msra.mxu0 0
        %1742 = vmatprep.subr.bf16.mxu0 %v1533
        %1743 = vmatpush1.bf16.xpose.msra.mxu0 %v1532
        %1744 = vmatprep.subr.bf16.mxu0 0
        %1745 = vmatpush2.bf16.xpose.msra.mxu0 0
        %1746 = vmatprep.subr.bf16.mxu0 0
        %1747 = vmatpush2.bf16.xpose.msra.mxu0 0
        %1748 = vmatprep.subr.bf16.mxu0 0
        %1749 = vmatpush2.bf16.xpose.msra.mxu0 0
        %1750 = vmatprep.subr.bf16.mxu0 0
        %1751 = vmatpush2.bf16.xpose.msra.mxu0 0
        %1752 = vmatprep.subr.bf16.mxu0 0
        %1753 = vmatpush2.bf16.xpose.msra.mxu0 0
        %1754 = vmatprep.subr.bf16.mxu0 0
        %1755 = vmatpush2.bf16.xpose.msra.mxu0 0
        %1756 = vmatprep.subr.bf16.mxu0 0
        %1757 = vmatpush2.bf16.xpose.msra.mxu0 0
        %1758 = vmatprep.subr.bf16.mxu0 0
        %1759 = vmatpush2.bf16.xpose.msra.mxu0 0
        %1760 = vmatprep.mubr.bf16.mxu0 %v567
        %1761 = vmatmul.mubr.bf16.gmra.mxu0 %v553
        %v1762 = vpop.f32.mrf.mxu0
        %v1763 = vadd.f32 0.0, %v1762
        %v1764 = vpop.f32.mrf.mxu0
        %v1765 = vpop.f32.mrf.mxu0
        %v1766 = vpop.f32.mrf.mxu0
        %1767 = vdwg.mxu0
        %1768 = vmatprep.subr.bf16.mxu0 0
        %1769 = vmatpush1.bf16.xpose.msra.mxu0 0
        %1770 = vmatprep.subr.bf16.mxu0 0
        %1771 = vmatpush1.bf16.xpose.msra.mxu0 0
        %1772 = vmatprep.subr.bf16.mxu0 0
        %1773 = vmatpush1.bf16.xpose.msra.mxu0 0
        %1774 = vmatprep.subr.bf16.mxu0 0
        %1775 = vmatpush1.bf16.xpose.msra.mxu0 0
        %1776 = vmatprep.subr.bf16.mxu0 0
        %1777 = vmatpush1.bf16.xpose.msra.mxu0 0
        %1778 = vmatprep.subr.bf16.mxu0 0
        %1779 = vmatpush1.bf16.xpose.msra.mxu0 0
        %1780 = vmatprep.subr.bf16.mxu0 0
        %1781 = vmatpush1.bf16.xpose.msra.mxu0 0
        %1782 = vmatprep.subr.bf16.mxu0 %v1535
        %1783 = vmatpush1.bf16.xpose.msra.mxu0 %v1534
        %1784 = vmatprep.subr.bf16.mxu0 0
        %1785 = vmatpush2.bf16.xpose.msra.mxu0 0
        %1786 = vmatprep.subr.bf16.mxu0 0
        %1787 = vmatpush2.bf16.xpose.msra.mxu0 0
        %1788 = vmatprep.subr.bf16.mxu0 0
        %1789 = vmatpush2.bf16.xpose.msra.mxu0 0
        %1790 = vmatprep.subr.bf16.mxu0 0
        %1791 = vmatpush2.bf16.xpose.msra.mxu0 0
        %1792 = vmatprep.subr.bf16.mxu0 0
        %1793 = vmatpush2.bf16.xpose.msra.mxu0 0
        %1794 = vmatprep.subr.bf16.mxu0 0
        %1795 = vmatpush2.bf16.xpose.msra.mxu0 0
        %1796 = vmatprep.subr.bf16.mxu0 0
        %1797 = vmatpush2.bf16.xpose.msra.mxu0 0
        %1798 = vmatprep.subr.bf16.mxu0 0
        %1799 = vmatpush2.bf16.xpose.msra.mxu0 0
        %1800 = vmatprep.mubr.bf16.mxu0 %v577
        %1801 = vmatmul.mubr.bf16.gmra.mxu0 %v575
        %v1802 = vpop.f32.mrf.mxu0
        %v1803 = vadd.f32 %v1763, %v1802
        %v1804 = vpop.f32.mrf.mxu0
        %v1805 = vpop.f32.mrf.mxu0
        %v1806 = vpop.f32.mrf.mxu0
        %1807 = vdwg.mxu0
        %1808 = vmatprep.subr.bf16.mxu0 0
        %1809 = vmatpush1.bf16.xpose.msra.mxu0 0
        %1810 = vmatprep.subr.bf16.mxu0 0
        %1811 = vmatpush1.bf16.xpose.msra.mxu0 0
        %1812 = vmatprep.subr.bf16.mxu0 0
        %1813 = vmatpush1.bf16.xpose.msra.mxu0 0
        %1814 = vmatprep.subr.bf16.mxu0 0
        %1815 = vmatpush1.bf16.xpose.msra.mxu0 0
        %1816 = vmatprep.subr.bf16.mxu0 0
        %1817 = vmatpush1.bf16.xpose.msra.mxu0 0
        %1818 = vmatprep.subr.bf16.mxu0 0
        %1819 = vmatpush1.bf16.xpose.msra.mxu0 0
        %1820 = vmatprep.subr.bf16.mxu0 0
        %1821 = vmatpush1.bf16.xpose.msra.mxu0 0
        %1822 = vmatprep.subr.bf16.mxu0 %v1537
        %1823 = vmatpush1.bf16.xpose.msra.mxu0 %v1536
        %1824 = vmatprep.subr.bf16.mxu0 0
        %1825 = vmatpush2.bf16.xpose.msra.mxu0 0
        %1826 = vmatprep.subr.bf16.mxu0 0
        %1827 = vmatpush2.bf16.xpose.msra.mxu0 0
        %1828 = vmatprep.subr.bf16.mxu0 0
        %1829 = vmatpush2.bf16.xpose.msra.mxu0 0
        %1830 = vmatprep.subr.bf16.mxu0 0
        %1831 = vmatpush2.bf16.xpose.msra.mxu0 0
        %1832 = vmatprep.subr.bf16.mxu0 0
        %1833 = vmatpush2.bf16.xpose.msra.mxu0 0
        %1834 = vmatprep.subr.bf16.mxu0 0
        %1835 = vmatpush2.bf16.xpose.msra.mxu0 0
        %1836 = vmatprep.subr.bf16.mxu0 0
        %1837 = vmatpush2.bf16.xpose.msra.mxu0 0
        %1838 = vmatprep.subr.bf16.mxu0 0
        %1839 = vmatpush2.bf16.xpose.msra.mxu0 0
        %1840 = vmatprep.mubr.bf16.mxu0 %v574
        %1841 = vmatmul.mubr.bf16.gmra.mxu0 %v560
        %v1842 = vpop.f32.mrf.mxu0
        %v1843 = vadd.f32 %v1803, %v1842
        %v1844 = vpop.f32.mrf.mxu0
        %v1845 = vpop.f32.mrf.mxu0
        %v1846 = vpop.f32.mrf.mxu0
        %1847 = vdwg.mxu0
        %1848 = vmatprep.subr.bf16.mxu0 0
        %1849 = vmatpush1.bf16.xpose.msra.mxu0 0
        %1850 = vmatprep.subr.bf16.mxu0 0
        %1851 = vmatpush1.bf16.xpose.msra.mxu0 0
        %1852 = vmatprep.subr.bf16.mxu0 0
        %1853 = vmatpush1.bf16.xpose.msra.mxu0 0
        %1854 = vmatprep.subr.bf16.mxu0 0
        %1855 = vmatpush1.bf16.xpose.msra.mxu0 0
        %1856 = vmatprep.subr.bf16.mxu0 0
        %1857 = vmatpush1.bf16.xpose.msra.mxu0 0
        %1858 = vmatprep.subr.bf16.mxu0 0
        %1859 = vmatpush1.bf16.xpose.msra.mxu0 0
        %1860 = vmatprep.subr.bf16.mxu0 0
        %1861 = vmatpush1.bf16.xpose.msra.mxu0 0
        %1862 = vmatprep.subr.bf16.mxu0 %v1539
        %1863 = vmatpush1.bf16.xpose.msra.mxu0 %v1538
        %1864 = vmatprep.subr.bf16.mxu0 0
        %1865 = vmatpush2.bf16.xpose.msra.mxu0 0
        %1866 = vmatprep.subr.bf16.mxu0 0
        %1867 = vmatpush2.bf16.xpose.msra.mxu0 0
        %1868 = vmatprep.subr.bf16.mxu0 0
        %1869 = vmatpush2.bf16.xpose.msra.mxu0 0
        %1870 = vmatprep.subr.bf16.mxu0 0
        %1871 = vmatpush2.bf16.xpose.msra.mxu0 0
        %1872 = vmatprep.subr.bf16.mxu0 0
        %1873 = vmatpush2.bf16.xpose.msra.mxu0 0
        %1874 = vmatprep.subr.bf16.mxu0 0
        %1875 = vmatpush2.bf16.xpose.msra.mxu0 0
        %1876 = vmatprep.subr.bf16.mxu0 0
        %1877 = vmatpush2.bf16.xpose.msra.mxu0 0
        %1878 = vmatprep.subr.bf16.mxu0 0
        %1879 = vmatpush2.bf16.xpose.msra.mxu0 0
        %1880 = vmatprep.mubr.bf16.mxu0 %v578
        %1881 = vmatmul.mubr.bf16.gmra.mxu0 %v576
        %v1882 = vpop.f32.mrf.mxu0
        %v1883 = vadd.f32 %v1843, %v1882
        %v1884 = vpop.f32.mrf.mxu0
        %v1885 = vpop.f32.mrf.mxu0
        %v1886 = vpop.f32.mrf.mxu0
        %1887 = vdwg.mxu0
        %1888 = vmatprep.subr.bf16.mxu0 0
        %1889 = vmatpush1.bf16.xpose.msra.mxu0 0
        %1890 = vmatprep.subr.bf16.mxu0 0
        %1891 = vmatpush1.bf16.xpose.msra.mxu0 0
        %1892 = vmatprep.subr.bf16.mxu0 0
        %1893 = vmatpush1.bf16.xpose.msra.mxu0 0
        %1894 = vmatprep.subr.bf16.mxu0 0
        %1895 = vmatpush1.bf16.xpose.msra.mxu0 0
        %1896 = vmatprep.subr.bf16.mxu0 0
        %1897 = vmatpush1.bf16.xpose.msra.mxu0 0
        %1898 = vmatprep.subr.bf16.mxu0 0
        %1899 = vmatpush1.bf16.xpose.msra.mxu0 0
        %1900 = vmatprep.subr.bf16.mxu0 0
        %1901 = vmatpush1.bf16.xpose.msra.mxu0 0
        %1902 = vmatprep.subr.bf16.mxu0 %v1541
        %1903 = vmatpush1.bf16.xpose.msra.mxu0 %v1540
        %1904 = vmatprep.subr.bf16.mxu0 0
        %1905 = vmatpush2.bf16.xpose.msra.mxu0 0
        %1906 = vmatprep.subr.bf16.mxu0 0
        %1907 = vmatpush2.bf16.xpose.msra.mxu0 0
        %1908 = vmatprep.subr.bf16.mxu0 0
        %1909 = vmatpush2.bf16.xpose.msra.mxu0 0
        %1910 = vmatprep.subr.bf16.mxu0 0
        %1911 = vmatpush2.bf16.xpose.msra.mxu0 0
        %1912 = vmatprep.subr.bf16.mxu0 0
        %1913 = vmatpush2.bf16.xpose.msra.mxu0 0
        %1914 = vmatprep.subr.bf16.mxu0 0
        %1915 = vmatpush2.bf16.xpose.msra.mxu0 0
        %1916 = vmatprep.subr.bf16.mxu0 0
        %1917 = vmatpush2.bf16.xpose.msra.mxu0 0
        %1918 = vmatprep.subr.bf16.mxu0 0
        %1919 = vmatpush2.bf16.xpose.msra.mxu0 0
        %1920 = vmatprep.mubr.bf16.mxu0 %v616
        %1921 = vmatmul.mubr.bf16.gmra.mxu0 %v602
        %v1922 = vpop.f32.mrf.mxu0
        %v1923 = vadd.f32 %v1883, %v1922
        %v1924 = vpop.f32.mrf.mxu0
        %v1925 = vpop.f32.mrf.mxu0
        %v1926 = vpop.f32.mrf.mxu0
        %1927 = vdwg.mxu0
        %1928 = vmatprep.subr.bf16.mxu0 0
        %1929 = vmatpush1.bf16.xpose.msra.mxu0 0
        %1930 = vmatprep.subr.bf16.mxu0 0
        %1931 = vmatpush1.bf16.xpose.msra.mxu0 0
        %1932 = vmatprep.subr.bf16.mxu0 0
        %1933 = vmatpush1.bf16.xpose.msra.mxu0 0
        %1934 = vmatprep.subr.bf16.mxu0 0
        %1935 = vmatpush1.bf16.xpose.msra.mxu0 0
        %1936 = vmatprep.subr.bf16.mxu0 0
        %1937 = vmatpush1.bf16.xpose.msra.mxu0 0
        %1938 = vmatprep.subr.bf16.mxu0 0
        %1939 = vmatpush1.bf16.xpose.msra.mxu0 0
        %1940 = vmatprep.subr.bf16.mxu0 0
        %1941 = vmatpush1.bf16.xpose.msra.mxu0 0
        %1942 = vmatprep.subr.bf16.mxu0 %v1543
        %1943 = vmatpush1.bf16.xpose.msra.mxu0 %v1542
        %1944 = vmatprep.subr.bf16.mxu0 0
        %1945 = vmatpush2.bf16.xpose.msra.mxu0 0
        %1946 = vmatprep.subr.bf16.mxu0 0
        %1947 = vmatpush2.bf16.xpose.msra.mxu0 0
        %1948 = vmatprep.subr.bf16.mxu0 0
        %1949 = vmatpush2.bf16.xpose.msra.mxu0 0
        %1950 = vmatprep.subr.bf16.mxu0 0
        %1951 = vmatpush2.bf16.xpose.msra.mxu0 0
        %1952 = vmatprep.subr.bf16.mxu0 0
        %1953 = vmatpush2.bf16.xpose.msra.mxu0 0
        %1954 = vmatprep.subr.bf16.mxu0 0
        %1955 = vmatpush2.bf16.xpose.msra.mxu0 0
        %1956 = vmatprep.subr.bf16.mxu0 0
        %1957 = vmatpush2.bf16.xpose.msra.mxu0 0
        %1958 = vmatprep.subr.bf16.mxu0 0
        %1959 = vmatpush2.bf16.xpose.msra.mxu0 0
        %1960 = vmatprep.mubr.bf16.mxu0 %v626
        %1961 = vmatmul.mubr.bf16.gmra.mxu0 %v624
        %v1962 = vpop.f32.mrf.mxu0
        %v1963 = vadd.f32 %v1923, %v1962
        %v1964 = vpop.f32.mrf.mxu0
        %v1965 = vpop.f32.mrf.mxu0
        %v1966 = vpop.f32.mrf.mxu0
        %1967 = vdwg.mxu0
        %1968 = vmatprep.subr.bf16.mxu0 0
        %1969 = vmatpush1.bf16.xpose.msra.mxu0 0
        %1970 = vmatprep.subr.bf16.mxu0 0
        %1971 = vmatpush1.bf16.xpose.msra.mxu0 0
        %1972 = vmatprep.subr.bf16.mxu0 0
        %1973 = vmatpush1.bf16.xpose.msra.mxu0 0
        %1974 = vmatprep.subr.bf16.mxu0 0
        %1975 = vmatpush1.bf16.xpose.msra.mxu0 0
        %1976 = vmatprep.subr.bf16.mxu0 0
        %1977 = vmatpush1.bf16.xpose.msra.mxu0 0
        %1978 = vmatprep.subr.bf16.mxu0 0
        %1979 = vmatpush1.bf16.xpose.msra.mxu0 0
        %1980 = vmatprep.subr.bf16.mxu0 0
        %1981 = vmatpush1.bf16.xpose.msra.mxu0 0
        %1982 = vmatprep.subr.bf16.mxu0 %v1545
        %1983 = vmatpush1.bf16.xpose.msra.mxu0 %v1544
        %1984 = vmatprep.subr.bf16.mxu0 0
        %1985 = vmatpush2.bf16.xpose.msra.mxu0 0
        %1986 = vmatprep.subr.bf16.mxu0 0
        %1987 = vmatpush2.bf16.xpose.msra.mxu0 0
        %1988 = vmatprep.subr.bf16.mxu0 0
        %1989 = vmatpush2.bf16.xpose.msra.mxu0 0
        %1990 = vmatprep.subr.bf16.mxu0 0
        %1991 = vmatpush2.bf16.xpose.msra.mxu0 0
        %1992 = vmatprep.subr.bf16.mxu0 0
        %1993 = vmatpush2.bf16.xpose.msra.mxu0 0
        %1994 = vmatprep.subr.bf16.mxu0 0
        %1995 = vmatpush2.bf16.xpose.msra.mxu0 0
        %1996 = vmatprep.subr.bf16.mxu0 0
        %1997 = vmatpush2.bf16.xpose.msra.mxu0 0
        %1998 = vmatprep.subr.bf16.mxu0 0
        %1999 = vmatpush2.bf16.xpose.msra.mxu0 0
        %2000 = vmatprep.mubr.bf16.mxu0 %v623
        %2001 = vmatmul.mubr.bf16.gmra.mxu0 %v609
        %v2002 = vpop.f32.mrf.mxu0
        %v2003 = vadd.f32 %v1963, %v2002
        %v2004 = vpop.f32.mrf.mxu0
        %v2005 = vpop.f32.mrf.mxu0
        %v2006 = vpop.f32.mrf.mxu0
        %2007 = vdwg.mxu0
        %2008 = vmatprep.subr.bf16.mxu0 0
        %2009 = vmatpush1.bf16.xpose.msra.mxu0 0
        %2010 = vmatprep.subr.bf16.mxu0 0
        %2011 = vmatpush1.bf16.xpose.msra.mxu0 0
        %2012 = vmatprep.subr.bf16.mxu0 0
        %2013 = vmatpush1.bf16.xpose.msra.mxu0 0
        %2014 = vmatprep.subr.bf16.mxu0 0
        %2015 = vmatpush1.bf16.xpose.msra.mxu0 0
        %2016 = vmatprep.subr.bf16.mxu0 0
        %2017 = vmatpush1.bf16.xpose.msra.mxu0 0
        %2018 = vmatprep.subr.bf16.mxu0 0
        %2019 = vmatpush1.bf16.xpose.msra.mxu0 0
        %2020 = vmatprep.subr.bf16.mxu0 0
        %2021 = vmatpush1.bf16.xpose.msra.mxu0 0
        %2022 = vmatprep.subr.bf16.mxu0 %v1547
        %2023 = vmatpush1.bf16.xpose.msra.mxu0 %v1546
        %2024 = vmatprep.subr.bf16.mxu0 0
        %2025 = vmatpush2.bf16.xpose.msra.mxu0 0
        %2026 = vmatprep.subr.bf16.mxu0 0
        %2027 = vmatpush2.bf16.xpose.msra.mxu0 0
        %2028 = vmatprep.subr.bf16.mxu0 0
        %2029 = vmatpush2.bf16.xpose.msra.mxu0 0
        %2030 = vmatprep.subr.bf16.mxu0 0
        %2031 = vmatpush2.bf16.xpose.msra.mxu0 0
        %2032 = vmatprep.subr.bf16.mxu0 0
        %2033 = vmatpush2.bf16.xpose.msra.mxu0 0
        %2034 = vmatprep.subr.bf16.mxu0 0
        %2035 = vmatpush2.bf16.xpose.msra.mxu0 0
        %2036 = vmatprep.subr.bf16.mxu0 0
        %2037 = vmatpush2.bf16.xpose.msra.mxu0 0
        %2038 = vmatprep.subr.bf16.mxu0 0
        %2039 = vmatpush2.bf16.xpose.msra.mxu0 0
        %2040 = vmatprep.mubr.bf16.mxu0 %v627
        %2041 = vmatmul.mubr.bf16.gmra.mxu0 %v625
        %v2042 = vpop.f32.mrf.mxu0
        %v2043 = vadd.f32 %v2003, %v2042
        %v2044 = vpop.f32.mrf.mxu0
        %v2045 = vpop.f32.mrf.mxu0
        %v2046 = vpop.f32.mrf.mxu0
        %2047 = vdwg.mxu0
        %2048 = vmatprep.subr.bf16.mxu0 0
        %2049 = vmatpush1.bf16.xpose.msra.mxu0 0
        %2050 = vmatprep.subr.bf16.mxu0 0
        %2051 = vmatpush1.bf16.xpose.msra.mxu0 0
        %2052 = vmatprep.subr.bf16.mxu0 0
        %2053 = vmatpush1.bf16.xpose.msra.mxu0 0
        %2054 = vmatprep.subr.bf16.mxu0 0
        %2055 = vmatpush1.bf16.xpose.msra.mxu0 0
        %2056 = vmatprep.subr.bf16.mxu0 0
        %2057 = vmatpush1.bf16.xpose.msra.mxu0 0
        %2058 = vmatprep.subr.bf16.mxu0 0
        %2059 = vmatpush1.bf16.xpose.msra.mxu0 0
        %2060 = vmatprep.subr.bf16.mxu0 0
        %2061 = vmatpush1.bf16.xpose.msra.mxu0 0
        %2062 = vmatprep.subr.bf16.mxu0 %v1549
        %2063 = vmatpush1.bf16.xpose.msra.mxu0 %v1548
        %2064 = vmatprep.subr.bf16.mxu0 0
        %2065 = vmatpush2.bf16.xpose.msra.mxu0 0
        %2066 = vmatprep.subr.bf16.mxu0 0
        %2067 = vmatpush2.bf16.xpose.msra.mxu0 0
        %2068 = vmatprep.subr.bf16.mxu0 0
        %2069 = vmatpush2.bf16.xpose.msra.mxu0 0
        %2070 = vmatprep.subr.bf16.mxu0 0
        %2071 = vmatpush2.bf16.xpose.msra.mxu0 0
        %2072 = vmatprep.subr.bf16.mxu0 0
        %2073 = vmatpush2.bf16.xpose.msra.mxu0 0
        %2074 = vmatprep.subr.bf16.mxu0 0
        %2075 = vmatpush2.bf16.xpose.msra.mxu0 0
        %2076 = vmatprep.subr.bf16.mxu0 0
        %2077 = vmatpush2.bf16.xpose.msra.mxu0 0
        %2078 = vmatprep.subr.bf16.mxu0 0
        %2079 = vmatpush2.bf16.xpose.msra.mxu0 0
        %2080 = vmatprep.mubr.bf16.mxu0 %v665
        %2081 = vmatmul.mubr.bf16.gmra.mxu0 %v651
        %v2082 = vpop.f32.mrf.mxu0
        %v2083 = vadd.f32 %v2043, %v2082
        %v2084 = vpop.f32.mrf.mxu0
        %v2085 = vpop.f32.mrf.mxu0
        %v2086 = vpop.f32.mrf.mxu0
        %2087 = vdwg.mxu0
        %2088 = vmatprep.subr.bf16.mxu0 0
        %2089 = vmatpush1.bf16.xpose.msra.mxu0 0
        %2090 = vmatprep.subr.bf16.mxu0 0
        %2091 = vmatpush1.bf16.xpose.msra.mxu0 0
        %2092 = vmatprep.subr.bf16.mxu0 0
        %2093 = vmatpush1.bf16.xpose.msra.mxu0 0
        %2094 = vmatprep.subr.bf16.mxu0 0
        %2095 = vmatpush1.bf16.xpose.msra.mxu0 0
        %2096 = vmatprep.subr.bf16.mxu0 0
        %2097 = vmatpush1.bf16.xpose.msra.mxu0 0
        %2098 = vmatprep.subr.bf16.mxu0 0
        %2099 = vmatpush1.bf16.xpose.msra.mxu0 0
        %2100 = vmatprep.subr.bf16.mxu0 0
        %2101 = vmatpush1.bf16.xpose.msra.mxu0 0
        %2102 = vmatprep.subr.bf16.mxu0 %v1551
        %2103 = vmatpush1.bf16.xpose.msra.mxu0 %v1550
        %2104 = vmatprep.subr.bf16.mxu0 0
        %2105 = vmatpush2.bf16.xpose.msra.mxu0 0
        %2106 = vmatprep.subr.bf16.mxu0 0
        %2107 = vmatpush2.bf16.xpose.msra.mxu0 0
        %2108 = vmatprep.subr.bf16.mxu0 0
        %2109 = vmatpush2.bf16.xpose.msra.mxu0 0
        %2110 = vmatprep.subr.bf16.mxu0 0
        %2111 = vmatpush2.bf16.xpose.msra.mxu0 0
        %2112 = vmatprep.subr.bf16.mxu0 0
        %2113 = vmatpush2.bf16.xpose.msra.mxu0 0
        %2114 = vmatprep.subr.bf16.mxu0 0
        %2115 = vmatpush2.bf16.xpose.msra.mxu0 0
        %2116 = vmatprep.subr.bf16.mxu0 0
        %2117 = vmatpush2.bf16.xpose.msra.mxu0 0
        %2118 = vmatprep.subr.bf16.mxu0 0
        %2119 = vmatpush2.bf16.xpose.msra.mxu0 0
        %2120 = vmatprep.mubr.bf16.mxu0 %v675
        %2121 = vmatmul.mubr.bf16.gmra.mxu0 %v673
        %v2122 = vpop.f32.mrf.mxu0
        %v2123 = vadd.f32 %v2083, %v2122
        %v2124 = vpop.f32.mrf.mxu0
        %v2125 = vpop.f32.mrf.mxu0
        %v2126 = vpop.f32.mrf.mxu0
        %2127 = vdwg.mxu0
        %2128 = vmatprep.subr.bf16.mxu0 0
        %2129 = vmatpush1.bf16.xpose.msra.mxu0 0
        %2130 = vmatprep.subr.bf16.mxu0 0
        %2131 = vmatpush1.bf16.xpose.msra.mxu0 0
        %2132 = vmatprep.subr.bf16.mxu0 0
        %2133 = vmatpush1.bf16.xpose.msra.mxu0 0
        %2134 = vmatprep.subr.bf16.mxu0 0
        %2135 = vmatpush1.bf16.xpose.msra.mxu0 0
        %2136 = vmatprep.subr.bf16.mxu0 0
        %2137 = vmatpush1.bf16.xpose.msra.mxu0 0
        %2138 = vmatprep.subr.bf16.mxu0 0
        %2139 = vmatpush1.bf16.xpose.msra.mxu0 0
        %2140 = vmatprep.subr.bf16.mxu0 0
        %2141 = vmatpush1.bf16.xpose.msra.mxu0 0
        %2142 = vmatprep.subr.bf16.mxu0 %v1553
        %2143 = vmatpush1.bf16.xpose.msra.mxu0 %v1552
        %2144 = vmatprep.subr.bf16.mxu0 0
        %2145 = vmatpush2.bf16.xpose.msra.mxu0 0
        %2146 = vmatprep.subr.bf16.mxu0 0
        %2147 = vmatpush2.bf16.xpose.msra.mxu0 0
        %2148 = vmatprep.subr.bf16.mxu0 0
        %2149 = vmatpush2.bf16.xpose.msra.mxu0 0
        %2150 = vmatprep.subr.bf16.mxu0 0
        %2151 = vmatpush2.bf16.xpose.msra.mxu0 0
        %2152 = vmatprep.subr.bf16.mxu0 0
        %2153 = vmatpush2.bf16.xpose.msra.mxu0 0
        %2154 = vmatprep.subr.bf16.mxu0 0
        %2155 = vmatpush2.bf16.xpose.msra.mxu0 0
        %2156 = vmatprep.subr.bf16.mxu0 0
        %2157 = vmatpush2.bf16.xpose.msra.mxu0 0
        %2158 = vmatprep.subr.bf16.mxu0 0
        %2159 = vmatpush2.bf16.xpose.msra.mxu0 0
        %2160 = vmatprep.mubr.bf16.mxu0 %v672
        %2161 = vmatmul.mubr.bf16.gmra.mxu0 %v658
        %v2162 = vpop.f32.mrf.mxu0
        %v2163 = vadd.f32 %v2123, %v2162
        %v2164 = vpop.f32.mrf.mxu0
        %v2165 = vpop.f32.mrf.mxu0
        %v2166 = vpop.f32.mrf.mxu0
        %2167 = vdwg.mxu0
        %2168 = vmatprep.subr.bf16.mxu0 0
        %2169 = vmatpush1.bf16.xpose.msra.mxu0 0
        %2170 = vmatprep.subr.bf16.mxu0 0
        %2171 = vmatpush1.bf16.xpose.msra.mxu0 0
        %2172 = vmatprep.subr.bf16.mxu0 0
        %2173 = vmatpush1.bf16.xpose.msra.mxu0 0
        %2174 = vmatprep.subr.bf16.mxu0 0
        %2175 = vmatpush1.bf16.xpose.msra.mxu0 0
        %2176 = vmatprep.subr.bf16.mxu0 0
        %2177 = vmatpush1.bf16.xpose.msra.mxu0 0
        %2178 = vmatprep.subr.bf16.mxu0 0
        %2179 = vmatpush1.bf16.xpose.msra.mxu0 0
        %2180 = vmatprep.subr.bf16.mxu0 0
        %2181 = vmatpush1.bf16.xpose.msra.mxu0 0
        %2182 = vmatprep.subr.bf16.mxu0 %v1555
        %2183 = vmatpush1.bf16.xpose.msra.mxu0 %v1554
        %2184 = vmatprep.subr.bf16.mxu0 0
        %2185 = vmatpush2.bf16.xpose.msra.mxu0 0
        %2186 = vmatprep.subr.bf16.mxu0 0
        %2187 = vmatpush2.bf16.xpose.msra.mxu0 0
        %2188 = vmatprep.subr.bf16.mxu0 0
        %2189 = vmatpush2.bf16.xpose.msra.mxu0 0
        %2190 = vmatprep.subr.bf16.mxu0 0
        %2191 = vmatpush2.bf16.xpose.msra.mxu0 0
        %2192 = vmatprep.subr.bf16.mxu0 0
        %2193 = vmatpush2.bf16.xpose.msra.mxu0 0
        %2194 = vmatprep.subr.bf16.mxu0 0
        %2195 = vmatpush2.bf16.xpose.msra.mxu0 0
        %2196 = vmatprep.subr.bf16.mxu0 0
        %2197 = vmatpush2.bf16.xpose.msra.mxu0 0
        %2198 = vmatprep.subr.bf16.mxu0 0
        %2199 = vmatpush2.bf16.xpose.msra.mxu0 0
        %2200 = vmatprep.mubr.bf16.mxu0 %v676
        %2201 = vmatmul.mubr.bf16.gmra.mxu0 %v674
        %v2202 = vpop.f32.mrf.mxu0
        %v2203 = vadd.f32 %v2163, %v2202
        %v2204 = vpop.f32.mrf.mxu0
        %v2205 = vpop.f32.mrf.mxu0
        %v2206 = vpop.f32.mrf.mxu0
        %2207 = vdwg.mxu0
        %2208 = vmatprep.subr.bf16.mxu0 0
        %2209 = vmatpush1.bf16.xpose.msra.mxu0 0
        %2210 = vmatprep.subr.bf16.mxu0 0
        %2211 = vmatpush1.bf16.xpose.msra.mxu0 0
        %2212 = vmatprep.subr.bf16.mxu0 0
        %2213 = vmatpush1.bf16.xpose.msra.mxu0 0
        %2214 = vmatprep.subr.bf16.mxu0 0
        %2215 = vmatpush1.bf16.xpose.msra.mxu0 0
        %2216 = vmatprep.subr.bf16.mxu0 0
        %2217 = vmatpush1.bf16.xpose.msra.mxu0 0
        %2218 = vmatprep.subr.bf16.mxu0 0
        %2219 = vmatpush1.bf16.xpose.msra.mxu0 0
        %2220 = vmatprep.subr.bf16.mxu0 0
        %2221 = vmatpush1.bf16.xpose.msra.mxu0 0
        %2222 = vmatprep.subr.bf16.mxu0 %v1557
        %2223 = vmatpush1.bf16.xpose.msra.mxu0 %v1556
        %2224 = vmatprep.subr.bf16.mxu0 0
        %2225 = vmatpush2.bf16.xpose.msra.mxu0 0
        %2226 = vmatprep.subr.bf16.mxu0 0
        %2227 = vmatpush2.bf16.xpose.msra.mxu0 0
        %2228 = vmatprep.subr.bf16.mxu0 0
        %2229 = vmatpush2.bf16.xpose.msra.mxu0 0
        %2230 = vmatprep.subr.bf16.mxu0 0
        %2231 = vmatpush2.bf16.xpose.msra.mxu0 0
        %2232 = vmatprep.subr.bf16.mxu0 0
        %2233 = vmatpush2.bf16.xpose.msra.mxu0 0
        %2234 = vmatprep.subr.bf16.mxu0 0
        %2235 = vmatpush2.bf16.xpose.msra.mxu0 0
        %2236 = vmatprep.subr.bf16.mxu0 0
        %2237 = vmatpush2.bf16.xpose.msra.mxu0 0
        %2238 = vmatprep.subr.bf16.mxu0 0
        %2239 = vmatpush2.bf16.xpose.msra.mxu0 0
        %2240 = vmatprep.mubr.bf16.mxu0 %v714
        %2241 = vmatmul.mubr.bf16.gmra.mxu0 %v700
        %v2242 = vpop.f32.mrf.mxu0
        %v2243 = vadd.f32 %v2203, %v2242
        %v2244 = vpop.f32.mrf.mxu0
        %v2245 = vpop.f32.mrf.mxu0
        %v2246 = vpop.f32.mrf.mxu0
        %2247 = vdwg.mxu0
        %2248 = vmatprep.subr.bf16.mxu0 0
        %2249 = vmatpush1.bf16.xpose.msra.mxu0 0
        %2250 = vmatprep.subr.bf16.mxu0 0
        %2251 = vmatpush1.bf16.xpose.msra.mxu0 0
        %2252 = vmatprep.subr.bf16.mxu0 0
        %2253 = vmatpush1.bf16.xpose.msra.mxu0 0
        %2254 = vmatprep.subr.bf16.mxu0 0
        %2255 = vmatpush1.bf16.xpose.msra.mxu0 0
        %2256 = vmatprep.subr.bf16.mxu0 0
        %2257 = vmatpush1.bf16.xpose.msra.mxu0 0
        %2258 = vmatprep.subr.bf16.mxu0 0
        %2259 = vmatpush1.bf16.xpose.msra.mxu0 0
        %2260 = vmatprep.subr.bf16.mxu0 0
        %2261 = vmatpush1.bf16.xpose.msra.mxu0 0
        %2262 = vmatprep.subr.bf16.mxu0 %v1559
        %2263 = vmatpush1.bf16.xpose.msra.mxu0 %v1558
        %2264 = vmatprep.subr.bf16.mxu0 0
        %2265 = vmatpush2.bf16.xpose.msra.mxu0 0
        %2266 = vmatprep.subr.bf16.mxu0 0
        %2267 = vmatpush2.bf16.xpose.msra.mxu0 0
        %2268 = vmatprep.subr.bf16.mxu0 0
        %2269 = vmatpush2.bf16.xpose.msra.mxu0 0
        %2270 = vmatprep.subr.bf16.mxu0 0
        %2271 = vmatpush2.bf16.xpose.msra.mxu0 0
        %2272 = vmatprep.subr.bf16.mxu0 0
        %2273 = vmatpush2.bf16.xpose.msra.mxu0 0
        %2274 = vmatprep.subr.bf16.mxu0 0
        %2275 = vmatpush2.bf16.xpose.msra.mxu0 0
        %2276 = vmatprep.subr.bf16.mxu0 0
        %2277 = vmatpush2.bf16.xpose.msra.mxu0 0
        %2278 = vmatprep.subr.bf16.mxu0 0
        %2279 = vmatpush2.bf16.xpose.msra.mxu0 0
        %2280 = vmatprep.mubr.bf16.mxu0 %v724
        %2281 = vmatmul.mubr.bf16.gmra.mxu0 %v722
        %v2282 = vpop.f32.mrf.mxu0
        %v2283 = vadd.f32 %v2243, %v2282
        %v2284 = vpop.f32.mrf.mxu0
        %v2285 = vpop.f32.mrf.mxu0
        %v2286 = vpop.f32.mrf.mxu0
        %2287 = vdwg.mxu0
        %2288 = vmatprep.subr.bf16.mxu0 0
        %2289 = vmatpush1.bf16.xpose.msra.mxu0 0
        %2290 = vmatprep.subr.bf16.mxu0 0
        %2291 = vmatpush1.bf16.xpose.msra.mxu0 0
        %2292 = vmatprep.subr.bf16.mxu0 0
        %2293 = vmatpush1.bf16.xpose.msra.mxu0 0
        %2294 = vmatprep.subr.bf16.mxu0 0
        %2295 = vmatpush1.bf16.xpose.msra.mxu0 0
        %2296 = vmatprep.subr.bf16.mxu0 0
        %2297 = vmatpush1.bf16.xpose.msra.mxu0 0
        %2298 = vmatprep.subr.bf16.mxu0 0
        %2299 = vmatpush1.bf16.xpose.msra.mxu0 0
        %2300 = vmatprep.subr.bf16.mxu0 0
        %2301 = vmatpush1.bf16.xpose.msra.mxu0 0
        %2302 = vmatprep.subr.bf16.mxu0 %v1561
        %2303 = vmatpush1.bf16.xpose.msra.mxu0 %v1560
        %2304 = vmatprep.subr.bf16.mxu0 0
        %2305 = vmatpush2.bf16.xpose.msra.mxu0 0
        %2306 = vmatprep.subr.bf16.mxu0 0
        %2307 = vmatpush2.bf16.xpose.msra.mxu0 0
        %2308 = vmatprep.subr.bf16.mxu0 0
        %2309 = vmatpush2.bf16.xpose.msra.mxu0 0
        %2310 = vmatprep.subr.bf16.mxu0 0
        %2311 = vmatpush2.bf16.xpose.msra.mxu0 0
        %2312 = vmatprep.subr.bf16.mxu0 0
        %2313 = vmatpush2.bf16.xpose.msra.mxu0 0
        %2314 = vmatprep.subr.bf16.mxu0 0
        %2315 = vmatpush2.bf16.xpose.msra.mxu0 0
        %2316 = vmatprep.subr.bf16.mxu0 0
        %2317 = vmatpush2.bf16.xpose.msra.mxu0 0
        %2318 = vmatprep.subr.bf16.mxu0 0
        %2319 = vmatpush2.bf16.xpose.msra.mxu0 0
        %2320 = vmatprep.mubr.bf16.mxu0 %v721
        %2321 = vmatmul.mubr.bf16.gmra.mxu0 %v707
        %v2322 = vpop.f32.mrf.mxu0
        %v2323 = vadd.f32 %v2283, %v2322
        %v2324 = vpop.f32.mrf.mxu0
        %v2325 = vpop.f32.mrf.mxu0
        %v2326 = vpop.f32.mrf.mxu0
        %2327 = vdwg.mxu0
        %2328 = vmatprep.subr.bf16.mxu0 0
        %2329 = vmatpush1.bf16.xpose.msra.mxu0 0
        %2330 = vmatprep.subr.bf16.mxu0 0
        %2331 = vmatpush1.bf16.xpose.msra.mxu0 0
        %2332 = vmatprep.subr.bf16.mxu0 0
        %2333 = vmatpush1.bf16.xpose.msra.mxu0 0
        %2334 = vmatprep.subr.bf16.mxu0 0
        %2335 = vmatpush1.bf16.xpose.msra.mxu0 0
        %2336 = vmatprep.subr.bf16.mxu0 0
        %2337 = vmatpush1.bf16.xpose.msra.mxu0 0
        %2338 = vmatprep.subr.bf16.mxu0 0
        %2339 = vmatpush1.bf16.xpose.msra.mxu0 0
        %2340 = vmatprep.subr.bf16.mxu0 0
        %2341 = vmatpush1.bf16.xpose.msra.mxu0 0
        %2342 = vmatprep.subr.bf16.mxu0 %v1563
        %2343 = vmatpush1.bf16.xpose.msra.mxu0 %v1562
        %2344 = vmatprep.subr.bf16.mxu0 0
        %2345 = vmatpush2.bf16.xpose.msra.mxu0 0
        %2346 = vmatprep.subr.bf16.mxu0 0
        %2347 = vmatpush2.bf16.xpose.msra.mxu0 0
        %2348 = vmatprep.subr.bf16.mxu0 0
        %2349 = vmatpush2.bf16.xpose.msra.mxu0 0
        %2350 = vmatprep.subr.bf16.mxu0 0
        %2351 = vmatpush2.bf16.xpose.msra.mxu0 0
        %2352 = vmatprep.subr.bf16.mxu0 0
        %2353 = vmatpush2.bf16.xpose.msra.mxu0 0
        %2354 = vmatprep.subr.bf16.mxu0 0
        %2355 = vmatpush2.bf16.xpose.msra.mxu0 0
        %2356 = vmatprep.subr.bf16.mxu0 0
        %2357 = vmatpush2.bf16.xpose.msra.mxu0 0
        %2358 = vmatprep.subr.bf16.mxu0 0
        %2359 = vmatpush2.bf16.xpose.msra.mxu0 0
        %2360 = vmatprep.mubr.bf16.mxu0 %v725
        %2361 = vmatmul.mubr.bf16.gmra.mxu0 %v723
        %v2362 = vpop.f32.mrf.mxu0
        %v2363 = vadd.f32 %v2323, %v2362
        %v2364 = vpop.f32.mrf.mxu0
        %v2365 = vpop.f32.mrf.mxu0
        %v2366 = vpop.f32.mrf.mxu0
        %2367 = vdwg.mxu0
        %2368 = vmatprep.subr.bf16.mxu0 0
        %2369 = vmatpush1.bf16.xpose.msra.mxu0 0
        %2370 = vmatprep.subr.bf16.mxu0 0
        %2371 = vmatpush1.bf16.xpose.msra.mxu0 0
        %2372 = vmatprep.subr.bf16.mxu0 0
        %2373 = vmatpush1.bf16.xpose.msra.mxu0 0
        %2374 = vmatprep.subr.bf16.mxu0 0
        %2375 = vmatpush1.bf16.xpose.msra.mxu0 0
        %2376 = vmatprep.subr.bf16.mxu0 0
        %2377 = vmatpush1.bf16.xpose.msra.mxu0 0
        %2378 = vmatprep.subr.bf16.mxu0 0
        %2379 = vmatpush1.bf16.xpose.msra.mxu0 0
        %2380 = vmatprep.subr.bf16.mxu0 0
        %2381 = vmatpush1.bf16.xpose.msra.mxu0 0
        %2382 = vmatprep.subr.bf16.mxu0 %v1565
        %2383 = vmatpush1.bf16.xpose.msra.mxu0 %v1564
        %2384 = vmatprep.subr.bf16.mxu0 0
        %2385 = vmatpush2.bf16.xpose.msra.mxu0 0
        %2386 = vmatprep.subr.bf16.mxu0 0
        %2387 = vmatpush2.bf16.xpose.msra.mxu0 0
        %2388 = vmatprep.subr.bf16.mxu0 0
        %2389 = vmatpush2.bf16.xpose.msra.mxu0 0
        %2390 = vmatprep.subr.bf16.mxu0 0
        %2391 = vmatpush2.bf16.xpose.msra.mxu0 0
        %2392 = vmatprep.subr.bf16.mxu0 0
        %2393 = vmatpush2.bf16.xpose.msra.mxu0 0
        %2394 = vmatprep.subr.bf16.mxu0 0
        %2395 = vmatpush2.bf16.xpose.msra.mxu0 0
        %2396 = vmatprep.subr.bf16.mxu0 0
        %2397 = vmatpush2.bf16.xpose.msra.mxu0 0
        %2398 = vmatprep.subr.bf16.mxu0 0
        %2399 = vmatpush2.bf16.xpose.msra.mxu0 0
        %2400 = vmatprep.mubr.bf16.mxu0 %v763
        %2401 = vmatmul.mubr.bf16.gmra.mxu0 %v749
        %v2402 = vpop.f32.mrf.mxu0
        %v2403 = vadd.f32 %v2363, %v2402
        %v2404 = vpop.f32.mrf.mxu0
        %v2405 = vpop.f32.mrf.mxu0
        %v2406 = vpop.f32.mrf.mxu0
        %2407 = vdwg.mxu0
        %2408 = vmatprep.subr.bf16.mxu0 0
        %2409 = vmatpush1.bf16.xpose.msra.mxu0 0
        %2410 = vmatprep.subr.bf16.mxu0 0
        %2411 = vmatpush1.bf16.xpose.msra.mxu0 0
        %2412 = vmatprep.subr.bf16.mxu0 0
        %2413 = vmatpush1.bf16.xpose.msra.mxu0 0
        %2414 = vmatprep.subr.bf16.mxu0 0
        %2415 = vmatpush1.bf16.xpose.msra.mxu0 0
        %2416 = vmatprep.subr.bf16.mxu0 0
        %2417 = vmatpush1.bf16.xpose.msra.mxu0 0
        %2418 = vmatprep.subr.bf16.mxu0 0
        %2419 = vmatpush1.bf16.xpose.msra.mxu0 0
        %2420 = vmatprep.subr.bf16.mxu0 0
        %2421 = vmatpush1.bf16.xpose.msra.mxu0 0
        %2422 = vmatprep.subr.bf16.mxu0 %v1567
        %2423 = vmatpush1.bf16.xpose.msra.mxu0 %v1566
        %2424 = vmatprep.subr.bf16.mxu0 0
        %2425 = vmatpush2.bf16.xpose.msra.mxu0 0
        %2426 = vmatprep.subr.bf16.mxu0 0
        %2427 = vmatpush2.bf16.xpose.msra.mxu0 0
        %2428 = vmatprep.subr.bf16.mxu0 0
        %2429 = vmatpush2.bf16.xpose.msra.mxu0 0
        %2430 = vmatprep.subr.bf16.mxu0 0
        %2431 = vmatpush2.bf16.xpose.msra.mxu0 0
        %2432 = vmatprep.subr.bf16.mxu0 0
        %2433 = vmatpush2.bf16.xpose.msra.mxu0 0
        %2434 = vmatprep.subr.bf16.mxu0 0
        %2435 = vmatpush2.bf16.xpose.msra.mxu0 0
        %2436 = vmatprep.subr.bf16.mxu0 0
        %2437 = vmatpush2.bf16.xpose.msra.mxu0 0
        %2438 = vmatprep.subr.bf16.mxu0 0
        %2439 = vmatpush2.bf16.xpose.msra.mxu0 0
        %2440 = vmatprep.mubr.bf16.mxu0 %v773
        %2441 = vmatmul.mubr.bf16.gmra.mxu0 %v771
        %v2442 = vpop.f32.mrf.mxu0
        %v2443 = vadd.f32 %v2403, %v2442
        %v2444 = vpop.f32.mrf.mxu0
        %v2445 = vpop.f32.mrf.mxu0
        %v2446 = vpop.f32.mrf.mxu0
        %2447 = vdwg.mxu0
        %2448 = vmatprep.subr.bf16.mxu0 0
        %2449 = vmatpush1.bf16.xpose.msra.mxu0 0
        %2450 = vmatprep.subr.bf16.mxu0 0
        %2451 = vmatpush1.bf16.xpose.msra.mxu0 0
        %2452 = vmatprep.subr.bf16.mxu0 0
        %2453 = vmatpush1.bf16.xpose.msra.mxu0 0
        %2454 = vmatprep.subr.bf16.mxu0 0
        %2455 = vmatpush1.bf16.xpose.msra.mxu0 0
        %2456 = vmatprep.subr.bf16.mxu0 0
        %2457 = vmatpush1.bf16.xpose.msra.mxu0 0
        %2458 = vmatprep.subr.bf16.mxu0 0
        %2459 = vmatpush1.bf16.xpose.msra.mxu0 0
        %2460 = vmatprep.subr.bf16.mxu0 0
        %2461 = vmatpush1.bf16.xpose.msra.mxu0 0
        %2462 = vmatprep.subr.bf16.mxu0 %v1569
        %2463 = vmatpush1.bf16.xpose.msra.mxu0 %v1568
        %2464 = vmatprep.subr.bf16.mxu0 0
        %2465 = vmatpush2.bf16.xpose.msra.mxu0 0
        %2466 = vmatprep.subr.bf16.mxu0 0
        %2467 = vmatpush2.bf16.xpose.msra.mxu0 0
        %2468 = vmatprep.subr.bf16.mxu0 0
        %2469 = vmatpush2.bf16.xpose.msra.mxu0 0
        %2470 = vmatprep.subr.bf16.mxu0 0
        %2471 = vmatpush2.bf16.xpose.msra.mxu0 0
        %2472 = vmatprep.subr.bf16.mxu0 0
        %2473 = vmatpush2.bf16.xpose.msra.mxu0 0
        %2474 = vmatprep.subr.bf16.mxu0 0
        %2475 = vmatpush2.bf16.xpose.msra.mxu0 0
        %2476 = vmatprep.subr.bf16.mxu0 0
        %2477 = vmatpush2.bf16.xpose.msra.mxu0 0
        %2478 = vmatprep.subr.bf16.mxu0 0
        %2479 = vmatpush2.bf16.xpose.msra.mxu0 0
        %2480 = vmatprep.mubr.bf16.mxu0 %v770
        %2481 = vmatmul.mubr.bf16.gmra.mxu0 %v756
        %v2482 = vpop.f32.mrf.mxu0
        %v2483 = vadd.f32 %v2443, %v2482
        %v2484 = vpop.f32.mrf.mxu0
        %v2485 = vpop.f32.mrf.mxu0
        %v2486 = vpop.f32.mrf.mxu0
        %2487 = vdwg.mxu0
        %2488 = vmatprep.subr.bf16.mxu0 0
        %2489 = vmatpush1.bf16.xpose.msra.mxu0 0
        %2490 = vmatprep.subr.bf16.mxu0 0
        %2491 = vmatpush1.bf16.xpose.msra.mxu0 0
        %2492 = vmatprep.subr.bf16.mxu0 0
        %2493 = vmatpush1.bf16.xpose.msra.mxu0 0
        %2494 = vmatprep.subr.bf16.mxu0 0
        %2495 = vmatpush1.bf16.xpose.msra.mxu0 0
        %2496 = vmatprep.subr.bf16.mxu0 0
        %2497 = vmatpush1.bf16.xpose.msra.mxu0 0
        %2498 = vmatprep.subr.bf16.mxu0 0
        %2499 = vmatpush1.bf16.xpose.msra.mxu0 0
        %2500 = vmatprep.subr.bf16.mxu0 0
        %2501 = vmatpush1.bf16.xpose.msra.mxu0 0
        %2502 = vmatprep.subr.bf16.mxu0 %v1571
        %2503 = vmatpush1.bf16.xpose.msra.mxu0 %v1570
        %2504 = vmatprep.subr.bf16.mxu0 0
        %2505 = vmatpush2.bf16.xpose.msra.mxu0 0
        %2506 = vmatprep.subr.bf16.mxu0 0
        %2507 = vmatpush2.bf16.xpose.msra.mxu0 0
        %2508 = vmatprep.subr.bf16.mxu0 0
        %2509 = vmatpush2.bf16.xpose.msra.mxu0 0
        %2510 = vmatprep.subr.bf16.mxu0 0
        %2511 = vmatpush2.bf16.xpose.msra.mxu0 0
        %2512 = vmatprep.subr.bf16.mxu0 0
        %2513 = vmatpush2.bf16.xpose.msra.mxu0 0
        %2514 = vmatprep.subr.bf16.mxu0 0
        %2515 = vmatpush2.bf16.xpose.msra.mxu0 0
        %2516 = vmatprep.subr.bf16.mxu0 0
        %2517 = vmatpush2.bf16.xpose.msra.mxu0 0
        %2518 = vmatprep.subr.bf16.mxu0 0
        %2519 = vmatpush2.bf16.xpose.msra.mxu0 0
        %2520 = vmatprep.mubr.bf16.mxu0 %v774
        %2521 = vmatmul.mubr.bf16.gmra.mxu0 %v772
        %v2522 = vpop.f32.mrf.mxu0
        %v2523 = vadd.f32 %v2483, %v2522
        %v2524 = vpop.f32.mrf.mxu0
        %v2525 = vpop.f32.mrf.mxu0
        %v2526 = vpop.f32.mrf.mxu0
        %2527 = vdwg.mxu0
        %2528 = vmatprep.subr.bf16.mxu0 0
        %2529 = vmatpush1.bf16.xpose.msra.mxu0 0
        %2530 = vmatprep.subr.bf16.mxu0 0
        %2531 = vmatpush1.bf16.xpose.msra.mxu0 0
        %2532 = vmatprep.subr.bf16.mxu0 0
        %2533 = vmatpush1.bf16.xpose.msra.mxu0 0
        %2534 = vmatprep.subr.bf16.mxu0 0
        %2535 = vmatpush1.bf16.xpose.msra.mxu0 0
        %2536 = vmatprep.subr.bf16.mxu0 0
        %2537 = vmatpush1.bf16.xpose.msra.mxu0 0
        %2538 = vmatprep.subr.bf16.mxu0 0
        %2539 = vmatpush1.bf16.xpose.msra.mxu0 0
        %2540 = vmatprep.subr.bf16.mxu0 0
        %2541 = vmatpush1.bf16.xpose.msra.mxu0 0
        %2542 = vmatprep.subr.bf16.mxu0 %v1573
        %2543 = vmatpush1.bf16.xpose.msra.mxu0 %v1572
        %2544 = vmatprep.subr.bf16.mxu0 0
        %2545 = vmatpush2.bf16.xpose.msra.mxu0 0
        %2546 = vmatprep.subr.bf16.mxu0 0
        %2547 = vmatpush2.bf16.xpose.msra.mxu0 0
        %2548 = vmatprep.subr.bf16.mxu0 0
        %2549 = vmatpush2.bf16.xpose.msra.mxu0 0
        %2550 = vmatprep.subr.bf16.mxu0 0
        %2551 = vmatpush2.bf16.xpose.msra.mxu0 0
        %2552 = vmatprep.subr.bf16.mxu0 0
        %2553 = vmatpush2.bf16.xpose.msra.mxu0 0
        %2554 = vmatprep.subr.bf16.mxu0 0
        %2555 = vmatpush2.bf16.xpose.msra.mxu0 0
        %2556 = vmatprep.subr.bf16.mxu0 0
        %2557 = vmatpush2.bf16.xpose.msra.mxu0 0
        %2558 = vmatprep.subr.bf16.mxu0 0
        %2559 = vmatpush2.bf16.xpose.msra.mxu0 0
        %2560 = vmatprep.mubr.bf16.mxu0 %v812
        %2561 = vmatmul.mubr.bf16.gmra.mxu0 %v798
        %v2562 = vpop.f32.mrf.mxu0
        %v2563 = vadd.f32 %v2523, %v2562
        %v2564 = vpop.f32.mrf.mxu0
        %v2565 = vpop.f32.mrf.mxu0
        %v2566 = vpop.f32.mrf.mxu0
        %2567 = vdwg.mxu0
        %2568 = vmatprep.subr.bf16.mxu0 0
        %2569 = vmatpush1.bf16.xpose.msra.mxu0 0
        %2570 = vmatprep.subr.bf16.mxu0 0
        %2571 = vmatpush1.bf16.xpose.msra.mxu0 0
        %2572 = vmatprep.subr.bf16.mxu0 0
        %2573 = vmatpush1.bf16.xpose.msra.mxu0 0
        %2574 = vmatprep.subr.bf16.mxu0 0
        %2575 = vmatpush1.bf16.xpose.msra.mxu0 0
        %2576 = vmatprep.subr.bf16.mxu0 0
        %2577 = vmatpush1.bf16.xpose.msra.mxu0 0
        %2578 = vmatprep.subr.bf16.mxu0 0
        %2579 = vmatpush1.bf16.xpose.msra.mxu0 0
        %2580 = vmatprep.subr.bf16.mxu0 0
        %2581 = vmatpush1.bf16.xpose.msra.mxu0 0
        %2582 = vmatprep.subr.bf16.mxu0 %v1575
        %2583 = vmatpush1.bf16.xpose.msra.mxu0 %v1574
        %2584 = vmatprep.subr.bf16.mxu0 0
        %2585 = vmatpush2.bf16.xpose.msra.mxu0 0
        %2586 = vmatprep.subr.bf16.mxu0 0
        %2587 = vmatpush2.bf16.xpose.msra.mxu0 0
        %2588 = vmatprep.subr.bf16.mxu0 0
        %2589 = vmatpush2.bf16.xpose.msra.mxu0 0
        %2590 = vmatprep.subr.bf16.mxu0 0
        %2591 = vmatpush2.bf16.xpose.msra.mxu0 0
        %2592 = vmatprep.subr.bf16.mxu0 0
        %2593 = vmatpush2.bf16.xpose.msra.mxu0 0
        %2594 = vmatprep.subr.bf16.mxu0 0
        %2595 = vmatpush2.bf16.xpose.msra.mxu0 0
        %2596 = vmatprep.subr.bf16.mxu0 0
        %2597 = vmatpush2.bf16.xpose.msra.mxu0 0
        %2598 = vmatprep.subr.bf16.mxu0 0
        %2599 = vmatpush2.bf16.xpose.msra.mxu0 0
        %2600 = vmatprep.mubr.bf16.mxu0 %v822
        %2601 = vmatmul.mubr.bf16.gmra.mxu0 %v820
        %v2602 = vpop.f32.mrf.mxu0
        %v2603 = vadd.f32 %v2563, %v2602
        %v2604 = vpop.f32.mrf.mxu0
        %v2605 = vpop.f32.mrf.mxu0
        %v2606 = vpop.f32.mrf.mxu0
        %2607 = vdwg.mxu0
        %2608 = vmatprep.subr.bf16.mxu0 0
        %2609 = vmatpush1.bf16.xpose.msra.mxu0 0
        %2610 = vmatprep.subr.bf16.mxu0 0
        %2611 = vmatpush1.bf16.xpose.msra.mxu0 0
        %2612 = vmatprep.subr.bf16.mxu0 0
        %2613 = vmatpush1.bf16.xpose.msra.mxu0 0
        %2614 = vmatprep.subr.bf16.mxu0 0
        %2615 = vmatpush1.bf16.xpose.msra.mxu0 0
        %2616 = vmatprep.subr.bf16.mxu0 0
        %2617 = vmatpush1.bf16.xpose.msra.mxu0 0
        %2618 = vmatprep.subr.bf16.mxu0 0
        %2619 = vmatpush1.bf16.xpose.msra.mxu0 0
        %2620 = vmatprep.subr.bf16.mxu0 0
        %2621 = vmatpush1.bf16.xpose.msra.mxu0 0
        %2622 = vmatprep.subr.bf16.mxu0 %v1577
        %2623 = vmatpush1.bf16.xpose.msra.mxu0 %v1576
        %2624 = vmatprep.subr.bf16.mxu0 0
        %2625 = vmatpush2.bf16.xpose.msra.mxu0 0
        %2626 = vmatprep.subr.bf16.mxu0 0
        %2627 = vmatpush2.bf16.xpose.msra.mxu0 0
        %2628 = vmatprep.subr.bf16.mxu0 0
        %2629 = vmatpush2.bf16.xpose.msra.mxu0 0
        %2630 = vmatprep.subr.bf16.mxu0 0
        %2631 = vmatpush2.bf16.xpose.msra.mxu0 0
        %2632 = vmatprep.subr.bf16.mxu0 0
        %2633 = vmatpush2.bf16.xpose.msra.mxu0 0
        %2634 = vmatprep.subr.bf16.mxu0 0
        %2635 = vmatpush2.bf16.xpose.msra.mxu0 0
        %2636 = vmatprep.subr.bf16.mxu0 0
        %2637 = vmatpush2.bf16.xpose.msra.mxu0 0
        %2638 = vmatprep.subr.bf16.mxu0 0
        %2639 = vmatpush2.bf16.xpose.msra.mxu0 0
        %2640 = vmatprep.mubr.bf16.mxu0 %v819
        %2641 = vmatmul.mubr.bf16.gmra.mxu0 %v805
        %v2642 = vpop.f32.mrf.mxu0
        %v2643 = vadd.f32 %v2603, %v2642
        %v2644 = vpop.f32.mrf.mxu0
        %v2645 = vpop.f32.mrf.mxu0
        %v2646 = vpop.f32.mrf.mxu0
        %2647 = vdwg.mxu0
        %2648 = vmatprep.subr.bf16.mxu0 0
        %2649 = vmatpush1.bf16.xpose.msra.mxu0 0
        %2650 = vmatprep.subr.bf16.mxu0 0
        %2651 = vmatpush1.bf16.xpose.msra.mxu0 0
        %2652 = vmatprep.subr.bf16.mxu0 0
        %2653 = vmatpush1.bf16.xpose.msra.mxu0 0
        %2654 = vmatprep.subr.bf16.mxu0 0
        %2655 = vmatpush1.bf16.xpose.msra.mxu0 0
        %2656 = vmatprep.subr.bf16.mxu0 0
        %2657 = vmatpush1.bf16.xpose.msra.mxu0 0
        %2658 = vmatprep.subr.bf16.mxu0 0
        %2659 = vmatpush1.bf16.xpose.msra.mxu0 0
        %2660 = vmatprep.subr.bf16.mxu0 0
        %2661 = vmatpush1.bf16.xpose.msra.mxu0 0
        %2662 = vmatprep.subr.bf16.mxu0 %v1579
        %2663 = vmatpush1.bf16.xpose.msra.mxu0 %v1578
        %2664 = vmatprep.subr.bf16.mxu0 0
        %2665 = vmatpush2.bf16.xpose.msra.mxu0 0
        %2666 = vmatprep.subr.bf16.mxu0 0
        %2667 = vmatpush2.bf16.xpose.msra.mxu0 0
        %2668 = vmatprep.subr.bf16.mxu0 0
        %2669 = vmatpush2.bf16.xpose.msra.mxu0 0
        %2670 = vmatprep.subr.bf16.mxu0 0
        %2671 = vmatpush2.bf16.xpose.msra.mxu0 0
        %2672 = vmatprep.subr.bf16.mxu0 0
        %2673 = vmatpush2.bf16.xpose.msra.mxu0 0
        %2674 = vmatprep.subr.bf16.mxu0 0
        %2675 = vmatpush2.bf16.xpose.msra.mxu0 0
        %2676 = vmatprep.subr.bf16.mxu0 0
        %2677 = vmatpush2.bf16.xpose.msra.mxu0 0
        %2678 = vmatprep.subr.bf16.mxu0 0
        %2679 = vmatpush2.bf16.xpose.msra.mxu0 0
        %2680 = vmatprep.mubr.bf16.mxu0 %v823
        %2681 = vmatmul.mubr.bf16.gmra.mxu0 %v821
        %v2682 = vpop.f32.mrf.mxu0
        %v2683 = vadd.f32 %v2643, %v2682
        %v2684 = vpop.f32.mrf.mxu0
        %v2685 = vpop.f32.mrf.mxu0
        %v2686 = vpop.f32.mrf.mxu0
        %2687 = vdwg.mxu0
        %2688 = vmatprep.subr.bf16.mxu0 0
        %2689 = vmatpush1.bf16.xpose.msra.mxu0 0
        %2690 = vmatprep.subr.bf16.mxu0 0
        %2691 = vmatpush1.bf16.xpose.msra.mxu0 0
        %2692 = vmatprep.subr.bf16.mxu0 0
        %2693 = vmatpush1.bf16.xpose.msra.mxu0 0
        %2694 = vmatprep.subr.bf16.mxu0 0
        %2695 = vmatpush1.bf16.xpose.msra.mxu0 0
        %2696 = vmatprep.subr.bf16.mxu0 0
        %2697 = vmatpush1.bf16.xpose.msra.mxu0 0
        %2698 = vmatprep.subr.bf16.mxu0 0
        %2699 = vmatpush1.bf16.xpose.msra.mxu0 0
        %2700 = vmatprep.subr.bf16.mxu0 0
        %2701 = vmatpush1.bf16.xpose.msra.mxu0 0
        %2702 = vmatprep.subr.bf16.mxu0 %v1581
        %2703 = vmatpush1.bf16.xpose.msra.mxu0 %v1580
        %2704 = vmatprep.subr.bf16.mxu0 0
        %2705 = vmatpush2.bf16.xpose.msra.mxu0 0
        %2706 = vmatprep.subr.bf16.mxu0 0
        %2707 = vmatpush2.bf16.xpose.msra.mxu0 0
        %2708 = vmatprep.subr.bf16.mxu0 0
        %2709 = vmatpush2.bf16.xpose.msra.mxu0 0
        %2710 = vmatprep.subr.bf16.mxu0 0
        %2711 = vmatpush2.bf16.xpose.msra.mxu0 0
        %2712 = vmatprep.subr.bf16.mxu0 0
        %2713 = vmatpush2.bf16.xpose.msra.mxu0 0
        %2714 = vmatprep.subr.bf16.mxu0 0
        %2715 = vmatpush2.bf16.xpose.msra.mxu0 0
        %2716 = vmatprep.subr.bf16.mxu0 0
        %2717 = vmatpush2.bf16.xpose.msra.mxu0 0
        %2718 = vmatprep.subr.bf16.mxu0 0
        %2719 = vmatpush2.bf16.xpose.msra.mxu0 0
        %2720 = vmatprep.mubr.bf16.mxu0 %v861
        %2721 = vmatmul.mubr.bf16.gmra.mxu0 %v847
        %v2722 = vpop.f32.mrf.mxu0
        %v2723 = vadd.f32 %v2683, %v2722
        %v2724 = vpop.f32.mrf.mxu0
        %v2725 = vpop.f32.mrf.mxu0
        %v2726 = vpop.f32.mrf.mxu0
        %2727 = vdwg.mxu0
        %2728 = vmatprep.subr.bf16.mxu0 0
        %2729 = vmatpush1.bf16.xpose.msra.mxu0 0
        %2730 = vmatprep.subr.bf16.mxu0 0
        %2731 = vmatpush1.bf16.xpose.msra.mxu0 0
        %2732 = vmatprep.subr.bf16.mxu0 0
        %2733 = vmatpush1.bf16.xpose.msra.mxu0 0
        %2734 = vmatprep.subr.bf16.mxu0 0
        %2735 = vmatpush1.bf16.xpose.msra.mxu0 0
        %2736 = vmatprep.subr.bf16.mxu0 0
        %2737 = vmatpush1.bf16.xpose.msra.mxu0 0
        %2738 = vmatprep.subr.bf16.mxu0 0
        %2739 = vmatpush1.bf16.xpose.msra.mxu0 0
        %2740 = vmatprep.subr.bf16.mxu0 0
        %2741 = vmatpush1.bf16.xpose.msra.mxu0 0
        %2742 = vmatprep.subr.bf16.mxu0 %v1583
        %2743 = vmatpush1.bf16.xpose.msra.mxu0 %v1582
        %2744 = vmatprep.subr.bf16.mxu0 0
        %2745 = vmatpush2.bf16.xpose.msra.mxu0 0
        %2746 = vmatprep.subr.bf16.mxu0 0
        %2747 = vmatpush2.bf16.xpose.msra.mxu0 0
        %2748 = vmatprep.subr.bf16.mxu0 0
        %2749 = vmatpush2.bf16.xpose.msra.mxu0 0
        %2750 = vmatprep.subr.bf16.mxu0 0
        %2751 = vmatpush2.bf16.xpose.msra.mxu0 0
        %2752 = vmatprep.subr.bf16.mxu0 0
        %2753 = vmatpush2.bf16.xpose.msra.mxu0 0
        %2754 = vmatprep.subr.bf16.mxu0 0
        %2755 = vmatpush2.bf16.xpose.msra.mxu0 0
        %2756 = vmatprep.subr.bf16.mxu0 0
        %2757 = vmatpush2.bf16.xpose.msra.mxu0 0
        %2758 = vmatprep.subr.bf16.mxu0 0
        %2759 = vmatpush2.bf16.xpose.msra.mxu0 0
        %2760 = vmatprep.mubr.bf16.mxu0 %v871
        %2761 = vmatmul.mubr.bf16.gmra.mxu0 %v869
        %v2762 = vpop.f32.mrf.mxu0
        %v2763 = vadd.f32 %v2723, %v2762
        %v2764 = vpop.f32.mrf.mxu0
        %v2765 = vpop.f32.mrf.mxu0
        %v2766 = vpop.f32.mrf.mxu0
        %2767 = vdwg.mxu0
        %2768 = vmatprep.subr.bf16.mxu0 0
        %2769 = vmatpush1.bf16.xpose.msra.mxu0 0
        %2770 = vmatprep.subr.bf16.mxu0 0
        %2771 = vmatpush1.bf16.xpose.msra.mxu0 0
        %2772 = vmatprep.subr.bf16.mxu0 0
        %2773 = vmatpush1.bf16.xpose.msra.mxu0 0
        %2774 = vmatprep.subr.bf16.mxu0 0
        %2775 = vmatpush1.bf16.xpose.msra.mxu0 0
        %2776 = vmatprep.subr.bf16.mxu0 0
        %2777 = vmatpush1.bf16.xpose.msra.mxu0 0
        %2778 = vmatprep.subr.bf16.mxu0 0
        %2779 = vmatpush1.bf16.xpose.msra.mxu0 0
        %2780 = vmatprep.subr.bf16.mxu0 0
        %2781 = vmatpush1.bf16.xpose.msra.mxu0 0
        %2782 = vmatprep.subr.bf16.mxu0 %v1585
        %2783 = vmatpush1.bf16.xpose.msra.mxu0 %v1584
        %2784 = vmatprep.subr.bf16.mxu0 0
        %2785 = vmatpush2.bf16.xpose.msra.mxu0 0
        %2786 = vmatprep.subr.bf16.mxu0 0
        %2787 = vmatpush2.bf16.xpose.msra.mxu0 0
        %2788 = vmatprep.subr.bf16.mxu0 0
        %2789 = vmatpush2.bf16.xpose.msra.mxu0 0
        %2790 = vmatprep.subr.bf16.mxu0 0
        %2791 = vmatpush2.bf16.xpose.msra.mxu0 0
        %2792 = vmatprep.subr.bf16.mxu0 0
        %2793 = vmatpush2.bf16.xpose.msra.mxu0 0
        %2794 = vmatprep.subr.bf16.mxu0 0
        %2795 = vmatpush2.bf16.xpose.msra.mxu0 0
        %2796 = vmatprep.subr.bf16.mxu0 0
        %2797 = vmatpush2.bf16.xpose.msra.mxu0 0
        %2798 = vmatprep.subr.bf16.mxu0 0
        %2799 = vmatpush2.bf16.xpose.msra.mxu0 0
        %2800 = vmatprep.mubr.bf16.mxu0 %v868
        %2801 = vmatmul.mubr.bf16.gmra.mxu0 %v854
        %v2802 = vpop.f32.mrf.mxu0
        %v2803 = vadd.f32 %v2763, %v2802
        %v2804 = vpop.f32.mrf.mxu0
        %v2805 = vpop.f32.mrf.mxu0
        %v2806 = vpop.f32.mrf.mxu0
        %2807 = vdwg.mxu0
        %2808 = vmatprep.subr.bf16.mxu0 0
        %2809 = vmatpush1.bf16.xpose.msra.mxu0 0
        %2810 = vmatprep.subr.bf16.mxu0 0
        %2811 = vmatpush1.bf16.xpose.msra.mxu0 0
        %2812 = vmatprep.subr.bf16.mxu0 0
        %2813 = vmatpush1.bf16.xpose.msra.mxu0 0
        %2814 = vmatprep.subr.bf16.mxu0 0
        %2815 = vmatpush1.bf16.xpose.msra.mxu0 0
        %2816 = vmatprep.subr.bf16.mxu0 0
        %2817 = vmatpush1.bf16.xpose.msra.mxu0 0
        %2818 = vmatprep.subr.bf16.mxu0 0
        %2819 = vmatpush1.bf16.xpose.msra.mxu0 0
        %2820 = vmatprep.subr.bf16.mxu0 0
        %2821 = vmatpush1.bf16.xpose.msra.mxu0 0
        %2822 = vmatprep.subr.bf16.mxu0 %v1587
        %2823 = vmatpush1.bf16.xpose.msra.mxu0 %v1586
        %2824 = vmatprep.subr.bf16.mxu0 0
        %2825 = vmatpush2.bf16.xpose.msra.mxu0 0
        %2826 = vmatprep.subr.bf16.mxu0 0
        %2827 = vmatpush2.bf16.xpose.msra.mxu0 0
        %2828 = vmatprep.subr.bf16.mxu0 0
        %2829 = vmatpush2.bf16.xpose.msra.mxu0 0
        %2830 = vmatprep.subr.bf16.mxu0 0
        %2831 = vmatpush2.bf16.xpose.msra.mxu0 0
        %2832 = vmatprep.subr.bf16.mxu0 0
        %2833 = vmatpush2.bf16.xpose.msra.mxu0 0
        %2834 = vmatprep.subr.bf16.mxu0 0
        %2835 = vmatpush2.bf16.xpose.msra.mxu0 0
        %2836 = vmatprep.subr.bf16.mxu0 0
        %2837 = vmatpush2.bf16.xpose.msra.mxu0 0
        %2838 = vmatprep.subr.bf16.mxu0 0
        %2839 = vmatpush2.bf16.xpose.msra.mxu0 0
        %2840 = vmatprep.mubr.bf16.mxu0 %v872
        %2841 = vmatmul.mubr.bf16.gmra.mxu0 %v870
        %v2842 = vpop.f32.mrf.mxu0
        %v2843 = vadd.f32 %v2803, %v2842
        %v2844 = vpop.f32.mrf.mxu0
        %v2845 = vpop.f32.mrf.mxu0
        %v2846 = vpop.f32.mrf.mxu0
        %2847 = vdwg.mxu0
        %2848 = vmatprep.subr.bf16.mxu0 0
        %2849 = vmatpush1.bf16.xpose.msra.mxu0 0
        %2850 = vmatprep.subr.bf16.mxu0 0
        %2851 = vmatpush1.bf16.xpose.msra.mxu0 0
        %2852 = vmatprep.subr.bf16.mxu0 0
        %2853 = vmatpush1.bf16.xpose.msra.mxu0 0
        %2854 = vmatprep.subr.bf16.mxu0 0
        %2855 = vmatpush1.bf16.xpose.msra.mxu0 0
        %2856 = vmatprep.subr.bf16.mxu0 0
        %2857 = vmatpush1.bf16.xpose.msra.mxu0 0
        %2858 = vmatprep.subr.bf16.mxu0 0
        %2859 = vmatpush1.bf16.xpose.msra.mxu0 0
        %2860 = vmatprep.subr.bf16.mxu0 0
        %2861 = vmatpush1.bf16.xpose.msra.mxu0 0
        %2862 = vmatprep.subr.bf16.mxu0 %v1589
        %2863 = vmatpush1.bf16.xpose.msra.mxu0 %v1588
        %2864 = vmatprep.subr.bf16.mxu0 0
        %2865 = vmatpush2.bf16.xpose.msra.mxu0 0
        %2866 = vmatprep.subr.bf16.mxu0 0
        %2867 = vmatpush2.bf16.xpose.msra.mxu0 0
        %2868 = vmatprep.subr.bf16.mxu0 0
        %2869 = vmatpush2.bf16.xpose.msra.mxu0 0
        %2870 = vmatprep.subr.bf16.mxu0 0
        %2871 = vmatpush2.bf16.xpose.msra.mxu0 0
        %2872 = vmatprep.subr.bf16.mxu0 0
        %2873 = vmatpush2.bf16.xpose.msra.mxu0 0
        %2874 = vmatprep.subr.bf16.mxu0 0
        %2875 = vmatpush2.bf16.xpose.msra.mxu0 0
        %2876 = vmatprep.subr.bf16.mxu0 0
        %2877 = vmatpush2.bf16.xpose.msra.mxu0 0
        %2878 = vmatprep.subr.bf16.mxu0 0
        %2879 = vmatpush2.bf16.xpose.msra.mxu0 0
        %2880 = vmatprep.mubr.bf16.mxu0 %v910
        %2881 = vmatmul.mubr.bf16.gmra.mxu0 %v896
        %v2882 = vpop.f32.mrf.mxu0
        %v2883 = vadd.f32 %v2843, %v2882
        %v2884 = vpop.f32.mrf.mxu0
        %v2885 = vpop.f32.mrf.mxu0
        %v2886 = vpop.f32.mrf.mxu0
        %2887 = vdwg.mxu0
        %2888 = vmatprep.subr.bf16.mxu0 0
        %2889 = vmatpush1.bf16.xpose.msra.mxu0 0
        %2890 = vmatprep.subr.bf16.mxu0 0
        %2891 = vmatpush1.bf16.xpose.msra.mxu0 0
        %2892 = vmatprep.subr.bf16.mxu0 0
        %2893 = vmatpush1.bf16.xpose.msra.mxu0 0
        %2894 = vmatprep.subr.bf16.mxu0 0
        %2895 = vmatpush1.bf16.xpose.msra.mxu0 0
        %2896 = vmatprep.subr.bf16.mxu0 0
        %2897 = vmatpush1.bf16.xpose.msra.mxu0 0
        %2898 = vmatprep.subr.bf16.mxu0 0
        %2899 = vmatpush1.bf16.xpose.msra.mxu0 0
        %2900 = vmatprep.subr.bf16.mxu0 0
        %2901 = vmatpush1.bf16.xpose.msra.mxu0 0
        %2902 = vmatprep.subr.bf16.mxu0 %v1591
        %2903 = vmatpush1.bf16.xpose.msra.mxu0 %v1590
        %2904 = vmatprep.subr.bf16.mxu0 0
        %2905 = vmatpush2.bf16.xpose.msra.mxu0 0
        %2906 = vmatprep.subr.bf16.mxu0 0
        %2907 = vmatpush2.bf16.xpose.msra.mxu0 0
        %2908 = vmatprep.subr.bf16.mxu0 0
        %2909 = vmatpush2.bf16.xpose.msra.mxu0 0
        %2910 = vmatprep.subr.bf16.mxu0 0
        %2911 = vmatpush2.bf16.xpose.msra.mxu0 0
        %2912 = vmatprep.subr.bf16.mxu0 0
        %2913 = vmatpush2.bf16.xpose.msra.mxu0 0
        %2914 = vmatprep.subr.bf16.mxu0 0
        %2915 = vmatpush2.bf16.xpose.msra.mxu0 0
        %2916 = vmatprep.subr.bf16.mxu0 0
        %2917 = vmatpush2.bf16.xpose.msra.mxu0 0
        %2918 = vmatprep.subr.bf16.mxu0 0
        %2919 = vmatpush2.bf16.xpose.msra.mxu0 0
        %2920 = vmatprep.mubr.bf16.mxu0 %v920
        %2921 = vmatmul.mubr.bf16.gmra.mxu0 %v918
        %v2922 = vpop.f32.mrf.mxu0
        %v2923 = vadd.f32 %v2883, %v2922
        %v2924 = vpop.f32.mrf.mxu0
        %v2925 = vpop.f32.mrf.mxu0
        %v2926 = vpop.f32.mrf.mxu0
        %2927 = vdwg.mxu0
        %2928 = vmatprep.subr.bf16.mxu0 0
        %2929 = vmatpush1.bf16.xpose.msra.mxu0 0
        %2930 = vmatprep.subr.bf16.mxu0 0
        %2931 = vmatpush1.bf16.xpose.msra.mxu0 0
        %2932 = vmatprep.subr.bf16.mxu0 0
        %2933 = vmatpush1.bf16.xpose.msra.mxu0 0
        %2934 = vmatprep.subr.bf16.mxu0 0
        %2935 = vmatpush1.bf16.xpose.msra.mxu0 0
        %2936 = vmatprep.subr.bf16.mxu0 0
        %2937 = vmatpush1.bf16.xpose.msra.mxu0 0
        %2938 = vmatprep.subr.bf16.mxu0 0
        %2939 = vmatpush1.bf16.xpose.msra.mxu0 0
        %2940 = vmatprep.subr.bf16.mxu0 0
        %2941 = vmatpush1.bf16.xpose.msra.mxu0 0
        %2942 = vmatprep.subr.bf16.mxu0 %v1593
        %2943 = vmatpush1.bf16.xpose.msra.mxu0 %v1592
        %2944 = vmatprep.subr.bf16.mxu0 0
        %2945 = vmatpush2.bf16.xpose.msra.mxu0 0
        %2946 = vmatprep.subr.bf16.mxu0 0
        %2947 = vmatpush2.bf16.xpose.msra.mxu0 0
        %2948 = vmatprep.subr.bf16.mxu0 0
        %2949 = vmatpush2.bf16.xpose.msra.mxu0 0
        %2950 = vmatprep.subr.bf16.mxu0 0
        %2951 = vmatpush2.bf16.xpose.msra.mxu0 0
        %2952 = vmatprep.subr.bf16.mxu0 0
        %2953 = vmatpush2.bf16.xpose.msra.mxu0 0
        %2954 = vmatprep.subr.bf16.mxu0 0
        %2955 = vmatpush2.bf16.xpose.msra.mxu0 0
        %2956 = vmatprep.subr.bf16.mxu0 0
        %2957 = vmatpush2.bf16.xpose.msra.mxu0 0
        %2958 = vmatprep.subr.bf16.mxu0 0
        %2959 = vmatpush2.bf16.xpose.msra.mxu0 0
        %2960 = vmatprep.mubr.bf16.mxu0 %v917
        %2961 = vmatmul.mubr.bf16.gmra.mxu0 %v903
        %v2962 = vpop.f32.mrf.mxu0
        %v2963 = vadd.f32 %v2923, %v2962
        %v2964 = vpop.f32.mrf.mxu0
        %v2965 = vpop.f32.mrf.mxu0
        %v2966 = vpop.f32.mrf.mxu0
        %2967 = vdwg.mxu0
        %2968 = vmatprep.subr.bf16.mxu0 0
        %2969 = vmatpush1.bf16.xpose.msra.mxu0 0
        %2970 = vmatprep.subr.bf16.mxu0 0
        %2971 = vmatpush1.bf16.xpose.msra.mxu0 0
        %2972 = vmatprep.subr.bf16.mxu0 0
        %2973 = vmatpush1.bf16.xpose.msra.mxu0 0
        %2974 = vmatprep.subr.bf16.mxu0 0
        %2975 = vmatpush1.bf16.xpose.msra.mxu0 0
        %2976 = vmatprep.subr.bf16.mxu0 0
        %2977 = vmatpush1.bf16.xpose.msra.mxu0 0
        %2978 = vmatprep.subr.bf16.mxu0 0
        %2979 = vmatpush1.bf16.xpose.msra.mxu0 0
        %2980 = vmatprep.subr.bf16.mxu0 0
        %2981 = vmatpush1.bf16.xpose.msra.mxu0 0
        %2982 = vmatprep.subr.bf16.mxu0 %v1595
        %2983 = vmatpush1.bf16.xpose.msra.mxu0 %v1594
        %2984 = vmatprep.subr.bf16.mxu0 0
        %2985 = vmatpush2.bf16.xpose.msra.mxu0 0
        %2986 = vmatprep.subr.bf16.mxu0 0
        %2987 = vmatpush2.bf16.xpose.msra.mxu0 0
        %2988 = vmatprep.subr.bf16.mxu0 0
        %2989 = vmatpush2.bf16.xpose.msra.mxu0 0
        %2990 = vmatprep.subr.bf16.mxu0 0
        %2991 = vmatpush2.bf16.xpose.msra.mxu0 0
        %2992 = vmatprep.subr.bf16.mxu0 0
        %2993 = vmatpush2.bf16.xpose.msra.mxu0 0
        %2994 = vmatprep.subr.bf16.mxu0 0
        %2995 = vmatpush2.bf16.xpose.msra.mxu0 0
        %2996 = vmatprep.subr.bf16.mxu0 0
        %2997 = vmatpush2.bf16.xpose.msra.mxu0 0
        %2998 = vmatprep.subr.bf16.mxu0 0
        %2999 = vmatpush2.bf16.xpose.msra.mxu0 0
        %3000 = vmatprep.mubr.bf16.mxu0 %v921
        %3001 = vmatmul.mubr.bf16.gmra.mxu0 %v919
        %v3002 = vpop.f32.mrf.mxu0
        %v3003 = vadd.f32 %v2963, %v3002
        %v3004 = vpop.f32.mrf.mxu0
        %v3005 = vpop.f32.mrf.mxu0
        %v3006 = vpop.f32.mrf.mxu0
        %3007 = vdwg.mxu0
        %3008 = vmatprep.subr.bf16.mxu0 0
        %3009 = vmatpush1.bf16.xpose.msra.mxu0 0
        %3010 = vmatprep.subr.bf16.mxu0 0
        %3011 = vmatpush1.bf16.xpose.msra.mxu0 0
        %3012 = vmatprep.subr.bf16.mxu0 0
        %3013 = vmatpush1.bf16.xpose.msra.mxu0 0
        %3014 = vmatprep.subr.bf16.mxu0 0
        %3015 = vmatpush1.bf16.xpose.msra.mxu0 0
        %3016 = vmatprep.subr.bf16.mxu0 0
        %3017 = vmatpush1.bf16.xpose.msra.mxu0 0
        %3018 = vmatprep.subr.bf16.mxu0 0
        %3019 = vmatpush1.bf16.xpose.msra.mxu0 0
        %3020 = vmatprep.subr.bf16.mxu0 0
        %3021 = vmatpush1.bf16.xpose.msra.mxu0 0
        %3022 = vmatprep.subr.bf16.mxu0 %v1597
        %3023 = vmatpush1.bf16.xpose.msra.mxu0 %v1596
        %3024 = vmatprep.subr.bf16.mxu0 0
        %3025 = vmatpush2.bf16.xpose.msra.mxu0 0
        %3026 = vmatprep.subr.bf16.mxu0 0
        %3027 = vmatpush2.bf16.xpose.msra.mxu0 0
        %3028 = vmatprep.subr.bf16.mxu0 0
        %3029 = vmatpush2.bf16.xpose.msra.mxu0 0
        %3030 = vmatprep.subr.bf16.mxu0 0
        %3031 = vmatpush2.bf16.xpose.msra.mxu0 0
        %3032 = vmatprep.subr.bf16.mxu0 0
        %3033 = vmatpush2.bf16.xpose.msra.mxu0 0
        %3034 = vmatprep.subr.bf16.mxu0 0
        %3035 = vmatpush2.bf16.xpose.msra.mxu0 0
        %3036 = vmatprep.subr.bf16.mxu0 0
        %3037 = vmatpush2.bf16.xpose.msra.mxu0 0
        %3038 = vmatprep.subr.bf16.mxu0 0
        %3039 = vmatpush2.bf16.xpose.msra.mxu0 0
        %3040 = vmatprep.mubr.bf16.mxu0 %v959
        %3041 = vmatmul.mubr.bf16.gmra.mxu0 %v945
        %v3042 = vpop.f32.mrf.mxu0
        %v3043 = vadd.f32 %v3003, %v3042
        %v3044 = vpop.f32.mrf.mxu0
        %v3045 = vpop.f32.mrf.mxu0
        %v3046 = vpop.f32.mrf.mxu0
        %3047 = vdwg.mxu0
        %3048 = vmatprep.subr.bf16.mxu0 0
        %3049 = vmatpush1.bf16.xpose.msra.mxu0 0
        %3050 = vmatprep.subr.bf16.mxu0 0
        %3051 = vmatpush1.bf16.xpose.msra.mxu0 0
        %3052 = vmatprep.subr.bf16.mxu0 0
        %3053 = vmatpush1.bf16.xpose.msra.mxu0 0
        %3054 = vmatprep.subr.bf16.mxu0 0
        %3055 = vmatpush1.bf16.xpose.msra.mxu0 0
        %3056 = vmatprep.subr.bf16.mxu0 0
        %3057 = vmatpush1.bf16.xpose.msra.mxu0 0
        %3058 = vmatprep.subr.bf16.mxu0 0
        %3059 = vmatpush1.bf16.xpose.msra.mxu0 0
        %3060 = vmatprep.subr.bf16.mxu0 0
        %3061 = vmatpush1.bf16.xpose.msra.mxu0 0
        %3062 = vmatprep.subr.bf16.mxu0 %v1599
        %3063 = vmatpush1.bf16.xpose.msra.mxu0 %v1598
        %3064 = vmatprep.subr.bf16.mxu0 0
        %3065 = vmatpush2.bf16.xpose.msra.mxu0 0
        %3066 = vmatprep.subr.bf16.mxu0 0
        %3067 = vmatpush2.bf16.xpose.msra.mxu0 0
        %3068 = vmatprep.subr.bf16.mxu0 0
        %3069 = vmatpush2.bf16.xpose.msra.mxu0 0
        %3070 = vmatprep.subr.bf16.mxu0 0
        %3071 = vmatpush2.bf16.xpose.msra.mxu0 0
        %3072 = vmatprep.subr.bf16.mxu0 0
        %3073 = vmatpush2.bf16.xpose.msra.mxu0 0
        %3074 = vmatprep.subr.bf16.mxu0 0
        %3075 = vmatpush2.bf16.xpose.msra.mxu0 0
        %3076 = vmatprep.subr.bf16.mxu0 0
        %3077 = vmatpush2.bf16.xpose.msra.mxu0 0
        %3078 = vmatprep.subr.bf16.mxu0 0
        %3079 = vmatpush2.bf16.xpose.msra.mxu0 0
        %3080 = vmatprep.mubr.bf16.mxu0 %v969
        %3081 = vmatmul.mubr.bf16.gmra.mxu0 %v967
        %v3082 = vpop.f32.mrf.mxu0
        %v3083 = vadd.f32 %v3043, %v3082
        %v3084 = vpop.f32.mrf.mxu0
        %v3085 = vpop.f32.mrf.mxu0
        %v3086 = vpop.f32.mrf.mxu0
        %3087 = vdwg.mxu0
        %3088 = vmatprep.subr.bf16.mxu0 0
        %3089 = vmatpush1.bf16.xpose.msra.mxu0 0
        %3090 = vmatprep.subr.bf16.mxu0 0
        %3091 = vmatpush1.bf16.xpose.msra.mxu0 0
        %3092 = vmatprep.subr.bf16.mxu0 0
        %3093 = vmatpush1.bf16.xpose.msra.mxu0 0
        %3094 = vmatprep.subr.bf16.mxu0 0
        %3095 = vmatpush1.bf16.xpose.msra.mxu0 0
        %3096 = vmatprep.subr.bf16.mxu0 0
        %3097 = vmatpush1.bf16.xpose.msra.mxu0 0
        %3098 = vmatprep.subr.bf16.mxu0 0
        %3099 = vmatpush1.bf16.xpose.msra.mxu0 0
        %3100 = vmatprep.subr.bf16.mxu0 0
        %3101 = vmatpush1.bf16.xpose.msra.mxu0 0
        %3102 = vmatprep.subr.bf16.mxu0 %v1601
        %3103 = vmatpush1.bf16.xpose.msra.mxu0 %v1600
        %3104 = vmatprep.subr.bf16.mxu0 0
        %3105 = vmatpush2.bf16.xpose.msra.mxu0 0
        %3106 = vmatprep.subr.bf16.mxu0 0
        %3107 = vmatpush2.bf16.xpose.msra.mxu0 0
        %3108 = vmatprep.subr.bf16.mxu0 0
        %3109 = vmatpush2.bf16.xpose.msra.mxu0 0
        %3110 = vmatprep.subr.bf16.mxu0 0
        %3111 = vmatpush2.bf16.xpose.msra.mxu0 0
        %3112 = vmatprep.subr.bf16.mxu0 0
        %3113 = vmatpush2.bf16.xpose.msra.mxu0 0
        %3114 = vmatprep.subr.bf16.mxu0 0
        %3115 = vmatpush2.bf16.xpose.msra.mxu0 0
        %3116 = vmatprep.subr.bf16.mxu0 0
        %3117 = vmatpush2.bf16.xpose.msra.mxu0 0
        %3118 = vmatprep.subr.bf16.mxu0 0
        %3119 = vmatpush2.bf16.xpose.msra.mxu0 0
        %3120 = vmatprep.mubr.bf16.mxu0 %v966
        %3121 = vmatmul.mubr.bf16.gmra.mxu0 %v952
        %v3122 = vpop.f32.mrf.mxu0
        %v3123 = vadd.f32 %v3083, %v3122
        %v3124 = vpop.f32.mrf.mxu0
        %v3125 = vpop.f32.mrf.mxu0
        %v3126 = vpop.f32.mrf.mxu0
        %3127 = vdwg.mxu0
        %3128 = vmatprep.subr.bf16.mxu0 0
        %3129 = vmatpush1.bf16.xpose.msra.mxu0 0
        %3130 = vmatprep.subr.bf16.mxu0 0
        %3131 = vmatpush1.bf16.xpose.msra.mxu0 0
        %3132 = vmatprep.subr.bf16.mxu0 0
        %3133 = vmatpush1.bf16.xpose.msra.mxu0 0
        %3134 = vmatprep.subr.bf16.mxu0 0
        %3135 = vmatpush1.bf16.xpose.msra.mxu0 0
        %3136 = vmatprep.subr.bf16.mxu0 0
        %3137 = vmatpush1.bf16.xpose.msra.mxu0 0
        %3138 = vmatprep.subr.bf16.mxu0 0
        %3139 = vmatpush1.bf16.xpose.msra.mxu0 0
        %3140 = vmatprep.subr.bf16.mxu0 0
        %3141 = vmatpush1.bf16.xpose.msra.mxu0 0
        %3142 = vmatprep.subr.bf16.mxu0 %v1603
        %3143 = vmatpush1.bf16.xpose.msra.mxu0 %v1602
        %3144 = vmatprep.subr.bf16.mxu0 0
        %3145 = vmatpush2.bf16.xpose.msra.mxu0 0
        %3146 = vmatprep.subr.bf16.mxu0 0
        %3147 = vmatpush2.bf16.xpose.msra.mxu0 0
        %3148 = vmatprep.subr.bf16.mxu0 0
        %3149 = vmatpush2.bf16.xpose.msra.mxu0 0
        %3150 = vmatprep.subr.bf16.mxu0 0
        %3151 = vmatpush2.bf16.xpose.msra.mxu0 0
        %3152 = vmatprep.subr.bf16.mxu0 0
        %3153 = vmatpush2.bf16.xpose.msra.mxu0 0
        %3154 = vmatprep.subr.bf16.mxu0 0
        %3155 = vmatpush2.bf16.xpose.msra.mxu0 0
        %3156 = vmatprep.subr.bf16.mxu0 0
        %3157 = vmatpush2.bf16.xpose.msra.mxu0 0
        %3158 = vmatprep.subr.bf16.mxu0 0
        %3159 = vmatpush2.bf16.xpose.msra.mxu0 0
        %3160 = vmatprep.mubr.bf16.mxu0 %v970
        %3161 = vmatmul.mubr.bf16.gmra.mxu0 %v968
        %v3162 = vpop.f32.mrf.mxu0
        %v3163 = vadd.f32 %v3123, %v3162
        %v3164 = vpop.f32.mrf.mxu0
        %v3165 = vpop.f32.mrf.mxu0
        %v3166 = vpop.f32.mrf.mxu0
        %3167 = vdwg.mxu0
        %3168 = vmatprep.subr.bf16.mxu0 0
        %3169 = vmatpush1.bf16.xpose.msra.mxu0 0
        %3170 = vmatprep.subr.bf16.mxu0 0
        %3171 = vmatpush1.bf16.xpose.msra.mxu0 0
        %3172 = vmatprep.subr.bf16.mxu0 0
        %3173 = vmatpush1.bf16.xpose.msra.mxu0 0
        %3174 = vmatprep.subr.bf16.mxu0 0
        %3175 = vmatpush1.bf16.xpose.msra.mxu0 0
        %3176 = vmatprep.subr.bf16.mxu0 0
        %3177 = vmatpush1.bf16.xpose.msra.mxu0 0
        %3178 = vmatprep.subr.bf16.mxu0 0
        %3179 = vmatpush1.bf16.xpose.msra.mxu0 0
        %3180 = vmatprep.subr.bf16.mxu0 0
        %3181 = vmatpush1.bf16.xpose.msra.mxu0 0
        %3182 = vmatprep.subr.bf16.mxu0 %v1605
        %3183 = vmatpush1.bf16.xpose.msra.mxu0 %v1604
        %3184 = vmatprep.subr.bf16.mxu0 0
        %3185 = vmatpush2.bf16.xpose.msra.mxu0 0
        %3186 = vmatprep.subr.bf16.mxu0 0
        %3187 = vmatpush2.bf16.xpose.msra.mxu0 0
        %3188 = vmatprep.subr.bf16.mxu0 0
        %3189 = vmatpush2.bf16.xpose.msra.mxu0 0
        %3190 = vmatprep.subr.bf16.mxu0 0
        %3191 = vmatpush2.bf16.xpose.msra.mxu0 0
        %3192 = vmatprep.subr.bf16.mxu0 0
        %3193 = vmatpush2.bf16.xpose.msra.mxu0 0
        %3194 = vmatprep.subr.bf16.mxu0 0
        %3195 = vmatpush2.bf16.xpose.msra.mxu0 0
        %3196 = vmatprep.subr.bf16.mxu0 0
        %3197 = vmatpush2.bf16.xpose.msra.mxu0 0
        %3198 = vmatprep.subr.bf16.mxu0 0
        %3199 = vmatpush2.bf16.xpose.msra.mxu0 0
        %3200 = vmatprep.mubr.bf16.mxu0 %v1008
        %3201 = vmatmul.mubr.bf16.gmra.mxu0 %v994
        %v3202 = vpop.f32.mrf.mxu0
        %v3203 = vadd.f32 %v3163, %v3202
        %v3204 = vpop.f32.mrf.mxu0
        %v3205 = vpop.f32.mrf.mxu0
        %v3206 = vpop.f32.mrf.mxu0
        %3207 = vdwg.mxu0
        %3208 = vmatprep.subr.bf16.mxu0 0
        %3209 = vmatpush1.bf16.xpose.msra.mxu0 0
        %3210 = vmatprep.subr.bf16.mxu0 0
        %3211 = vmatpush1.bf16.xpose.msra.mxu0 0
        %3212 = vmatprep.subr.bf16.mxu0 0
        %3213 = vmatpush1.bf16.xpose.msra.mxu0 0
        %3214 = vmatprep.subr.bf16.mxu0 0
        %3215 = vmatpush1.bf16.xpose.msra.mxu0 0
        %3216 = vmatprep.subr.bf16.mxu0 0
        %3217 = vmatpush1.bf16.xpose.msra.mxu0 0
        %3218 = vmatprep.subr.bf16.mxu0 0
        %3219 = vmatpush1.bf16.xpose.msra.mxu0 0
        %3220 = vmatprep.subr.bf16.mxu0 0
        %3221 = vmatpush1.bf16.xpose.msra.mxu0 0
        %3222 = vmatprep.subr.bf16.mxu0 %v1607
        %3223 = vmatpush1.bf16.xpose.msra.mxu0 %v1606
        %3224 = vmatprep.subr.bf16.mxu0 0
        %3225 = vmatpush2.bf16.xpose.msra.mxu0 0
        %3226 = vmatprep.subr.bf16.mxu0 0
        %3227 = vmatpush2.bf16.xpose.msra.mxu0 0
        %3228 = vmatprep.subr.bf16.mxu0 0
        %3229 = vmatpush2.bf16.xpose.msra.mxu0 0
        %3230 = vmatprep.subr.bf16.mxu0 0
        %3231 = vmatpush2.bf16.xpose.msra.mxu0 0
        %3232 = vmatprep.subr.bf16.mxu0 0
        %3233 = vmatpush2.bf16.xpose.msra.mxu0 0
        %3234 = vmatprep.subr.bf16.mxu0 0
        %3235 = vmatpush2.bf16.xpose.msra.mxu0 0
        %3236 = vmatprep.subr.bf16.mxu0 0
        %3237 = vmatpush2.bf16.xpose.msra.mxu0 0
        %3238 = vmatprep.subr.bf16.mxu0 0
        %3239 = vmatpush2.bf16.xpose.msra.mxu0 0
        %3240 = vmatprep.mubr.bf16.mxu0 %v1018
        %3241 = vmatmul.mubr.bf16.gmra.mxu0 %v1016
        %v3242 = vpop.f32.mrf.mxu0
        %v3243 = vadd.f32 %v3203, %v3242
        %v3244 = vpop.f32.mrf.mxu0
        %v3245 = vpop.f32.mrf.mxu0
        %v3246 = vpop.f32.mrf.mxu0
        %3247 = vdwg.mxu0
        %3248 = vmatprep.subr.bf16.mxu0 0
        %3249 = vmatpush1.bf16.xpose.msra.mxu0 0
        %3250 = vmatprep.subr.bf16.mxu0 0
        %3251 = vmatpush1.bf16.xpose.msra.mxu0 0
        %3252 = vmatprep.subr.bf16.mxu0 0
        %3253 = vmatpush1.bf16.xpose.msra.mxu0 0
        %3254 = vmatprep.subr.bf16.mxu0 0
        %3255 = vmatpush1.bf16.xpose.msra.mxu0 0
        %3256 = vmatprep.subr.bf16.mxu0 0
        %3257 = vmatpush1.bf16.xpose.msra.mxu0 0
        %3258 = vmatprep.subr.bf16.mxu0 0
        %3259 = vmatpush1.bf16.xpose.msra.mxu0 0
        %3260 = vmatprep.subr.bf16.mxu0 0
        %3261 = vmatpush1.bf16.xpose.msra.mxu0 0
        %3262 = vmatprep.subr.bf16.mxu0 %v1609
        %3263 = vmatpush1.bf16.xpose.msra.mxu0 %v1608
        %3264 = vmatprep.subr.bf16.mxu0 0
        %3265 = vmatpush2.bf16.xpose.msra.mxu0 0
        %3266 = vmatprep.subr.bf16.mxu0 0
        %3267 = vmatpush2.bf16.xpose.msra.mxu0 0
        %3268 = vmatprep.subr.bf16.mxu0 0
        %3269 = vmatpush2.bf16.xpose.msra.mxu0 0
        %3270 = vmatprep.subr.bf16.mxu0 0
        %3271 = vmatpush2.bf16.xpose.msra.mxu0 0
        %3272 = vmatprep.subr.bf16.mxu0 0
        %3273 = vmatpush2.bf16.xpose.msra.mxu0 0
        %3274 = vmatprep.subr.bf16.mxu0 0
        %3275 = vmatpush2.bf16.xpose.msra.mxu0 0
        %3276 = vmatprep.subr.bf16.mxu0 0
        %3277 = vmatpush2.bf16.xpose.msra.mxu0 0
        %3278 = vmatprep.subr.bf16.mxu0 0
        %3279 = vmatpush2.bf16.xpose.msra.mxu0 0
        %3280 = vmatprep.mubr.bf16.mxu0 %v1015
        %3281 = vmatmul.mubr.bf16.gmra.mxu0 %v1001
        %v3282 = vpop.f32.mrf.mxu0
        %v3283 = vadd.f32 %v3243, %v3282
        %v3284 = vpop.f32.mrf.mxu0
        %v3285 = vpop.f32.mrf.mxu0
        %v3286 = vpop.f32.mrf.mxu0
        %3287 = vdwg.mxu0
        %3288 = vmatprep.subr.bf16.mxu0 0
        %3289 = vmatpush1.bf16.xpose.msra.mxu0 0
        %3290 = vmatprep.subr.bf16.mxu0 0
        %3291 = vmatpush1.bf16.xpose.msra.mxu0 0
        %3292 = vmatprep.subr.bf16.mxu0 0
        %3293 = vmatpush1.bf16.xpose.msra.mxu0 0
        %3294 = vmatprep.subr.bf16.mxu0 0
        %3295 = vmatpush1.bf16.xpose.msra.mxu0 0
        %3296 = vmatprep.subr.bf16.mxu0 0
        %3297 = vmatpush1.bf16.xpose.msra.mxu0 0
        %3298 = vmatprep.subr.bf16.mxu0 0
        %3299 = vmatpush1.bf16.xpose.msra.mxu0 0
        %3300 = vmatprep.subr.bf16.mxu0 0
        %3301 = vmatpush1.bf16.xpose.msra.mxu0 0
        %3302 = vmatprep.subr.bf16.mxu0 %v1611
        %3303 = vmatpush1.bf16.xpose.msra.mxu0 %v1610
        %3304 = vmatprep.subr.bf16.mxu0 0
        %3305 = vmatpush2.bf16.xpose.msra.mxu0 0
        %3306 = vmatprep.subr.bf16.mxu0 0
        %3307 = vmatpush2.bf16.xpose.msra.mxu0 0
        %3308 = vmatprep.subr.bf16.mxu0 0
        %3309 = vmatpush2.bf16.xpose.msra.mxu0 0
        %3310 = vmatprep.subr.bf16.mxu0 0
        %3311 = vmatpush2.bf16.xpose.msra.mxu0 0
        %3312 = vmatprep.subr.bf16.mxu0 0
        %3313 = vmatpush2.bf16.xpose.msra.mxu0 0
        %3314 = vmatprep.subr.bf16.mxu0 0
        %3315 = vmatpush2.bf16.xpose.msra.mxu0 0
        %3316 = vmatprep.subr.bf16.mxu0 0
        %3317 = vmatpush2.bf16.xpose.msra.mxu0 0
        %3318 = vmatprep.subr.bf16.mxu0 0
        %3319 = vmatpush2.bf16.xpose.msra.mxu0 0
        %3320 = vmatprep.mubr.bf16.mxu0 %v1019
        %3321 = vmatmul.mubr.bf16.gmra.mxu0 %v1017
        %v3322 = vpop.f32.mrf.mxu0
        %v3323 = vadd.f32 %v3283, %v3322
        %v3324 = vpop.f32.mrf.mxu0
        %v3325 = vpop.f32.mrf.mxu0
        %v3326 = vpop.f32.mrf.mxu0
        %3327 = vdwg.mxu0
        %3328 = vmatprep.subr.bf16.mxu0 0
        %3329 = vmatpush1.bf16.xpose.msra.mxu0 0
        %3330 = vmatprep.subr.bf16.mxu0 0
        %3331 = vmatpush1.bf16.xpose.msra.mxu0 0
        %3332 = vmatprep.subr.bf16.mxu0 0
        %3333 = vmatpush1.bf16.xpose.msra.mxu0 0
        %3334 = vmatprep.subr.bf16.mxu0 0
        %3335 = vmatpush1.bf16.xpose.msra.mxu0 0
        %3336 = vmatprep.subr.bf16.mxu0 0
        %3337 = vmatpush1.bf16.xpose.msra.mxu0 0
        %3338 = vmatprep.subr.bf16.mxu0 0
        %3339 = vmatpush1.bf16.xpose.msra.mxu0 0
        %3340 = vmatprep.subr.bf16.mxu0 0
        %3341 = vmatpush1.bf16.xpose.msra.mxu0 0
        %3342 = vmatprep.subr.bf16.mxu0 %v1613
        %3343 = vmatpush1.bf16.xpose.msra.mxu0 %v1612
        %3344 = vmatprep.subr.bf16.mxu0 0
        %3345 = vmatpush2.bf16.xpose.msra.mxu0 0
        %3346 = vmatprep.subr.bf16.mxu0 0
        %3347 = vmatpush2.bf16.xpose.msra.mxu0 0
        %3348 = vmatprep.subr.bf16.mxu0 0
        %3349 = vmatpush2.bf16.xpose.msra.mxu0 0
        %3350 = vmatprep.subr.bf16.mxu0 0
        %3351 = vmatpush2.bf16.xpose.msra.mxu0 0
        %3352 = vmatprep.subr.bf16.mxu0 0
        %3353 = vmatpush2.bf16.xpose.msra.mxu0 0
        %3354 = vmatprep.subr.bf16.mxu0 0
        %3355 = vmatpush2.bf16.xpose.msra.mxu0 0
        %3356 = vmatprep.subr.bf16.mxu0 0
        %3357 = vmatpush2.bf16.xpose.msra.mxu0 0
        %3358 = vmatprep.subr.bf16.mxu0 0
        %3359 = vmatpush2.bf16.xpose.msra.mxu0 0
        %3360 = vmatprep.mubr.bf16.mxu0 %v1057
        %3361 = vmatmul.mubr.bf16.gmra.mxu0 %v1043
        %v3362 = vpop.f32.mrf.mxu0
        %v3363 = vadd.f32 %v3323, %v3362
        %v3364 = vpop.f32.mrf.mxu0
        %v3365 = vpop.f32.mrf.mxu0
        %v3366 = vpop.f32.mrf.mxu0
        %3367 = vdwg.mxu0
        %3368 = vmatprep.subr.bf16.mxu0 0
        %3369 = vmatpush1.bf16.xpose.msra.mxu0 0
        %3370 = vmatprep.subr.bf16.mxu0 0
        %3371 = vmatpush1.bf16.xpose.msra.mxu0 0
        %3372 = vmatprep.subr.bf16.mxu0 0
        %3373 = vmatpush1.bf16.xpose.msra.mxu0 0
        %3374 = vmatprep.subr.bf16.mxu0 0
        %3375 = vmatpush1.bf16.xpose.msra.mxu0 0
        %3376 = vmatprep.subr.bf16.mxu0 0
        %3377 = vmatpush1.bf16.xpose.msra.mxu0 0
        %3378 = vmatprep.subr.bf16.mxu0 0
        %3379 = vmatpush1.bf16.xpose.msra.mxu0 0
        %3380 = vmatprep.subr.bf16.mxu0 0
        %3381 = vmatpush1.bf16.xpose.msra.mxu0 0
        %3382 = vmatprep.subr.bf16.mxu0 %v1615
        %3383 = vmatpush1.bf16.xpose.msra.mxu0 %v1614
        %3384 = vmatprep.subr.bf16.mxu0 0
        %3385 = vmatpush2.bf16.xpose.msra.mxu0 0
        %3386 = vmatprep.subr.bf16.mxu0 0
        %3387 = vmatpush2.bf16.xpose.msra.mxu0 0
        %3388 = vmatprep.subr.bf16.mxu0 0
        %3389 = vmatpush2.bf16.xpose.msra.mxu0 0
        %3390 = vmatprep.subr.bf16.mxu0 0
        %3391 = vmatpush2.bf16.xpose.msra.mxu0 0
        %3392 = vmatprep.subr.bf16.mxu0 0
        %3393 = vmatpush2.bf16.xpose.msra.mxu0 0
        %3394 = vmatprep.subr.bf16.mxu0 0
        %3395 = vmatpush2.bf16.xpose.msra.mxu0 0
        %3396 = vmatprep.subr.bf16.mxu0 0
        %3397 = vmatpush2.bf16.xpose.msra.mxu0 0
        %3398 = vmatprep.subr.bf16.mxu0 0
        %3399 = vmatpush2.bf16.xpose.msra.mxu0 0
        %3400 = vmatprep.mubr.bf16.mxu0 %v1067
        %3401 = vmatmul.mubr.bf16.gmra.mxu0 %v1065
        %v3402 = vpop.f32.mrf.mxu0
        %v3403 = vadd.f32 %v3363, %v3402
        %v3404 = vpop.f32.mrf.mxu0
        %v3405 = vpop.f32.mrf.mxu0
        %v3406 = vpop.f32.mrf.mxu0
        %3407 = vdwg.mxu0
        %3408 = vmatprep.subr.bf16.mxu0 0
        %3409 = vmatpush1.bf16.xpose.msra.mxu0 0
        %3410 = vmatprep.subr.bf16.mxu0 0
        %3411 = vmatpush1.bf16.xpose.msra.mxu0 0
        %3412 = vmatprep.subr.bf16.mxu0 0
        %3413 = vmatpush1.bf16.xpose.msra.mxu0 0
        %3414 = vmatprep.subr.bf16.mxu0 0
        %3415 = vmatpush1.bf16.xpose.msra.mxu0 0
        %3416 = vmatprep.subr.bf16.mxu0 0
        %3417 = vmatpush1.bf16.xpose.msra.mxu0 0
        %3418 = vmatprep.subr.bf16.mxu0 0
        %3419 = vmatpush1.bf16.xpose.msra.mxu0 0
        %3420 = vmatprep.subr.bf16.mxu0 0
        %3421 = vmatpush1.bf16.xpose.msra.mxu0 0
        %3422 = vmatprep.subr.bf16.mxu0 %v1617
        %3423 = vmatpush1.bf16.xpose.msra.mxu0 %v1616
        %3424 = vmatprep.subr.bf16.mxu0 0
        %3425 = vmatpush2.bf16.xpose.msra.mxu0 0
        %3426 = vmatprep.subr.bf16.mxu0 0
        %3427 = vmatpush2.bf16.xpose.msra.mxu0 0
        %3428 = vmatprep.subr.bf16.mxu0 0
        %3429 = vmatpush2.bf16.xpose.msra.mxu0 0
        %3430 = vmatprep.subr.bf16.mxu0 0
        %3431 = vmatpush2.bf16.xpose.msra.mxu0 0
        %3432 = vmatprep.subr.bf16.mxu0 0
        %3433 = vmatpush2.bf16.xpose.msra.mxu0 0
        %3434 = vmatprep.subr.bf16.mxu0 0
        %3435 = vmatpush2.bf16.xpose.msra.mxu0 0
        %3436 = vmatprep.subr.bf16.mxu0 0
        %3437 = vmatpush2.bf16.xpose.msra.mxu0 0
        %3438 = vmatprep.subr.bf16.mxu0 0
        %3439 = vmatpush2.bf16.xpose.msra.mxu0 0
        %3440 = vmatprep.mubr.bf16.mxu0 %v1064
        %3441 = vmatmul.mubr.bf16.gmra.mxu0 %v1050
        %v3442 = vpop.f32.mrf.mxu0
        %v3443 = vadd.f32 %v3403, %v3442
        %v3444 = vpop.f32.mrf.mxu0
        %v3445 = vpop.f32.mrf.mxu0
        %v3446 = vpop.f32.mrf.mxu0
        %3447 = vdwg.mxu0
        %3448 = vmatprep.subr.bf16.mxu0 0
        %3449 = vmatpush1.bf16.xpose.msra.mxu0 0
        %3450 = vmatprep.subr.bf16.mxu0 0
        %3451 = vmatpush1.bf16.xpose.msra.mxu0 0
        %3452 = vmatprep.subr.bf16.mxu0 0
        %3453 = vmatpush1.bf16.xpose.msra.mxu0 0
        %3454 = vmatprep.subr.bf16.mxu0 0
        %3455 = vmatpush1.bf16.xpose.msra.mxu0 0
        %3456 = vmatprep.subr.bf16.mxu0 0
        %3457 = vmatpush1.bf16.xpose.msra.mxu0 0
        %3458 = vmatprep.subr.bf16.mxu0 0
        %3459 = vmatpush1.bf16.xpose.msra.mxu0 0
        %3460 = vmatprep.subr.bf16.mxu0 0
        %3461 = vmatpush1.bf16.xpose.msra.mxu0 0
        %3462 = vmatprep.subr.bf16.mxu0 %v1619
        %3463 = vmatpush1.bf16.xpose.msra.mxu0 %v1618
        %3464 = vmatprep.subr.bf16.mxu0 0
        %3465 = vmatpush2.bf16.xpose.msra.mxu0 0
        %3466 = vmatprep.subr.bf16.mxu0 0
        %3467 = vmatpush2.bf16.xpose.msra.mxu0 0
        %3468 = vmatprep.subr.bf16.mxu0 0
        %3469 = vmatpush2.bf16.xpose.msra.mxu0 0
        %3470 = vmatprep.subr.bf16.mxu0 0
        %3471 = vmatpush2.bf16.xpose.msra.mxu0 0
        %3472 = vmatprep.subr.bf16.mxu0 0
        %3473 = vmatpush2.bf16.xpose.msra.mxu0 0
        %3474 = vmatprep.subr.bf16.mxu0 0
        %3475 = vmatpush2.bf16.xpose.msra.mxu0 0
        %3476 = vmatprep.subr.bf16.mxu0 0
        %3477 = vmatpush2.bf16.xpose.msra.mxu0 0
        %3478 = vmatprep.subr.bf16.mxu0 0
        %3479 = vmatpush2.bf16.xpose.msra.mxu0 0
        %3480 = vmatprep.mubr.bf16.mxu0 %v1068
        %3481 = vmatmul.mubr.bf16.gmra.mxu0 %v1066
        %v3482 = vpop.f32.mrf.mxu0
        %v3483 = vadd.f32 %v3443, %v3482
        %v3484 = vpop.f32.mrf.mxu0
        %v3485 = vpop.f32.mrf.mxu0
        %v3486 = vpop.f32.mrf.mxu0
        %3487 = vdwg.mxu0
        %3488 = vmatprep.subr.bf16.mxu0 0
        %3489 = vmatpush1.bf16.xpose.msra.mxu0 0
        %3490 = vmatprep.subr.bf16.mxu0 0
        %3491 = vmatpush1.bf16.xpose.msra.mxu0 0
        %3492 = vmatprep.subr.bf16.mxu0 0
        %3493 = vmatpush1.bf16.xpose.msra.mxu0 0
        %3494 = vmatprep.subr.bf16.mxu0 0
        %3495 = vmatpush1.bf16.xpose.msra.mxu0 0
        %3496 = vmatprep.subr.bf16.mxu0 0
        %3497 = vmatpush1.bf16.xpose.msra.mxu0 0
        %3498 = vmatprep.subr.bf16.mxu0 0
        %3499 = vmatpush1.bf16.xpose.msra.mxu0 0
        %3500 = vmatprep.subr.bf16.mxu0 0
        %3501 = vmatpush1.bf16.xpose.msra.mxu0 0
        %3502 = vmatprep.subr.bf16.mxu0 %v1621
        %3503 = vmatpush1.bf16.xpose.msra.mxu0 %v1620
        %3504 = vmatprep.subr.bf16.mxu0 0
        %3505 = vmatpush2.bf16.xpose.msra.mxu0 0
        %3506 = vmatprep.subr.bf16.mxu0 0
        %3507 = vmatpush2.bf16.xpose.msra.mxu0 0
        %3508 = vmatprep.subr.bf16.mxu0 0
        %3509 = vmatpush2.bf16.xpose.msra.mxu0 0
        %3510 = vmatprep.subr.bf16.mxu0 0
        %3511 = vmatpush2.bf16.xpose.msra.mxu0 0
        %3512 = vmatprep.subr.bf16.mxu0 0
        %3513 = vmatpush2.bf16.xpose.msra.mxu0 0
        %3514 = vmatprep.subr.bf16.mxu0 0
        %3515 = vmatpush2.bf16.xpose.msra.mxu0 0
        %3516 = vmatprep.subr.bf16.mxu0 0
        %3517 = vmatpush2.bf16.xpose.msra.mxu0 0
        %3518 = vmatprep.subr.bf16.mxu0 0
        %3519 = vmatpush2.bf16.xpose.msra.mxu0 0
        %3520 = vmatprep.mubr.bf16.mxu0 %v1106
        %3521 = vmatmul.mubr.bf16.gmra.mxu0 %v1092
        %v3522 = vpop.f32.mrf.mxu0
        %v3523 = vadd.f32 %v3483, %v3522
        %v3524 = vpop.f32.mrf.mxu0
        %v3525 = vpop.f32.mrf.mxu0
        %v3526 = vpop.f32.mrf.mxu0
        %3527 = vdwg.mxu0
        %3528 = vmatprep.subr.bf16.mxu0 0
        %3529 = vmatpush1.bf16.xpose.msra.mxu0 0
        %3530 = vmatprep.subr.bf16.mxu0 0
        %3531 = vmatpush1.bf16.xpose.msra.mxu0 0
        %3532 = vmatprep.subr.bf16.mxu0 0
        %3533 = vmatpush1.bf16.xpose.msra.mxu0 0
        %3534 = vmatprep.subr.bf16.mxu0 0
        %3535 = vmatpush1.bf16.xpose.msra.mxu0 0
        %3536 = vmatprep.subr.bf16.mxu0 0
        %3537 = vmatpush1.bf16.xpose.msra.mxu0 0
        %3538 = vmatprep.subr.bf16.mxu0 0
        %3539 = vmatpush1.bf16.xpose.msra.mxu0 0
        %3540 = vmatprep.subr.bf16.mxu0 0
        %3541 = vmatpush1.bf16.xpose.msra.mxu0 0
        %3542 = vmatprep.subr.bf16.mxu0 %v1623
        %3543 = vmatpush1.bf16.xpose.msra.mxu0 %v1622
        %3544 = vmatprep.subr.bf16.mxu0 0
        %3545 = vmatpush2.bf16.xpose.msra.mxu0 0
        %3546 = vmatprep.subr.bf16.mxu0 0
        %3547 = vmatpush2.bf16.xpose.msra.mxu0 0
        %3548 = vmatprep.subr.bf16.mxu0 0
        %3549 = vmatpush2.bf16.xpose.msra.mxu0 0
        %3550 = vmatprep.subr.bf16.mxu0 0
        %3551 = vmatpush2.bf16.xpose.msra.mxu0 0
        %3552 = vmatprep.subr.bf16.mxu0 0
        %3553 = vmatpush2.bf16.xpose.msra.mxu0 0
        %3554 = vmatprep.subr.bf16.mxu0 0
        %3555 = vmatpush2.bf16.xpose.msra.mxu0 0
        %3556 = vmatprep.subr.bf16.mxu0 0
        %3557 = vmatpush2.bf16.xpose.msra.mxu0 0
        %3558 = vmatprep.subr.bf16.mxu0 0
        %3559 = vmatpush2.bf16.xpose.msra.mxu0 0
        %3560 = vmatprep.mubr.bf16.mxu0 %v1116
        %3561 = vmatmul.mubr.bf16.gmra.mxu0 %v1114
        %v3562 = vpop.f32.mrf.mxu0
        %v3563 = vadd.f32 %v3523, %v3562
        %v3564 = vpop.f32.mrf.mxu0
        %v3565 = vpop.f32.mrf.mxu0
        %v3566 = vpop.f32.mrf.mxu0
        %3567 = vdwg.mxu0
        %3568 = vmatprep.subr.bf16.mxu0 0
        %3569 = vmatpush1.bf16.xpose.msra.mxu0 0
        %3570 = vmatprep.subr.bf16.mxu0 0
        %3571 = vmatpush1.bf16.xpose.msra.mxu0 0
        %3572 = vmatprep.subr.bf16.mxu0 0
        %3573 = vmatpush1.bf16.xpose.msra.mxu0 0
        %3574 = vmatprep.subr.bf16.mxu0 0
        %3575 = vmatpush1.bf16.xpose.msra.mxu0 0
        %3576 = vmatprep.subr.bf16.mxu0 0
        %3577 = vmatpush1.bf16.xpose.msra.mxu0 0
        %3578 = vmatprep.subr.bf16.mxu0 0
        %3579 = vmatpush1.bf16.xpose.msra.mxu0 0
        %3580 = vmatprep.subr.bf16.mxu0 0
        %3581 = vmatpush1.bf16.xpose.msra.mxu0 0
        %3582 = vmatprep.subr.bf16.mxu0 %v1625
        %3583 = vmatpush1.bf16.xpose.msra.mxu0 %v1624
        %3584 = vmatprep.subr.bf16.mxu0 0
        %3585 = vmatpush2.bf16.xpose.msra.mxu0 0
        %3586 = vmatprep.subr.bf16.mxu0 0
        %3587 = vmatpush2.bf16.xpose.msra.mxu0 0
        %3588 = vmatprep.subr.bf16.mxu0 0
        %3589 = vmatpush2.bf16.xpose.msra.mxu0 0
        %3590 = vmatprep.subr.bf16.mxu0 0
        %3591 = vmatpush2.bf16.xpose.msra.mxu0 0
        %3592 = vmatprep.subr.bf16.mxu0 0
        %3593 = vmatpush2.bf16.xpose.msra.mxu0 0
        %3594 = vmatprep.subr.bf16.mxu0 0
        %3595 = vmatpush2.bf16.xpose.msra.mxu0 0
        %3596 = vmatprep.subr.bf16.mxu0 0
        %3597 = vmatpush2.bf16.xpose.msra.mxu0 0
        %3598 = vmatprep.subr.bf16.mxu0 0
        %3599 = vmatpush2.bf16.xpose.msra.mxu0 0
        %3600 = vmatprep.mubr.bf16.mxu0 %v1113
        %3601 = vmatmul.mubr.bf16.gmra.mxu0 %v1099
        %v3602 = vpop.f32.mrf.mxu0
        %v3603 = vadd.f32 %v3563, %v3602
        %v3604 = vpop.f32.mrf.mxu0
        %v3605 = vpop.f32.mrf.mxu0
        %v3606 = vpop.f32.mrf.mxu0
        %3607 = vdwg.mxu0
        %3608 = vmatprep.subr.bf16.mxu0 0
        %3609 = vmatpush1.bf16.xpose.msra.mxu0 0
        %3610 = vmatprep.subr.bf16.mxu0 0
        %3611 = vmatpush1.bf16.xpose.msra.mxu0 0
        %3612 = vmatprep.subr.bf16.mxu0 0
        %3613 = vmatpush1.bf16.xpose.msra.mxu0 0
        %3614 = vmatprep.subr.bf16.mxu0 0
        %3615 = vmatpush1.bf16.xpose.msra.mxu0 0
        %3616 = vmatprep.subr.bf16.mxu0 0
        %3617 = vmatpush1.bf16.xpose.msra.mxu0 0
        %3618 = vmatprep.subr.bf16.mxu0 0
        %3619 = vmatpush1.bf16.xpose.msra.mxu0 0
        %3620 = vmatprep.subr.bf16.mxu0 0
        %3621 = vmatpush1.bf16.xpose.msra.mxu0 0
        %3622 = vmatprep.subr.bf16.mxu0 %v1627
        %3623 = vmatpush1.bf16.xpose.msra.mxu0 %v1626
        %3624 = vmatprep.subr.bf16.mxu0 0
        %3625 = vmatpush2.bf16.xpose.msra.mxu0 0
        %3626 = vmatprep.subr.bf16.mxu0 0
        %3627 = vmatpush2.bf16.xpose.msra.mxu0 0
        %3628 = vmatprep.subr.bf16.mxu0 0
        %3629 = vmatpush2.bf16.xpose.msra.mxu0 0
        %3630 = vmatprep.subr.bf16.mxu0 0
        %3631 = vmatpush2.bf16.xpose.msra.mxu0 0
        %3632 = vmatprep.subr.bf16.mxu0 0
        %3633 = vmatpush2.bf16.xpose.msra.mxu0 0
        %3634 = vmatprep.subr.bf16.mxu0 0
        %3635 = vmatpush2.bf16.xpose.msra.mxu0 0
        %3636 = vmatprep.subr.bf16.mxu0 0
        %3637 = vmatpush2.bf16.xpose.msra.mxu0 0
        %3638 = vmatprep.subr.bf16.mxu0 0
        %3639 = vmatpush2.bf16.xpose.msra.mxu0 0
        %3640 = vmatprep.mubr.bf16.mxu0 %v1117
        %3641 = vmatmul.mubr.bf16.gmra.mxu0 %v1115
        %v3642 = vpop.f32.mrf.mxu0
        %v3643 = vadd.f32 %v3603, %v3642
        %v3644 = vpop.f32.mrf.mxu0
        %v3645 = vpop.f32.mrf.mxu0
        %v3646 = vpop.f32.mrf.mxu0
        %3647 = vdwg.mxu0
        %3648 = vmatprep.subr.bf16.mxu0 0
        %3649 = vmatpush1.bf16.xpose.msra.mxu0 0
        %3650 = vmatprep.subr.bf16.mxu0 0
        %3651 = vmatpush1.bf16.xpose.msra.mxu0 0
        %3652 = vmatprep.subr.bf16.mxu0 0
        %3653 = vmatpush1.bf16.xpose.msra.mxu0 0
        %3654 = vmatprep.subr.bf16.mxu0 0
        %3655 = vmatpush1.bf16.xpose.msra.mxu0 0
        %3656 = vmatprep.subr.bf16.mxu0 0
        %3657 = vmatpush1.bf16.xpose.msra.mxu0 0
        %3658 = vmatprep.subr.bf16.mxu0 0
        %3659 = vmatpush1.bf16.xpose.msra.mxu0 0
        %3660 = vmatprep.subr.bf16.mxu0 0
        %3661 = vmatpush1.bf16.xpose.msra.mxu0 0
        %3662 = vmatprep.subr.bf16.mxu0 %v1629
        %3663 = vmatpush1.bf16.xpose.msra.mxu0 %v1628
        %3664 = vmatprep.subr.bf16.mxu0 0
        %3665 = vmatpush2.bf16.xpose.msra.mxu0 0
        %3666 = vmatprep.subr.bf16.mxu0 0
        %3667 = vmatpush2.bf16.xpose.msra.mxu0 0
        %3668 = vmatprep.subr.bf16.mxu0 0
        %3669 = vmatpush2.bf16.xpose.msra.mxu0 0
        %3670 = vmatprep.subr.bf16.mxu0 0
        %3671 = vmatpush2.bf16.xpose.msra.mxu0 0
        %3672 = vmatprep.subr.bf16.mxu0 0
        %3673 = vmatpush2.bf16.xpose.msra.mxu0 0
        %3674 = vmatprep.subr.bf16.mxu0 0
        %3675 = vmatpush2.bf16.xpose.msra.mxu0 0
        %3676 = vmatprep.subr.bf16.mxu0 0
        %3677 = vmatpush2.bf16.xpose.msra.mxu0 0
        %3678 = vmatprep.subr.bf16.mxu0 0
        %3679 = vmatpush2.bf16.xpose.msra.mxu0 0
        %3680 = vmatprep.mubr.bf16.mxu0 %v1139
        %3681 = vmatmul.mubr.bf16.gmra.mxu0 %v1132
        %v3682 = vpop.f32.mrf.mxu0
        %v3683 = vadd.f32 %v3643, %v3682
        %v3684 = vpop.f32.mrf.mxu0
        %v3685 = vpop.f32.mrf.mxu0
        %v3686 = vpop.f32.mrf.mxu0
        %3687 = vdwg.mxu0
        %v3688 = vadd.f32 %v405, %v3683
        %vm3689 = vcmask 74752
        %3690 = vst.msk [vmem:[#allocation3] sm:$0x3] %vm3689, %v3688
        // Predicated region
        $region60: #{forward.3} parent=50 // pred_check
          %p3691 = pneg %p101
        $region61: #{forward.3} parent=50 // pred_check_branch
          %3693 = sbr.rel (%p3691) target = $region63
        $region62: #{forward.3} parent=50 // pred_region
          %s3695 = ssub.s32 32, 32
          %3696 = vsyncadd [#allocation4], %s3695
          %s3698 = sshll.u32 [#allocation3], 4
          %s3699 = int_to_ptr.vmem [resolvable:$true] %s3698
          %3701 = dma.vmem_to_hbm [thread:$0]  %s3699, 32, %s3, [#allocation4]
        $region63: #{forward.3} parent=50 // pred_fallthru
          _
        // Predicated region
        $region64: #{forward.3} parent=50 // pred_check
          %p3702 = pneg %p101
        $region65: #{forward.3} parent=50 // pred_check_branch
          %3704 = sbr.rel (%p3702) target = $region67
        $region66: #{forward.3} parent=50 // pred_region
          %3705 = dma.done [#allocation4], 32
        $region67: #{forward.3} parent=50 // pred_fallthru
          _
      $region51: #{forward.3} parent=5 // pred_fallthru
        _
      %p3706 = scmp.le.s32.totalorder 2, %s10
      // Predicated region
      $region68: #{forward.3} parent=5 // pred_check
        %p3707 = pneg %p3706
      $region69: #{forward.3} parent=5 // pred_check_branch
        %3709 = sbr.rel (%p3707) target = $region71
      $region70: #{forward.3} parent=5 // pred_region
        %s3710 = ssub.s32 %s10, 2
      $region71: #{forward.3} parent=5 // pred_fallthru
        _
    $region6: #{forward.3} parent=1 // loop_footer
      %s14 = sadd.s32 1, %s10
    $region7: #{forward.3} parent=1 // loop_footer_branch
      %9 = sbr.rel target = $region3
    $region8: #{forward.3} parent=1 // loop_exit
      _
    %3711 = vsyncpa [#allocation4], 1
    %s3712 = scalar_lea.sflag [#allocation4], 1
    %3713 = vsyncpa %s3712, 1

</llo_original>
